<compile_context>
chip_gen: v7x
topology: tpu7x:2x2x1
jax: 0.10.0
libtpu: 0.0.40
codegen_flags: <defaults>
</compile_context>

<pallas_src>
import functools
import math

import jax
import jax.numpy as jnp
from jax import lax
from jax.experimental import pallas as pl
from jax.experimental.pallas import tpu as pltpu


def _layer_norm(x, gamma, beta, eps):
    """PyTorch LayerNorm over the last dim (biased variance, eps inside sqrt)."""
    mu = jnp.mean(x, axis=-1, keepdims=True)
    xc = x - mu
    var = jnp.mean(xc * xc, axis=-1, keepdims=True)
    return xc * lax.rsqrt(var + eps) * gamma + beta


def encoder_kernel(x_ref, bias_ref,
                   wqkv_ref, bqkv_ref, wo_ref, bo_ref,
                   w1_ref, b1_ref, w2_ref, b2_ref,
                   g1_ref, be1_ref, g2_ref, be2_ref,
                   o_ref, *, nlayers, nhead, eps):
    """One grid step = one batch element's full (S, D) sequence, all layers.

    x_ref   : (1, S, D)      input sequence
    bias_ref: (1, S, S)      additive attention bias (src_mask + key padding)
    wqkv    : (L, D, 3D)     fused QKV weights (pre-transposed: y = x @ W)
    wo      : (L, D, D)      out-projection weights (pre-transposed)
    w1/w2   : (L, D, F) / (L, F, D)   FFN weights (pre-transposed)
    b*      : (L, 1, ...)    biases;  g*/be*: (L, 1, D) LayerNorm affine
    o_ref   : (1, S, D)      output sequence
    """
    x = x_ref[0].astype(jnp.float32)            # (S, D)
    bias = bias_ref[0].astype(jnp.float32)      # (S, S)
    S, D = x.shape
    dh = D // nhead
    scale = 1.0 / math.sqrt(dh)

    # nlayers / nhead are small compile-time constants -> static unroll.
    for l in range(nlayers):
        # ---- fused QKV projection (one MXU matmul instead of three) ------
        qkv = jnp.dot(x, wqkv_ref[l],
                      preferred_element_type=jnp.float32) + bqkv_ref[l]
        q = qkv[:, 0 * D:1 * D]
        k = qkv[:, 1 * D:2 * D]
        v = qkv[:, 2 * D:3 * D]

        # ---- multi-head scaled dot-product attention ---------------------
        wo_l = wo_ref[l]                        # (D, D), loaded once per layer
        acc = jnp.zeros((S, D), jnp.float32)
        for h in range(nhead):
            sl = slice(h * dh, (h + 1) * dh)
            qh, kh, vh = q[:, sl], k[:, sl], v[:, sl]
            s = jnp.einsum('qd,kd->qk', qh, kh,
                           preferred_element_type=jnp.float32) * scale + bias
            s = s - jnp.max(s, axis=-1, keepdims=True)
            p = jnp.exp(s)
            p = p / jnp.sum(p, axis=-1, keepdims=True)
            oh = jnp.dot(p, vh, preferred_element_type=jnp.float32)   # (S, dh)
            # concat-of-heads @ Wo  ==  sum_h head_h @ Wo[h*dh:(h+1)*dh, :]
            acc = acc + jnp.dot(oh, wo_l[sl, :],
                                preferred_element_type=jnp.float32)
        a = acc + bo_ref[l]

        # residual + LayerNorm (post-norm: PyTorch norm_first=False default)
        x = _layer_norm(x + a, g1_ref[l], be1_ref[l], eps)

        # ---- position-wise feed-forward ----------------------------------
        hdn = jnp.maximum(
            jnp.dot(x, w1_ref[l], preferred_element_type=jnp.float32)
            + b1_ref[l], 0.0)
        f = jnp.dot(hdn, w2_ref[l],
                    preferred_element_type=jnp.float32) + b2_ref[l]
        x = _layer_norm(x + f, g2_ref[l], be2_ref[l], eps)

    o_ref[0] = x.astype(o_ref.dtype)


def transformer_encoder_forward(x, src_mask, src_pad_mask, params,
                                *, nhead, eps=1e-5):
    """x: (B, S, D).  src_mask: (S, S) additive float mask.
    src_pad_mask: (B, S) bool, True = padded key position."""
    (wqkv, bqkv, wo, bo, w1, b1, w2, b2, g1, be1, g2, be2) = params
    B, S, D = x.shape
    L = wqkv.shape[0]
    F = w1.shape[-1]

    # Combine float attention mask with the boolean key-padding mask into a
    # single additive per-batch bias (large negative => ignored by softmax),
    # matching nn.MultiheadAttention's mask merging.
    neg = jnp.float32(-1e9)
    attn_bias = (src_mask[None, :, :].astype(jnp.float32)
                 + jnp.where(src_pad_mask[:, None, :], neg, jnp.float32(0.0)))

    kernel = functools.partial(encoder_kernel, nlayers=L, nhead=nhead, eps=eps)

    out = pl.pallas_call(
        kernel,
        out_shape=jax.ShapeDtypeStruct((B, S, D), x.dtype),
        grid_spec=pltpu.PrefetchScalarGridSpec(
            num_scalar_prefetch=0,
            grid=(B,),
            in_specs=[
                pl.BlockSpec((1, S, D), lambda b: (b, 0, 0)),       # x
                pl.BlockSpec((1, S, S), lambda b: (b, 0, 0)),       # attn bias
                pl.BlockSpec((L, D, 3 * D), lambda b: (0, 0, 0)),   # Wqkv
                pl.BlockSpec((L, 1, 3 * D), lambda b: (0, 0, 0)),   # bqkv
                pl.BlockSpec((L, D, D), lambda b: (0, 0, 0)),       # Wo
                pl.BlockSpec((L, 1, D), lambda b: (0, 0, 0)),       # bo
                pl.BlockSpec((L, D, F), lambda b: (0, 0, 0)),       # W1
                pl.BlockSpec((L, 1, F), lambda b: (0, 0, 0)),       # b1
                pl.BlockSpec((L, F, D), lambda b: (0, 0, 0)),       # W2
                pl.BlockSpec((L, 1, D), lambda b: (0, 0, 0)),       # b2
                pl.BlockSpec((L, 1, D), lambda b: (0, 0, 0)),       # ln1 gamma
                pl.BlockSpec((L, 1, D), lambda b: (0, 0, 0)),       # ln1 beta
                pl.BlockSpec((L, 1, D), lambda b: (0, 0, 0)),       # ln2 gamma
                pl.BlockSpec((L, 1, D), lambda b: (0, 0, 0)),       # ln2 beta
            ],
            out_specs=pl.BlockSpec((1, S, D), lambda b: (b, 0, 0)),
        ),
        compiler_params=pltpu.CompilerParams(
            dimension_semantics=("parallel",)),
    )(x, attn_bias, wqkv, bqkv, wo, bo, w1, b1, w2, b2, g1, be1, g2, be2)
    return out


def init_params(key, ninp, nhid, nlayers):
    """Parameters with torch.nn.TransformerEncoderLayer shapes, stored
    pre-transposed (in, out) so the kernel computes x @ W == x @ W_pt^T."""
    D, F = ninp, nhid
    keys = jax.random.split(key, nlayers * 8)

    def uni(k, shape, bound):
        return jax.random.uniform(k, shape, jnp.float32, -bound, bound)

    names = ("wqkv", "bqkv", "wo", "bo", "w1", "b1", "w2", "b2",
             "g1", "be1", "g2", "be2")
    p = {n: [] for n in names}
    xav_d = math.sqrt(6.0 / (D + D))
    xav_f = math.sqrt(6.0 / (D + F))
    for l in range(nlayers):
        k = keys[8 * l: 8 * l + 8]
        p["wqkv"].append(uni(k[0], (D, 3 * D), xav_d))
        p["bqkv"].append(uni(k[1], (1, 3 * D), 0.1))
        p["wo"].append(uni(k[2], (D, D), xav_d))
        p["bo"].append(uni(k[3], (1, D), 0.1))
        p["w1"].append(uni(k[4], (D, F), xav_f))
        p["b1"].append(uni(k[5], (1, F), 0.1))
        p["w2"].append(uni(k[6], (F, D), xav_f))
        p["b2"].append(uni(k[7], (1, D), 0.1))
        p["g1"].append(jnp.ones((1, D), jnp.float32))
        p["be1"].append(jnp.zeros((1, D), jnp.float32))
        p["g2"].append(jnp.ones((1, D), jnp.float32))
        p["be2"].append(jnp.zeros((1, D), jnp.float32))
    return tuple(jnp.stack(p[n]) for n in names)


def transformer_encoder_ref(x, src_mask, src_pad_mask, params, *, nhead,
                            eps=1e-5):
    """Pure-JAX reference (same math as the PyTorch module in eval mode)."""
    (wqkv, bqkv, wo, bo, w1, b1, w2, b2, g1, be1, g2, be2) = params
    B, S, D = x.shape
    L = wqkv.shape[0]
    dh = D // nhead
    neg = jnp.float32(-1e9)
    bias = (src_mask[None].astype(jnp.float32)
            + jnp.where(src_pad_mask[:, None, :], neg, jnp.float32(0.0)))
    out = x.astype(jnp.float32)
    for l in range(L):
        qkv = out @ wqkv[l] + bqkv[l]
        q, k, v = jnp.split(qkv, 3, axis=-1)
        q = q.reshape(B, S, nhead, dh).transpose(0, 2, 1, 3)
        k = k.reshape(B, S, nhead, dh).transpose(0, 2, 1, 3)
        v = v.reshape(B, S, nhead, dh).transpose(0, 2, 1, 3)
        s = jnp.einsum('bhqd,bhkd->bhqk', q, k) / math.sqrt(dh) + bias[:, None]
        p = jax.nn.softmax(s, axis=-1)
        a = jnp.einsum('bhqk,bhkd->bhqd', p, v)
        a = a.transpose(0, 2, 1, 3).reshape(B, S, D) @ wo[l] + bo[l]
        out = _layer_norm(out + a, g1[l], be1[l], eps)
        h = jax.nn.relu(out @ w1[l] + b1[l])
        f = h @ w2[l] + b2[l]
        out = _layer_norm(out + f, g2[l], be2[l], eps)
    return out


if __name__ == "__main__":
    key = jax.random.PRNGKey(0)
    k_param, k_x = jax.random.split(key)

    # Small shapes consistent with the module: d_model=32, nhead=4, nhid=64,
    # nlayers=2, batch=2, seq=8.
    ninp, nhead, nhid, nlayers = 32, 4, 64, 2
    B, S = 2, 8

    params = init_params(k_param, ninp, nhid, nlayers)
    x = jax.random.normal(k_x, (B, S, ninp), dtype=jnp.float32)

    # src_mask: causal additive float mask; src_pad_mask: last position of
    # batch element 1 is padded (True = ignore as attention key).
    src_mask = jnp.where(jnp.triu(jnp.ones((S, S), jnp.bool_), k=1),
                         jnp.float32(-1e9), jnp.float32(0.0))
    src_pad_mask = jnp.zeros((B, S), jnp.bool_).at[1, S - 1].set(True)

    out = transformer_encoder_forward(x, src_mask, src_pad_mask, params,
                                      nhead=nhead)
    out = jax.block_until_ready(out)

    ref = transformer_encoder_ref(x, src_mask, src_pad_mask, params,
                                  nhead=nhead)
    assert out.shape == (B, S, ninp)
    err = float(jnp.max(jnp.abs(out - ref)))
    assert jnp.allclose(out, ref, atol=1e-3, rtol=1e-3), f"mismatch: {err}"

    print("KERNEL_OK")
</pallas_src>

<mosaic_0001>
module attributes {stable_mosaic.version = 11 : i64} {
  func.func @encoder_kernel(%arg0: i32, %arg1: memref<1x8x32xf32, #tpu.memory_space<vmem>>, %arg2: memref<1x8x8xf32, #tpu.memory_space<vmem>>, %arg3: memref<2x32x96xf32, #tpu.memory_space<vmem>>, %arg4: memref<2x1x96xf32, #tpu.memory_space<vmem>>, %arg5: memref<2x32x32xf32, #tpu.memory_space<vmem>>, %arg6: memref<2x1x32xf32, #tpu.memory_space<vmem>>, %arg7: memref<2x32x64xf32, #tpu.memory_space<vmem>>, %arg8: memref<2x1x64xf32, #tpu.memory_space<vmem>>, %arg9: memref<2x64x32xf32, #tpu.memory_space<vmem>>, %arg10: memref<2x1x32xf32, #tpu.memory_space<vmem>>, %arg11: memref<2x1x32xf32, #tpu.memory_space<vmem>>, %arg12: memref<2x1x32xf32, #tpu.memory_space<vmem>>, %arg13: memref<2x1x32xf32, #tpu.memory_space<vmem>>, %arg14: memref<2x1x32xf32, #tpu.memory_space<vmem>>, %arg15: memref<1x8x32xf32, #tpu.memory_space<vmem>>) attributes {dimension_semantics = [#tpu.dimension_semantics<parallel>], iteration_bounds = array<i64: 2>, scalar_prefetch = 0 : i64, scratch_operands = 0 : i64, tpu.core_type = #tpu.core_type<tc>, window_params = [{transform_indices = @transform_0, window_bounds = array<i64: 1, 8, 32>}, {transform_indices = @transform_1, window_bounds = array<i64: 1, 8, 8>}, {pipeline_mode = #tpu.pipeline_mode<synchronous>, transform_indices = @transform_2, window_bounds = array<i64: 2, 32, 96>}, {pipeline_mode = #tpu.pipeline_mode<synchronous>, transform_indices = @transform_3, window_bounds = array<i64: 2, 1, 96>}, {pipeline_mode = #tpu.pipeline_mode<synchronous>, transform_indices = @transform_4, window_bounds = array<i64: 2, 32, 32>}, {pipeline_mode = #tpu.pipeline_mode<synchronous>, transform_indices = @transform_5, window_bounds = array<i64: 2, 1, 32>}, {pipeline_mode = #tpu.pipeline_mode<synchronous>, transform_indices = @transform_6, window_bounds = array<i64: 2, 32, 64>}, {pipeline_mode = #tpu.pipeline_mode<synchronous>, transform_indices = @transform_7, window_bounds = array<i64: 2, 1, 64>}, {pipeline_mode = #tpu.pipeline_mode<synchronous>, transform_indices = @transform_8, window_bounds = array<i64: 2, 64, 32>}, {pipeline_mode = #tpu.pipeline_mode<synchronous>, transform_indices = @transform_9, window_bounds = array<i64: 2, 1, 32>}, {pipeline_mode = #tpu.pipeline_mode<synchronous>, transform_indices = @transform_10, window_bounds = array<i64: 2, 1, 32>}, {pipeline_mode = #tpu.pipeline_mode<synchronous>, transform_indices = @transform_11, window_bounds = array<i64: 2, 1, 32>}, {pipeline_mode = #tpu.pipeline_mode<synchronous>, transform_indices = @transform_12, window_bounds = array<i64: 2, 1, 32>}, {pipeline_mode = #tpu.pipeline_mode<synchronous>, transform_indices = @transform_13, window_bounds = array<i64: 2, 1, 32>}, {transform_indices = @transform_14, window_bounds = array<i64: 1, 8, 32>}]} {
    %c0 = arith.constant 0 : index
    %c0_0 = arith.constant 0 : index
    %c0_1 = arith.constant 0 : index
    %0 = vector.load %arg1[%c0, %c0_0, %c0_1] : memref<1x8x32xf32, #tpu.memory_space<vmem>>, vector<1x8x32xf32>
    %1 = vector.shape_cast %0 : vector<1x8x32xf32> to vector<8x32xf32>
    %c0_2 = arith.constant 0 : index
    %c0_3 = arith.constant 0 : index
    %c0_4 = arith.constant 0 : index
    %2 = vector.load %arg2[%c0_2, %c0_3, %c0_4] : memref<1x8x8xf32, #tpu.memory_space<vmem>>, vector<1x8x8xf32>
    %3 = vector.shape_cast %2 : vector<1x8x8xf32> to vector<8x8xf32>
    %c0_5 = arith.constant 0 : index
    %c0_6 = arith.constant 0 : index
    %c0_7 = arith.constant 0 : index
    %4 = vector.load %arg3[%c0_5, %c0_6, %c0_7] : memref<2x32x96xf32, #tpu.memory_space<vmem>>, vector<1x32x96xf32>
    %5 = vector.shape_cast %4 : vector<1x32x96xf32> to vector<32x96xf32>
    %cst = arith.constant dense<0.000000e+00> : vector<8x96xf32>
    %6 = tpu.matmul %1, %5, %cst {dimension_numbers = #tpu.dot_dimension_numbers<[1], [0], [0], [1], [0, 0, 1, 1], [], []>} : vector<8x32xf32>, vector<32x96xf32>, vector<8x96xf32> -> vector<8x96xf32>
    %c0_8 = arith.constant 0 : index
    %c0_9 = arith.constant 0 : index
    %c0_10 = arith.constant 0 : index
    %7 = vector.load %arg4[%c0_8, %c0_9, %c0_10] : memref<2x1x96xf32, #tpu.memory_space<vmem>>, vector<1x1x96xf32>
    %8 = vector.shape_cast %7 : vector<1x1x96xf32> to vector<1x96xf32>
    %9 = vector.broadcast %8 : vector<1x96xf32> to vector<8x96xf32>
    %10 = arith.addf %6, %9 : vector<8x96xf32>
    %11 = vector.extract_strided_slice %10 {offsets = [0, 0], sizes = [8, 32], strides = [1, 1]} : vector<8x96xf32> to vector<8x32xf32>
    %12 = vector.extract_strided_slice %10 {offsets = [0, 32], sizes = [8, 32], strides = [1, 1]} : vector<8x96xf32> to vector<8x32xf32>
    %13 = vector.extract_strided_slice %10 {offsets = [0, 64], sizes = [8, 32], strides = [1, 1]} : vector<8x96xf32> to vector<8x32xf32>
    %c0_11 = arith.constant 0 : index
    %c0_12 = arith.constant 0 : index
    %c0_13 = arith.constant 0 : index
    %14 = vector.load %arg5[%c0_11, %c0_12, %c0_13] : memref<2x32x32xf32, #tpu.memory_space<vmem>>, vector<1x32x32xf32>
    %15 = vector.shape_cast %14 : vector<1x32x32xf32> to vector<32x32xf32>
    %cst_14 = arith.constant 0.000000e+00 : f32
    %16 = vector.broadcast %cst_14 : f32 to vector<8x32xf32>
    %17 = vector.extract_strided_slice %11 {offsets = [0, 0], sizes = [8, 8], strides = [1, 1]} : vector<8x32xf32> to vector<8x8xf32>
    %18 = vector.extract_strided_slice %12 {offsets = [0, 0], sizes = [8, 8], strides = [1, 1]} : vector<8x32xf32> to vector<8x8xf32>
    %19 = vector.extract_strided_slice %13 {offsets = [0, 0], sizes = [8, 8], strides = [1, 1]} : vector<8x32xf32> to vector<8x8xf32>
    "tpu.trace_start"() <{level = 10 : i32, message = "qd,kd->qk"}> : () -> ()
    %cst_15 = arith.constant dense<0.000000e+00> : vector<8x8xf32>
    %20 = tpu.matmul %17, %18, %cst_15 {dimension_numbers = #tpu.dot_dimension_numbers<[1], [1], [0], [0], [0, 0, 1, 0], [], []>} : vector<8x8xf32>, vector<8x8xf32>, vector<8x8xf32> -> vector<8x8xf32>
    "tpu.trace_stop"() : () -> ()
    %cst_16 = arith.constant 0.353553385 : f32
    %21 = vector.broadcast %cst_16 : f32 to vector<8x8xf32>
    %22 = arith.mulf %20, %21 : vector<8x8xf32>
    %23 = arith.addf %22, %3 : vector<8x8xf32>
    %cst_17 = arith.constant dense<0xFF800000> : vector<8xf32>
    %24 = vector.multi_reduction <maximumf>, %23, %cst_17 [1] : vector<8x8xf32> to vector<8xf32>
    %25 = vector.shape_cast %24 : vector<8xf32> to vector<8x1xf32>
    %26 = vector.broadcast %25 : vector<8x1xf32> to vector<8x8xf32>
    %27 = arith.subf %23, %26 : vector<8x8xf32>
    %28 = math.exp %27 : vector<8x8xf32>
    %cst_18 = arith.constant dense<0.000000e+00> : vector<8xf32>
    %29 = vector.multi_reduction <add>, %28, %cst_18 [1] : vector<8x8xf32> to vector<8xf32>
    %30 = vector.shape_cast %29 : vector<8xf32> to vector<8x1xf32>
    %31 = vector.broadcast %30 : vector<8x1xf32> to vector<8x8xf32>
    %32 = arith.divf %28, %31 : vector<8x8xf32>
    %cst_19 = arith.constant dense<0.000000e+00> : vector<8x8xf32>
    %33 = tpu.matmul %32, %19, %cst_19 {dimension_numbers = #tpu.dot_dimension_numbers<[1], [0], [0], [1], [0, 0, 1, 1], [], []>} : vector<8x8xf32>, vector<8x8xf32>, vector<8x8xf32> -> vector<8x8xf32>
    %34 = vector.extract_strided_slice %15 {offsets = [0, 0], sizes = [8, 32], strides = [1, 1]} : vector<32x32xf32> to vector<8x32xf32>
    %cst_20 = arith.constant dense<0.000000e+00> : vector<8x32xf32>
    %35 = tpu.matmul %33, %34, %cst_20 {dimension_numbers = #tpu.dot_dimension_numbers<[1], [0], [0], [1], [0, 0, 1, 1], [], []>} : vector<8x8xf32>, vector<8x32xf32>, vector<8x32xf32> -> vector<8x32xf32>
    %36 = arith.addf %16, %35 : vector<8x32xf32>
    %37 = vector.extract_strided_slice %11 {offsets = [0, 8], sizes = [8, 8], strides = [1, 1]} : vector<8x32xf32> to vector<8x8xf32>
    %38 = vector.extract_strided_slice %12 {offsets = [0, 8], sizes = [8, 8], strides = [1, 1]} : vector<8x32xf32> to vector<8x8xf32>
    %39 = vector.extract_strided_slice %13 {offsets = [0, 8], sizes = [8, 8], strides = [1, 1]} : vector<8x32xf32> to vector<8x8xf32>
    "tpu.trace_start"() <{level = 10 : i32, message = "qd,kd->qk"}> : () -> ()
    %cst_21 = arith.constant dense<0.000000e+00> : vector<8x8xf32>
    %40 = tpu.matmul %37, %38, %cst_21 {dimension_numbers = #tpu.dot_dimension_numbers<[1], [1], [0], [0], [0, 0, 1, 0], [], []>} : vector<8x8xf32>, vector<8x8xf32>, vector<8x8xf32> -> vector<8x8xf32>
    "tpu.trace_stop"() : () -> ()
    %cst_22 = arith.constant 0.353553385 : f32
    %41 = vector.broadcast %cst_22 : f32 to vector<8x8xf32>
    %42 = arith.mulf %40, %41 : vector<8x8xf32>
    %43 = arith.addf %42, %3 : vector<8x8xf32>
    %cst_23 = arith.constant dense<0xFF800000> : vector<8xf32>
    %44 = vector.multi_reduction <maximumf>, %43, %cst_23 [1] : vector<8x8xf32> to vector<8xf32>
    %45 = vector.shape_cast %44 : vector<8xf32> to vector<8x1xf32>
    %46 = vector.broadcast %45 : vector<8x1xf32> to vector<8x8xf32>
    %47 = arith.subf %43, %46 : vector<8x8xf32>
    %48 = math.exp %47 : vector<8x8xf32>
    %cst_24 = arith.constant dense<0.000000e+00> : vector<8xf32>
    %49 = vector.multi_reduction <add>, %48, %cst_24 [1] : vector<8x8xf32> to vector<8xf32>
    %50 = vector.shape_cast %49 : vector<8xf32> to vector<8x1xf32>
    %51 = vector.broadcast %50 : vector<8x1xf32> to vector<8x8xf32>
    %52 = arith.divf %48, %51 : vector<8x8xf32>
    %cst_25 = arith.constant dense<0.000000e+00> : vector<8x8xf32>
    %53 = tpu.matmul %52, %39, %cst_25 {dimension_numbers = #tpu.dot_dimension_numbers<[1], [0], [0], [1], [0, 0, 1, 1], [], []>} : vector<8x8xf32>, vector<8x8xf32>, vector<8x8xf32> -> vector<8x8xf32>
    %54 = vector.extract_strided_slice %15 {offsets = [8, 0], sizes = [8, 32], strides = [1, 1]} : vector<32x32xf32> to vector<8x32xf32>
    %cst_26 = arith.constant dense<0.000000e+00> : vector<8x32xf32>
    %55 = tpu.matmul %53, %54, %cst_26 {dimension_numbers = #tpu.dot_dimension_numbers<[1], [0], [0], [1], [0, 0, 1, 1], [], []>} : vector<8x8xf32>, vector<8x32xf32>, vector<8x32xf32> -> vector<8x32xf32>
    %56 = arith.addf %36, %55 : vector<8x32xf32>
    %57 = vector.extract_strided_slice %11 {offsets = [0, 16], sizes = [8, 8], strides = [1, 1]} : vector<8x32xf32> to vector<8x8xf32>
    %58 = vector.extract_strided_slice %12 {offsets = [0, 16], sizes = [8, 8], strides = [1, 1]} : vector<8x32xf32> to vector<8x8xf32>
    %59 = vector.extract_strided_slice %13 {offsets = [0, 16], sizes = [8, 8], strides = [1, 1]} : vector<8x32xf32> to vector<8x8xf32>
    "tpu.trace_start"() <{level = 10 : i32, message = "qd,kd->qk"}> : () -> ()
    %cst_27 = arith.constant dense<0.000000e+00> : vector<8x8xf32>
    %60 = tpu.matmul %57, %58, %cst_27 {dimension_numbers = #tpu.dot_dimension_numbers<[1], [1], [0], [0], [0, 0, 1, 0], [], []>} : vector<8x8xf32>, vector<8x8xf32>, vector<8x8xf32> -> vector<8x8xf32>
    "tpu.trace_stop"() : () -> ()
    %cst_28 = arith.constant 0.353553385 : f32
    %61 = vector.broadcast %cst_28 : f32 to vector<8x8xf32>
    %62 = arith.mulf %60, %61 : vector<8x8xf32>
    %63 = arith.addf %62, %3 : vector<8x8xf32>
    %cst_29 = arith.constant dense<0xFF800000> : vector<8xf32>
    %64 = vector.multi_reduction <maximumf>, %63, %cst_29 [1] : vector<8x8xf32> to vector<8xf32>
    %65 = vector.shape_cast %64 : vector<8xf32> to vector<8x1xf32>
    %66 = vector.broadcast %65 : vector<8x1xf32> to vector<8x8xf32>
    %67 = arith.subf %63, %66 : vector<8x8xf32>
    %68 = math.exp %67 : vector<8x8xf32>
    %cst_30 = arith.constant dense<0.000000e+00> : vector<8xf32>
    %69 = vector.multi_reduction <add>, %68, %cst_30 [1] : vector<8x8xf32> to vector<8xf32>
    %70 = vector.shape_cast %69 : vector<8xf32> to vector<8x1xf32>
    %71 = vector.broadcast %70 : vector<8x1xf32> to vector<8x8xf32>
    %72 = arith.divf %68, %71 : vector<8x8xf32>
    %cst_31 = arith.constant dense<0.000000e+00> : vector<8x8xf32>
    %73 = tpu.matmul %72, %59, %cst_31 {dimension_numbers = #tpu.dot_dimension_numbers<[1], [0], [0], [1], [0, 0, 1, 1], [], []>} : vector<8x8xf32>, vector<8x8xf32>, vector<8x8xf32> -> vector<8x8xf32>
    %74 = vector.extract_strided_slice %15 {offsets = [16, 0], sizes = [8, 32], strides = [1, 1]} : vector<32x32xf32> to vector<8x32xf32>
    %cst_32 = arith.constant dense<0.000000e+00> : vector<8x32xf32>
    %75 = tpu.matmul %73, %74, %cst_32 {dimension_numbers = #tpu.dot_dimension_numbers<[1], [0], [0], [1], [0, 0, 1, 1], [], []>} : vector<8x8xf32>, vector<8x32xf32>, vector<8x32xf32> -> vector<8x32xf32>
    %76 = arith.addf %56, %75 : vector<8x32xf32>
    %77 = vector.extract_strided_slice %11 {offsets = [0, 24], sizes = [8, 8], strides = [1, 1]} : vector<8x32xf32> to vector<8x8xf32>
    %78 = vector.extract_strided_slice %12 {offsets = [0, 24], sizes = [8, 8], strides = [1, 1]} : vector<8x32xf32> to vector<8x8xf32>
    %79 = vector.extract_strided_slice %13 {offsets = [0, 24], sizes = [8, 8], strides = [1, 1]} : vector<8x32xf32> to vector<8x8xf32>
    "tpu.trace_start"() <{level = 10 : i32, message = "qd,kd->qk"}> : () -> ()
    %cst_33 = arith.constant dense<0.000000e+00> : vector<8x8xf32>
    %80 = tpu.matmul %77, %78, %cst_33 {dimension_numbers = #tpu.dot_dimension_numbers<[1], [1], [0], [0], [0, 0, 1, 0], [], []>} : vector<8x8xf32>, vector<8x8xf32>, vector<8x8xf32> -> vector<8x8xf32>
    "tpu.trace_stop"() : () -> ()
    %cst_34 = arith.constant 0.353553385 : f32
    %81 = vector.broadcast %cst_34 : f32 to vector<8x8xf32>
    %82 = arith.mulf %80, %81 : vector<8x8xf32>
    %83 = arith.addf %82, %3 : vector<8x8xf32>
    %cst_35 = arith.constant dense<0xFF800000> : vector<8xf32>
    %84 = vector.multi_reduction <maximumf>, %83, %cst_35 [1] : vector<8x8xf32> to vector<8xf32>
    %85 = vector.shape_cast %84 : vector<8xf32> to vector<8x1xf32>
    %86 = vector.broadcast %85 : vector<8x1xf32> to vector<8x8xf32>
    %87 = arith.subf %83, %86 : vector<8x8xf32>
    %88 = math.exp %87 : vector<8x8xf32>
    %cst_36 = arith.constant dense<0.000000e+00> : vector<8xf32>
    %89 = vector.multi_reduction <add>, %88, %cst_36 [1] : vector<8x8xf32> to vector<8xf32>
    %90 = vector.shape_cast %89 : vector<8xf32> to vector<8x1xf32>
    %91 = vector.broadcast %90 : vector<8x1xf32> to vector<8x8xf32>
    %92 = arith.divf %88, %91 : vector<8x8xf32>
    %cst_37 = arith.constant dense<0.000000e+00> : vector<8x8xf32>
    %93 = tpu.matmul %92, %79, %cst_37 {dimension_numbers = #tpu.dot_dimension_numbers<[1], [0], [0], [1], [0, 0, 1, 1], [], []>} : vector<8x8xf32>, vector<8x8xf32>, vector<8x8xf32> -> vector<8x8xf32>
    %94 = vector.extract_strided_slice %15 {offsets = [24, 0], sizes = [8, 32], strides = [1, 1]} : vector<32x32xf32> to vector<8x32xf32>
    %cst_38 = arith.constant dense<0.000000e+00> : vector<8x32xf32>
    %95 = tpu.matmul %93, %94, %cst_38 {dimension_numbers = #tpu.dot_dimension_numbers<[1], [0], [0], [1], [0, 0, 1, 1], [], []>} : vector<8x8xf32>, vector<8x32xf32>, vector<8x32xf32> -> vector<8x32xf32>
    %96 = arith.addf %76, %95 : vector<8x32xf32>
    %c0_39 = arith.constant 0 : index
    %c0_40 = arith.constant 0 : index
    %c0_41 = arith.constant 0 : index
    %97 = vector.load %arg6[%c0_39, %c0_40, %c0_41] : memref<2x1x32xf32, #tpu.memory_space<vmem>>, vector<1x1x32xf32>
    %98 = vector.shape_cast %97 : vector<1x1x32xf32> to vector<1x32xf32>
    %99 = vector.broadcast %98 : vector<1x32xf32> to vector<8x32xf32>
    %100 = arith.addf %96, %99 : vector<8x32xf32>
    %101 = arith.addf %1, %100 : vector<8x32xf32>
    %c0_42 = arith.constant 0 : index
    %c0_43 = arith.constant 0 : index
    %c0_44 = arith.constant 0 : index
    %102 = vector.load %arg11[%c0_42, %c0_43, %c0_44] : memref<2x1x32xf32, #tpu.memory_space<vmem>>, vector<1x1x32xf32>
    %103 = vector.shape_cast %102 : vector<1x1x32xf32> to vector<1x32xf32>
    %c0_45 = arith.constant 0 : index
    %c0_46 = arith.constant 0 : index
    %c0_47 = arith.constant 0 : index
    %104 = vector.load %arg12[%c0_45, %c0_46, %c0_47] : memref<2x1x32xf32, #tpu.memory_space<vmem>>, vector<1x1x32xf32>
    %105 = vector.shape_cast %104 : vector<1x1x32xf32> to vector<1x32xf32>
    %cst_48 = arith.constant dense<0.000000e+00> : vector<8xf32>
    %106 = vector.multi_reduction <add>, %101, %cst_48 [1] : vector<8x32xf32> to vector<8xf32>
    %107 = vector.shape_cast %106 : vector<8xf32> to vector<8x1xf32>
    %cst_49 = arith.constant 3.200000e+01 : f32
    %108 = vector.broadcast %cst_49 : f32 to vector<8x1xf32>
    %109 = arith.divf %107, %108 : vector<8x1xf32>
    %110 = vector.broadcast %109 : vector<8x1xf32> to vector<8x32xf32>
    %111 = arith.subf %101, %110 : vector<8x32xf32>
    %112 = arith.mulf %111, %111 : vector<8x32xf32>
    %cst_50 = arith.constant dense<0.000000e+00> : vector<8xf32>
    %113 = vector.multi_reduction <add>, %112, %cst_50 [1] : vector<8x32xf32> to vector<8xf32>
    %114 = vector.shape_cast %113 : vector<8xf32> to vector<8x1xf32>
    %cst_51 = arith.constant 3.200000e+01 : f32
    %115 = vector.broadcast %cst_51 : f32 to vector<8x1xf32>
    %116 = arith.divf %114, %115 : vector<8x1xf32>
    %cst_52 = arith.constant 9.99999974E-6 : f32
    %117 = vector.broadcast %cst_52 : f32 to vector<8x1xf32>
    %118 = arith.addf %116, %117 : vector<8x1xf32>
    %119 = math.rsqrt %118 : vector<8x1xf32>
    %120 = vector.broadcast %119 : vector<8x1xf32> to vector<8x32xf32>
    %121 = arith.mulf %111, %120 : vector<8x32xf32>
    %122 = vector.broadcast %103 : vector<1x32xf32> to vector<8x32xf32>
    %123 = arith.mulf %121, %122 : vector<8x32xf32>
    %124 = vector.broadcast %105 : vector<1x32xf32> to vector<8x32xf32>
    %125 = arith.addf %123, %124 : vector<8x32xf32>
    %c0_53 = arith.constant 0 : index
    %c0_54 = arith.constant 0 : index
    %c0_55 = arith.constant 0 : index
    %126 = vector.load %arg7[%c0_53, %c0_54, %c0_55] : memref<2x32x64xf32, #tpu.memory_space<vmem>>, vector<1x32x64xf32>
    %127 = vector.shape_cast %126 : vector<1x32x64xf32> to vector<32x64xf32>
    %cst_56 = arith.constant dense<0.000000e+00> : vector<8x64xf32>
    %128 = tpu.matmul %125, %127, %cst_56 {dimension_numbers = #tpu.dot_dimension_numbers<[1], [0], [0], [1], [0, 0, 1, 1], [], []>} : vector<8x32xf32>, vector<32x64xf32>, vector<8x64xf32> -> vector<8x64xf32>
    %c0_57 = arith.constant 0 : index
    %c0_58 = arith.constant 0 : index
    %c0_59 = arith.constant 0 : index
    %129 = vector.load %arg8[%c0_57, %c0_58, %c0_59] : memref<2x1x64xf32, #tpu.memory_space<vmem>>, vector<1x1x64xf32>
    %130 = vector.shape_cast %129 : vector<1x1x64xf32> to vector<1x64xf32>
    %131 = vector.broadcast %130 : vector<1x64xf32> to vector<8x64xf32>
    %132 = arith.addf %128, %131 : vector<8x64xf32>
    %cst_60 = arith.constant 0.000000e+00 : f32
    %133 = vector.broadcast %cst_60 : f32 to vector<8x64xf32>
    %134 = arith.maximumf %132, %133 : vector<8x64xf32>
    %c0_61 = arith.constant 0 : index
    %c0_62 = arith.constant 0 : index
    %c0_63 = arith.constant 0 : index
    %135 = vector.load %arg9[%c0_61, %c0_62, %c0_63] : memref<2x64x32xf32, #tpu.memory_space<vmem>>, vector<1x64x32xf32>
    %136 = vector.shape_cast %135 : vector<1x64x32xf32> to vector<64x32xf32>
    %cst_64 = arith.constant dense<0.000000e+00> : vector<8x32xf32>
    %137 = tpu.matmul %134, %136, %cst_64 {dimension_numbers = #tpu.dot_dimension_numbers<[1], [0], [0], [1], [0, 0, 1, 1], [], []>} : vector<8x64xf32>, vector<64x32xf32>, vector<8x32xf32> -> vector<8x32xf32>
    %c0_65 = arith.constant 0 : index
    %c0_66 = arith.constant 0 : index
    %c0_67 = arith.constant 0 : index
    %138 = vector.load %arg10[%c0_65, %c0_66, %c0_67] : memref<2x1x32xf32, #tpu.memory_space<vmem>>, vector<1x1x32xf32>
    %139 = vector.shape_cast %138 : vector<1x1x32xf32> to vector<1x32xf32>
    %140 = vector.broadcast %139 : vector<1x32xf32> to vector<8x32xf32>
    %141 = arith.addf %137, %140 : vector<8x32xf32>
    %142 = arith.addf %125, %141 : vector<8x32xf32>
    %c0_68 = arith.constant 0 : index
    %c0_69 = arith.constant 0 : index
    %c0_70 = arith.constant 0 : index
    %143 = vector.load %arg13[%c0_68, %c0_69, %c0_70] : memref<2x1x32xf32, #tpu.memory_space<vmem>>, vector<1x1x32xf32>
    %144 = vector.shape_cast %143 : vector<1x1x32xf32> to vector<1x32xf32>
    %c0_71 = arith.constant 0 : index
    %c0_72 = arith.constant 0 : index
    %c0_73 = arith.constant 0 : index
    %145 = vector.load %arg14[%c0_71, %c0_72, %c0_73] : memref<2x1x32xf32, #tpu.memory_space<vmem>>, vector<1x1x32xf32>
    %146 = vector.shape_cast %145 : vector<1x1x32xf32> to vector<1x32xf32>
    %cst_74 = arith.constant dense<0.000000e+00> : vector<8xf32>
    %147 = vector.multi_reduction <add>, %142, %cst_74 [1] : vector<8x32xf32> to vector<8xf32>
    %148 = vector.shape_cast %147 : vector<8xf32> to vector<8x1xf32>
    %cst_75 = arith.constant 3.200000e+01 : f32
    %149 = vector.broadcast %cst_75 : f32 to vector<8x1xf32>
    %150 = arith.divf %148, %149 : vector<8x1xf32>
    %151 = vector.broadcast %150 : vector<8x1xf32> to vector<8x32xf32>
    %152 = arith.subf %142, %151 : vector<8x32xf32>
    %153 = arith.mulf %152, %152 : vector<8x32xf32>
    %cst_76 = arith.constant dense<0.000000e+00> : vector<8xf32>
    %154 = vector.multi_reduction <add>, %153, %cst_76 [1] : vector<8x32xf32> to vector<8xf32>
    %155 = vector.shape_cast %154 : vector<8xf32> to vector<8x1xf32>
    %cst_77 = arith.constant 3.200000e+01 : f32
    %156 = vector.broadcast %cst_77 : f32 to vector<8x1xf32>
    %157 = arith.divf %155, %156 : vector<8x1xf32>
    %cst_78 = arith.constant 9.99999974E-6 : f32
    %158 = vector.broadcast %cst_78 : f32 to vector<8x1xf32>
    %159 = arith.addf %157, %158 : vector<8x1xf32>
    %160 = math.rsqrt %159 : vector<8x1xf32>
    %161 = vector.broadcast %160 : vector<8x1xf32> to vector<8x32xf32>
    %162 = arith.mulf %152, %161 : vector<8x32xf32>
    %163 = vector.broadcast %144 : vector<1x32xf32> to vector<8x32xf32>
    %164 = arith.mulf %162, %163 : vector<8x32xf32>
    %165 = vector.broadcast %146 : vector<1x32xf32> to vector<8x32xf32>
    %166 = arith.addf %164, %165 : vector<8x32xf32>
    %c1 = arith.constant 1 : index
    %c0_79 = arith.constant 0 : index
    %c0_80 = arith.constant 0 : index
    %167 = vector.load %arg3[%c1, %c0_79, %c0_80] : memref<2x32x96xf32, #tpu.memory_space<vmem>>, vector<1x32x96xf32>
    %168 = vector.shape_cast %167 : vector<1x32x96xf32> to vector<32x96xf32>
    %cst_81 = arith.constant dense<0.000000e+00> : vector<8x96xf32>
    %169 = tpu.matmul %166, %168, %cst_81 {dimension_numbers = #tpu.dot_dimension_numbers<[1], [0], [0], [1], [0, 0, 1, 1], [], []>} : vector<8x32xf32>, vector<32x96xf32>, vector<8x96xf32> -> vector<8x96xf32>
    %c1_82 = arith.constant 1 : index
    %c0_83 = arith.constant 0 : index
    %c0_84 = arith.constant 0 : index
    %170 = vector.load %arg4[%c1_82, %c0_83, %c0_84] : memref<2x1x96xf32, #tpu.memory_space<vmem>>, vector<1x1x96xf32>
    %171 = vector.shape_cast %170 : vector<1x1x96xf32> to vector<1x96xf32>
    %172 = vector.broadcast %171 : vector<1x96xf32> to vector<8x96xf32>
    %173 = arith.addf %169, %172 : vector<8x96xf32>
    %174 = vector.extract_strided_slice %173 {offsets = [0, 0], sizes = [8, 32], strides = [1, 1]} : vector<8x96xf32> to vector<8x32xf32>
    %175 = vector.extract_strided_slice %173 {offsets = [0, 32], sizes = [8, 32], strides = [1, 1]} : vector<8x96xf32> to vector<8x32xf32>
    %176 = vector.extract_strided_slice %173 {offsets = [0, 64], sizes = [8, 32], strides = [1, 1]} : vector<8x96xf32> to vector<8x32xf32>
    %c1_85 = arith.constant 1 : index
    %c0_86 = arith.constant 0 : index
    %c0_87 = arith.constant 0 : index
    %177 = vector.load %arg5[%c1_85, %c0_86, %c0_87] : memref<2x32x32xf32, #tpu.memory_space<vmem>>, vector<1x32x32xf32>
    %178 = vector.shape_cast %177 : vector<1x32x32xf32> to vector<32x32xf32>
    %cst_88 = arith.constant 0.000000e+00 : f32
    %179 = vector.broadcast %cst_88 : f32 to vector<8x32xf32>
    %180 = vector.extract_strided_slice %174 {offsets = [0, 0], sizes = [8, 8], strides = [1, 1]} : vector<8x32xf32> to vector<8x8xf32>
    %181 = vector.extract_strided_slice %175 {offsets = [0, 0], sizes = [8, 8], strides = [1, 1]} : vector<8x32xf32> to vector<8x8xf32>
    %182 = vector.extract_strided_slice %176 {offsets = [0, 0], sizes = [8, 8], strides = [1, 1]} : vector<8x32xf32> to vector<8x8xf32>
    "tpu.trace_start"() <{level = 10 : i32, message = "qd,kd->qk"}> : () -> ()
    %cst_89 = arith.constant dense<0.000000e+00> : vector<8x8xf32>
    %183 = tpu.matmul %180, %181, %cst_89 {dimension_numbers = #tpu.dot_dimension_numbers<[1], [1], [0], [0], [0, 0, 1, 0], [], []>} : vector<8x8xf32>, vector<8x8xf32>, vector<8x8xf32> -> vector<8x8xf32>
    "tpu.trace_stop"() : () -> ()
    %cst_90 = arith.constant 0.353553385 : f32
    %184 = vector.broadcast %cst_90 : f32 to vector<8x8xf32>
    %185 = arith.mulf %183, %184 : vector<8x8xf32>
    %186 = arith.addf %185, %3 : vector<8x8xf32>
    %cst_91 = arith.constant dense<0xFF800000> : vector<8xf32>
    %187 = vector.multi_reduction <maximumf>, %186, %cst_91 [1] : vector<8x8xf32> to vector<8xf32>
    %188 = vector.shape_cast %187 : vector<8xf32> to vector<8x1xf32>
    %189 = vector.broadcast %188 : vector<8x1xf32> to vector<8x8xf32>
    %190 = arith.subf %186, %189 : vector<8x8xf32>
    %191 = math.exp %190 : vector<8x8xf32>
    %cst_92 = arith.constant dense<0.000000e+00> : vector<8xf32>
    %192 = vector.multi_reduction <add>, %191, %cst_92 [1] : vector<8x8xf32> to vector<8xf32>
    %193 = vector.shape_cast %192 : vector<8xf32> to vector<8x1xf32>
    %194 = vector.broadcast %193 : vector<8x1xf32> to vector<8x8xf32>
    %195 = arith.divf %191, %194 : vector<8x8xf32>
    %cst_93 = arith.constant dense<0.000000e+00> : vector<8x8xf32>
    %196 = tpu.matmul %195, %182, %cst_93 {dimension_numbers = #tpu.dot_dimension_numbers<[1], [0], [0], [1], [0, 0, 1, 1], [], []>} : vector<8x8xf32>, vector<8x8xf32>, vector<8x8xf32> -> vector<8x8xf32>
    %197 = vector.extract_strided_slice %178 {offsets = [0, 0], sizes = [8, 32], strides = [1, 1]} : vector<32x32xf32> to vector<8x32xf32>
    %cst_94 = arith.constant dense<0.000000e+00> : vector<8x32xf32>
    %198 = tpu.matmul %196, %197, %cst_94 {dimension_numbers = #tpu.dot_dimension_numbers<[1], [0], [0], [1], [0, 0, 1, 1], [], []>} : vector<8x8xf32>, vector<8x32xf32>, vector<8x32xf32> -> vector<8x32xf32>
    %199 = arith.addf %179, %198 : vector<8x32xf32>
    %200 = vector.extract_strided_slice %174 {offsets = [0, 8], sizes = [8, 8], strides = [1, 1]} : vector<8x32xf32> to vector<8x8xf32>
    %201 = vector.extract_strided_slice %175 {offsets = [0, 8], sizes = [8, 8], strides = [1, 1]} : vector<8x32xf32> to vector<8x8xf32>
    %202 = vector.extract_strided_slice %176 {offsets = [0, 8], sizes = [8, 8], strides = [1, 1]} : vector<8x32xf32> to vector<8x8xf32>
    "tpu.trace_start"() <{level = 10 : i32, message = "qd,kd->qk"}> : () -> ()
    %cst_95 = arith.constant dense<0.000000e+00> : vector<8x8xf32>
    %203 = tpu.matmul %200, %201, %cst_95 {dimension_numbers = #tpu.dot_dimension_numbers<[1], [1], [0], [0], [0, 0, 1, 0], [], []>} : vector<8x8xf32>, vector<8x8xf32>, vector<8x8xf32> -> vector<8x8xf32>
    "tpu.trace_stop"() : () -> ()
    %cst_96 = arith.constant 0.353553385 : f32
    %204 = vector.broadcast %cst_96 : f32 to vector<8x8xf32>
    %205 = arith.mulf %203, %204 : vector<8x8xf32>
    %206 = arith.addf %205, %3 : vector<8x8xf32>
    %cst_97 = arith.constant dense<0xFF800000> : vector<8xf32>
    %207 = vector.multi_reduction <maximumf>, %206, %cst_97 [1] : vector<8x8xf32> to vector<8xf32>
    %208 = vector.shape_cast %207 : vector<8xf32> to vector<8x1xf32>
    %209 = vector.broadcast %208 : vector<8x1xf32> to vector<8x8xf32>
    %210 = arith.subf %206, %209 : vector<8x8xf32>
    %211 = math.exp %210 : vector<8x8xf32>
    %cst_98 = arith.constant dense<0.000000e+00> : vector<8xf32>
    %212 = vector.multi_reduction <add>, %211, %cst_98 [1] : vector<8x8xf32> to vector<8xf32>
    %213 = vector.shape_cast %212 : vector<8xf32> to vector<8x1xf32>
    %214 = vector.broadcast %213 : vector<8x1xf32> to vector<8x8xf32>
    %215 = arith.divf %211, %214 : vector<8x8xf32>
    %cst_99 = arith.constant dense<0.000000e+00> : vector<8x8xf32>
    %216 = tpu.matmul %215, %202, %cst_99 {dimension_numbers = #tpu.dot_dimension_numbers<[1], [0], [0], [1], [0, 0, 1, 1], [], []>} : vector<8x8xf32>, vector<8x8xf32>, vector<8x8xf32> -> vector<8x8xf32>
    %217 = vector.extract_strided_slice %178 {offsets = [8, 0], sizes = [8, 32], strides = [1, 1]} : vector<32x32xf32> to vector<8x32xf32>
    %cst_100 = arith.constant dense<0.000000e+00> : vector<8x32xf32>
    %218 = tpu.matmul %216, %217, %cst_100 {dimension_numbers = #tpu.dot_dimension_numbers<[1], [0], [0], [1], [0, 0, 1, 1], [], []>} : vector<8x8xf32>, vector<8x32xf32>, vector<8x32xf32> -> vector<8x32xf32>
    %219 = arith.addf %199, %218 : vector<8x32xf32>
    %220 = vector.extract_strided_slice %174 {offsets = [0, 16], sizes = [8, 8], strides = [1, 1]} : vector<8x32xf32> to vector<8x8xf32>
    %221 = vector.extract_strided_slice %175 {offsets = [0, 16], sizes = [8, 8], strides = [1, 1]} : vector<8x32xf32> to vector<8x8xf32>
    %222 = vector.extract_strided_slice %176 {offsets = [0, 16], sizes = [8, 8], strides = [1, 1]} : vector<8x32xf32> to vector<8x8xf32>
    "tpu.trace_start"() <{level = 10 : i32, message = "qd,kd->qk"}> : () -> ()
    %cst_101 = arith.constant dense<0.000000e+00> : vector<8x8xf32>
    %223 = tpu.matmul %220, %221, %cst_101 {dimension_numbers = #tpu.dot_dimension_numbers<[1], [1], [0], [0], [0, 0, 1, 0], [], []>} : vector<8x8xf32>, vector<8x8xf32>, vector<8x8xf32> -> vector<8x8xf32>
    "tpu.trace_stop"() : () -> ()
    %cst_102 = arith.constant 0.353553385 : f32
    %224 = vector.broadcast %cst_102 : f32 to vector<8x8xf32>
    %225 = arith.mulf %223, %224 : vector<8x8xf32>
    %226 = arith.addf %225, %3 : vector<8x8xf32>
    %cst_103 = arith.constant dense<0xFF800000> : vector<8xf32>
    %227 = vector.multi_reduction <maximumf>, %226, %cst_103 [1] : vector<8x8xf32> to vector<8xf32>
    %228 = vector.shape_cast %227 : vector<8xf32> to vector<8x1xf32>
    %229 = vector.broadcast %228 : vector<8x1xf32> to vector<8x8xf32>
    %230 = arith.subf %226, %229 : vector<8x8xf32>
    %231 = math.exp %230 : vector<8x8xf32>
    %cst_104 = arith.constant dense<0.000000e+00> : vector<8xf32>
    %232 = vector.multi_reduction <add>, %231, %cst_104 [1] : vector<8x8xf32> to vector<8xf32>
    %233 = vector.shape_cast %232 : vector<8xf32> to vector<8x1xf32>
    %234 = vector.broadcast %233 : vector<8x1xf32> to vector<8x8xf32>
    %235 = arith.divf %231, %234 : vector<8x8xf32>
    %cst_105 = arith.constant dense<0.000000e+00> : vector<8x8xf32>
    %236 = tpu.matmul %235, %222, %cst_105 {dimension_numbers = #tpu.dot_dimension_numbers<[1], [0], [0], [1], [0, 0, 1, 1], [], []>} : vector<8x8xf32>, vector<8x8xf32>, vector<8x8xf32> -> vector<8x8xf32>
    %237 = vector.extract_strided_slice %178 {offsets = [16, 0], sizes = [8, 32], strides = [1, 1]} : vector<32x32xf32> to vector<8x32xf32>
    %cst_106 = arith.constant dense<0.000000e+00> : vector<8x32xf32>
    %238 = tpu.matmul %236, %237, %cst_106 {dimension_numbers = #tpu.dot_dimension_numbers<[1], [0], [0], [1], [0, 0, 1, 1], [], []>} : vector<8x8xf32>, vector<8x32xf32>, vector<8x32xf32> -> vector<8x32xf32>
    %239 = arith.addf %219, %238 : vector<8x32xf32>
    %240 = vector.extract_strided_slice %174 {offsets = [0, 24], sizes = [8, 8], strides = [1, 1]} : vector<8x32xf32> to vector<8x8xf32>
    %241 = vector.extract_strided_slice %175 {offsets = [0, 24], sizes = [8, 8], strides = [1, 1]} : vector<8x32xf32> to vector<8x8xf32>
    %242 = vector.extract_strided_slice %176 {offsets = [0, 24], sizes = [8, 8], strides = [1, 1]} : vector<8x32xf32> to vector<8x8xf32>
    "tpu.trace_start"() <{level = 10 : i32, message = "qd,kd->qk"}> : () -> ()
    %cst_107 = arith.constant dense<0.000000e+00> : vector<8x8xf32>
    %243 = tpu.matmul %240, %241, %cst_107 {dimension_numbers = #tpu.dot_dimension_numbers<[1], [1], [0], [0], [0, 0, 1, 0], [], []>} : vector<8x8xf32>, vector<8x8xf32>, vector<8x8xf32> -> vector<8x8xf32>
    "tpu.trace_stop"() : () -> ()
    %cst_108 = arith.constant 0.353553385 : f32
    %244 = vector.broadcast %cst_108 : f32 to vector<8x8xf32>
    %245 = arith.mulf %243, %244 : vector<8x8xf32>
    %246 = arith.addf %245, %3 : vector<8x8xf32>
    %cst_109 = arith.constant dense<0xFF800000> : vector<8xf32>
    %247 = vector.multi_reduction <maximumf>, %246, %cst_109 [1] : vector<8x8xf32> to vector<8xf32>
    %248 = vector.shape_cast %247 : vector<8xf32> to vector<8x1xf32>
    %249 = vector.broadcast %248 : vector<8x1xf32> to vector<8x8xf32>
    %250 = arith.subf %246, %249 : vector<8x8xf32>
    %251 = math.exp %250 : vector<8x8xf32>
    %cst_110 = arith.constant dense<0.000000e+00> : vector<8xf32>
    %252 = vector.multi_reduction <add>, %251, %cst_110 [1] : vector<8x8xf32> to vector<8xf32>
    %253 = vector.shape_cast %252 : vector<8xf32> to vector<8x1xf32>
    %254 = vector.broadcast %253 : vector<8x1xf32> to vector<8x8xf32>
    %255 = arith.divf %251, %254 : vector<8x8xf32>
    %cst_111 = arith.constant dense<0.000000e+00> : vector<8x8xf32>
    %256 = tpu.matmul %255, %242, %cst_111 {dimension_numbers = #tpu.dot_dimension_numbers<[1], [0], [0], [1], [0, 0, 1, 1], [], []>} : vector<8x8xf32>, vector<8x8xf32>, vector<8x8xf32> -> vector<8x8xf32>
    %257 = vector.extract_strided_slice %178 {offsets = [24, 0], sizes = [8, 32], strides = [1, 1]} : vector<32x32xf32> to vector<8x32xf32>
    %cst_112 = arith.constant dense<0.000000e+00> : vector<8x32xf32>
    %258 = tpu.matmul %256, %257, %cst_112 {dimension_numbers = #tpu.dot_dimension_numbers<[1], [0], [0], [1], [0, 0, 1, 1], [], []>} : vector<8x8xf32>, vector<8x32xf32>, vector<8x32xf32> -> vector<8x32xf32>
    %259 = arith.addf %239, %258 : vector<8x32xf32>
    %c1_113 = arith.constant 1 : index
    %c0_114 = arith.constant 0 : index
    %c0_115 = arith.constant 0 : index
    %260 = vector.load %arg6[%c1_113, %c0_114, %c0_115] : memref<2x1x32xf32, #tpu.memory_space<vmem>>, vector<1x1x32xf32>
    %261 = vector.shape_cast %260 : vector<1x1x32xf32> to vector<1x32xf32>
    %262 = vector.broadcast %261 : vector<1x32xf32> to vector<8x32xf32>
    %263 = arith.addf %259, %262 : vector<8x32xf32>
    %264 = arith.addf %166, %263 : vector<8x32xf32>
    %c1_116 = arith.constant 1 : index
    %c0_117 = arith.constant 0 : index
    %c0_118 = arith.constant 0 : index
    %265 = vector.load %arg11[%c1_116, %c0_117, %c0_118] : memref<2x1x32xf32, #tpu.memory_space<vmem>>, vector<1x1x32xf32>
    %266 = vector.shape_cast %265 : vector<1x1x32xf32> to vector<1x32xf32>
    %c1_119 = arith.constant 1 : index
    %c0_120 = arith.constant 0 : index
    %c0_121 = arith.constant 0 : index
    %267 = vector.load %arg12[%c1_119, %c0_120, %c0_121] : memref<2x1x32xf32, #tpu.memory_space<vmem>>, vector<1x1x32xf32>
    %268 = vector.shape_cast %267 : vector<1x1x32xf32> to vector<1x32xf32>
    %cst_122 = arith.constant dense<0.000000e+00> : vector<8xf32>
    %269 = vector.multi_reduction <add>, %264, %cst_122 [1] : vector<8x32xf32> to vector<8xf32>
    %270 = vector.shape_cast %269 : vector<8xf32> to vector<8x1xf32>
    %cst_123 = arith.constant 3.200000e+01 : f32
    %271 = vector.broadcast %cst_123 : f32 to vector<8x1xf32>
    %272 = arith.divf %270, %271 : vector<8x1xf32>
    %273 = vector.broadcast %272 : vector<8x1xf32> to vector<8x32xf32>
    %274 = arith.subf %264, %273 : vector<8x32xf32>
    %275 = arith.mulf %274, %274 : vector<8x32xf32>
    %cst_124 = arith.constant dense<0.000000e+00> : vector<8xf32>
    %276 = vector.multi_reduction <add>, %275, %cst_124 [1] : vector<8x32xf32> to vector<8xf32>
    %277 = vector.shape_cast %276 : vector<8xf32> to vector<8x1xf32>
    %cst_125 = arith.constant 3.200000e+01 : f32
    %278 = vector.broadcast %cst_125 : f32 to vector<8x1xf32>
    %279 = arith.divf %277, %278 : vector<8x1xf32>
    %cst_126 = arith.constant 9.99999974E-6 : f32
    %280 = vector.broadcast %cst_126 : f32 to vector<8x1xf32>
    %281 = arith.addf %279, %280 : vector<8x1xf32>
    %282 = math.rsqrt %281 : vector<8x1xf32>
    %283 = vector.broadcast %282 : vector<8x1xf32> to vector<8x32xf32>
    %284 = arith.mulf %274, %283 : vector<8x32xf32>
    %285 = vector.broadcast %266 : vector<1x32xf32> to vector<8x32xf32>
    %286 = arith.mulf %284, %285 : vector<8x32xf32>
    %287 = vector.broadcast %268 : vector<1x32xf32> to vector<8x32xf32>
    %288 = arith.addf %286, %287 : vector<8x32xf32>
    %c1_127 = arith.constant 1 : index
    %c0_128 = arith.constant 0 : index
    %c0_129 = arith.constant 0 : index
    %289 = vector.load %arg7[%c1_127, %c0_128, %c0_129] : memref<2x32x64xf32, #tpu.memory_space<vmem>>, vector<1x32x64xf32>
    %290 = vector.shape_cast %289 : vector<1x32x64xf32> to vector<32x64xf32>
    %cst_130 = arith.constant dense<0.000000e+00> : vector<8x64xf32>
    %291 = tpu.matmul %288, %290, %cst_130 {dimension_numbers = #tpu.dot_dimension_numbers<[1], [0], [0], [1], [0, 0, 1, 1], [], []>} : vector<8x32xf32>, vector<32x64xf32>, vector<8x64xf32> -> vector<8x64xf32>
    %c1_131 = arith.constant 1 : index
    %c0_132 = arith.constant 0 : index
    %c0_133 = arith.constant 0 : index
    %292 = vector.load %arg8[%c1_131, %c0_132, %c0_133] : memref<2x1x64xf32, #tpu.memory_space<vmem>>, vector<1x1x64xf32>
    %293 = vector.shape_cast %292 : vector<1x1x64xf32> to vector<1x64xf32>
    %294 = vector.broadcast %293 : vector<1x64xf32> to vector<8x64xf32>
    %295 = arith.addf %291, %294 : vector<8x64xf32>
    %cst_134 = arith.constant 0.000000e+00 : f32
    %296 = vector.broadcast %cst_134 : f32 to vector<8x64xf32>
    %297 = arith.maximumf %295, %296 : vector<8x64xf32>
    %c1_135 = arith.constant 1 : index
    %c0_136 = arith.constant 0 : index
    %c0_137 = arith.constant 0 : index
    %298 = vector.load %arg9[%c1_135, %c0_136, %c0_137] : memref<2x64x32xf32, #tpu.memory_space<vmem>>, vector<1x64x32xf32>
    %299 = vector.shape_cast %298 : vector<1x64x32xf32> to vector<64x32xf32>
    %cst_138 = arith.constant dense<0.000000e+00> : vector<8x32xf32>
    %300 = tpu.matmul %297, %299, %cst_138 {dimension_numbers = #tpu.dot_dimension_numbers<[1], [0], [0], [1], [0, 0, 1, 1], [], []>} : vector<8x64xf32>, vector<64x32xf32>, vector<8x32xf32> -> vector<8x32xf32>
    %c1_139 = arith.constant 1 : index
    %c0_140 = arith.constant 0 : index
    %c0_141 = arith.constant 0 : index
    %301 = vector.load %arg10[%c1_139, %c0_140, %c0_141] : memref<2x1x32xf32, #tpu.memory_space<vmem>>, vector<1x1x32xf32>
    %302 = vector.shape_cast %301 : vector<1x1x32xf32> to vector<1x32xf32>
    %303 = vector.broadcast %302 : vector<1x32xf32> to vector<8x32xf32>
    %304 = arith.addf %300, %303 : vector<8x32xf32>
    %305 = arith.addf %288, %304 : vector<8x32xf32>
    %c1_142 = arith.constant 1 : index
    %c0_143 = arith.constant 0 : index
    %c0_144 = arith.constant 0 : index
    %306 = vector.load %arg13[%c1_142, %c0_143, %c0_144] : memref<2x1x32xf32, #tpu.memory_space<vmem>>, vector<1x1x32xf32>
    %307 = vector.shape_cast %306 : vector<1x1x32xf32> to vector<1x32xf32>
    %c1_145 = arith.constant 1 : index
    %c0_146 = arith.constant 0 : index
    %c0_147 = arith.constant 0 : index
    %308 = vector.load %arg14[%c1_145, %c0_146, %c0_147] : memref<2x1x32xf32, #tpu.memory_space<vmem>>, vector<1x1x32xf32>
    %309 = vector.shape_cast %308 : vector<1x1x32xf32> to vector<1x32xf32>
    %cst_148 = arith.constant dense<0.000000e+00> : vector<8xf32>
    %310 = vector.multi_reduction <add>, %305, %cst_148 [1] : vector<8x32xf32> to vector<8xf32>
    %311 = vector.shape_cast %310 : vector<8xf32> to vector<8x1xf32>
    %cst_149 = arith.constant 3.200000e+01 : f32
    %312 = vector.broadcast %cst_149 : f32 to vector<8x1xf32>
    %313 = arith.divf %311, %312 : vector<8x1xf32>
    %314 = vector.broadcast %313 : vector<8x1xf32> to vector<8x32xf32>
    %315 = arith.subf %305, %314 : vector<8x32xf32>
    %316 = arith.mulf %315, %315 : vector<8x32xf32>
    %cst_150 = arith.constant dense<0.000000e+00> : vector<8xf32>
    %317 = vector.multi_reduction <add>, %316, %cst_150 [1] : vector<8x32xf32> to vector<8xf32>
    %318 = vector.shape_cast %317 : vector<8xf32> to vector<8x1xf32>
    %cst_151 = arith.constant 3.200000e+01 : f32
    %319 = vector.broadcast %cst_151 : f32 to vector<8x1xf32>
    %320 = arith.divf %318, %319 : vector<8x1xf32>
    %cst_152 = arith.constant 9.99999974E-6 : f32
    %321 = vector.broadcast %cst_152 : f32 to vector<8x1xf32>
    %322 = arith.addf %320, %321 : vector<8x1xf32>
    %323 = math.rsqrt %322 : vector<8x1xf32>
    %324 = vector.broadcast %323 : vector<8x1xf32> to vector<8x32xf32>
    %325 = arith.mulf %315, %324 : vector<8x32xf32>
    %326 = vector.broadcast %307 : vector<1x32xf32> to vector<8x32xf32>
    %327 = arith.mulf %325, %326 : vector<8x32xf32>
    %328 = vector.broadcast %309 : vector<1x32xf32> to vector<8x32xf32>
    %329 = arith.addf %327, %328 : vector<8x32xf32>
    %c0_153 = arith.constant 0 : index
    %c0_154 = arith.constant 0 : index
    %c0_155 = arith.constant 0 : index
    %330 = vector.load %arg15[%c0_153, %c0_154, %c0_155] : memref<1x8x32xf32, #tpu.memory_space<vmem>>, vector<1x8x32xf32>
    %331 = vector.shape_cast %330 : vector<1x8x32xf32> to vector<8x32xf32>
    %332 = vector.shape_cast %329 : vector<8x32xf32> to vector<1x8x32xf32>
    tpu.vector_store %arg15[%c0_153, %c0_154, %c0_155], %332 {strides = array<i32>} : memref<1x8x32xf32, #tpu.memory_space<vmem>>, vector<1x8x32xf32>,
    return
  }
  func.func @transform_0(%arg0: i32) -> (i32, i32, i32) {
    %c0_i32 = arith.constant 0 : i32
    %c0_i32_0 = arith.constant 0 : i32
    %c0_i32_1 = arith.constant 0 : i32
    return %arg0, %c0_i32, %c0_i32_0 : i32, i32, i32
  }
  func.func @transform_1(%arg0: i32) -> (i32, i32, i32) {
    %c0_i32 = arith.constant 0 : i32
    %c0_i32_0 = arith.constant 0 : i32
    %c0_i32_1 = arith.constant 0 : i32
    return %arg0, %c0_i32, %c0_i32_0 : i32, i32, i32
  }
  func.func @transform_2(%arg0: i32) -> (i32, i32, i32) {
    %c0_i32 = arith.constant 0 : i32
    %c0_i32_0 = arith.constant 0 : i32
    %c0_i32_1 = arith.constant 0 : i32
    %c0_i32_2 = arith.constant 0 : i32
    return %c0_i32, %c0_i32_0, %c0_i32_1 : i32, i32, i32
  }
  func.func @transform_3(%arg0: i32) -> (i32, i32, i32) {
    %c0_i32 = arith.constant 0 : i32
    %c0_i32_0 = arith.constant 0 : i32
    %c0_i32_1 = arith.constant 0 : i32
    %c0_i32_2 = arith.constant 0 : i32
    return %c0_i32, %c0_i32_0, %c0_i32_1 : i32, i32, i32
  }
  func.func @transform_4(%arg0: i32) -> (i32, i32, i32) {
    %c0_i32 = arith.constant 0 : i32
    %c0_i32_0 = arith.constant 0 : i32
    %c0_i32_1 = arith.constant 0 : i32
    %c0_i32_2 = arith.constant 0 : i32
    return %c0_i32, %c0_i32_0, %c0_i32_1 : i32, i32, i32
  }
  func.func @transform_5(%arg0: i32) -> (i32, i32, i32) {
    %c0_i32 = arith.constant 0 : i32
    %c0_i32_0 = arith.constant 0 : i32
    %c0_i32_1 = arith.constant 0 : i32
    %c0_i32_2 = arith.constant 0 : i32
    return %c0_i32, %c0_i32_0, %c0_i32_1 : i32, i32, i32
  }
  func.func @transform_6(%arg0: i32) -> (i32, i32, i32) {
    %c0_i32 = arith.constant 0 : i32
    %c0_i32_0 = arith.constant 0 : i32
    %c0_i32_1 = arith.constant 0 : i32
    %c0_i32_2 = arith.constant 0 : i32
    return %c0_i32, %c0_i32_0, %c0_i32_1 : i32, i32, i32
  }
  func.func @transform_7(%arg0: i32) -> (i32, i32, i32) {
    %c0_i32 = arith.constant 0 : i32
    %c0_i32_0 = arith.constant 0 : i32
    %c0_i32_1 = arith.constant 0 : i32
    %c0_i32_2 = arith.constant 0 : i32
    return %c0_i32, %c0_i32_0, %c0_i32_1 : i32, i32, i32
  }
  func.func @transform_8(%arg0: i32) -> (i32, i32, i32) {
    %c0_i32 = arith.constant 0 : i32
    %c0_i32_0 = arith.constant 0 : i32
    %c0_i32_1 = arith.constant 0 : i32
    %c0_i32_2 = arith.constant 0 : i32
    return %c0_i32, %c0_i32_0, %c0_i32_1 : i32, i32, i32
  }
  func.func @transform_9(%arg0: i32) -> (i32, i32, i32) {
    %c0_i32 = arith.constant 0 : i32
    %c0_i32_0 = arith.constant 0 : i32
    %c0_i32_1 = arith.constant 0 : i32
    %c0_i32_2 = arith.constant 0 : i32
    return %c0_i32, %c0_i32_0, %c0_i32_1 : i32, i32, i32
  }
  func.func @transform_10(%arg0: i32) -> (i32, i32, i32) {
    %c0_i32 = arith.constant 0 : i32
    %c0_i32_0 = arith.constant 0 : i32
    %c0_i32_1 = arith.constant 0 : i32
    %c0_i32_2 = arith.constant 0 : i32
    return %c0_i32, %c0_i32_0, %c0_i32_1 : i32, i32, i32
  }
  func.func @transform_11(%arg0: i32) -> (i32, i32, i32) {
    %c0_i32 = arith.constant 0 : i32
    %c0_i32_0 = arith.constant 0 : i32
    %c0_i32_1 = arith.constant 0 : i32
    %c0_i32_2 = arith.constant 0 : i32
    return %c0_i32, %c0_i32_0, %c0_i32_1 : i32, i32, i32
  }
  func.func @transform_12(%arg0: i32) -> (i32, i32, i32) {
    %c0_i32 = arith.constant 0 : i32
    %c0_i32_0 = arith.constant 0 : i32
    %c0_i32_1 = arith.constant 0 : i32
    %c0_i32_2 = arith.constant 0 : i32
    return %c0_i32, %c0_i32_0, %c0_i32_1 : i32, i32, i32
  }
  func.func @transform_13(%arg0: i32) -> (i32, i32, i32) {
    %c0_i32 = arith.constant 0 : i32
    %c0_i32_0 = arith.constant 0 : i32
    %c0_i32_1 = arith.constant 0 : i32
    %c0_i32_2 = arith.constant 0 : i32
    return %c0_i32, %c0_i32_0, %c0_i32_1 : i32, i32, i32
  }
  func.func @transform_14(%arg0: i32) -> (i32, i32, i32) {
    %c0_i32 = arith.constant 0 : i32
    %c0_i32_0 = arith.constant 0 : i32
    %c0_i32_1 = arith.constant 0 : i32
    return %arg0, %c0_i32, %c0_i32_0 : i32, i32, i32
  }
}

</mosaic_0001>

<llo_original>
// kernel: tpu_custom_call.1
$region0: #{tpu_custom_call.1}
  #allocation0 [shape = 'u32[]', space=smem, size = 0x4, offset = 0x4, fixed_abs, tag = 'smem constant byte address 0x4 - core index']
  #allocation1 [shape = 'u32[144,128]{1,0:T(1,128)}', space=vmem, size = 0x12000, scoped, tag = 'internal scratch']
  %s0 = inlined_call_operand.hbm [shape: f32[2,8,32], index: 0, kind: input, shape index: {}]
  %s1 = inlined_call_operand.hbm [shape: f32[2,8,8], index: 1, kind: input, shape index: {}]
  %s2 = inlined_call_operand.vmem [shape: f32[2,32,96], index: 2, kind: input, shape index: {}]
  %s3 = inlined_call_operand.vmem [shape: f32[2,1,96], index: 3, kind: input, shape index: {}]
  %s4 = inlined_call_operand.vmem [shape: f32[2,32,32], index: 4, kind: input, shape index: {}]
  %s5 = inlined_call_operand.vmem [shape: f32[2,1,32], index: 5, kind: input, shape index: {}]
  %s6 = inlined_call_operand.vmem [shape: f32[2,32,64], index: 6, kind: input, shape index: {}]
  %s7 = inlined_call_operand.vmem [shape: f32[2,1,64], index: 7, kind: input, shape index: {}]
  %s8 = inlined_call_operand.vmem [shape: f32[2,64,32], index: 8, kind: input, shape index: {}]
  %s9 = inlined_call_operand.vmem [shape: f32[2,1,32], index: 9, kind: input, shape index: {}]
  %s10 = inlined_call_operand.vmem [shape: f32[2,1,32], index: 10, kind: input, shape index: {}]
  %s11 = inlined_call_operand.vmem [shape: f32[2,1,32], index: 11, kind: input, shape index: {}]
  %s12 = inlined_call_operand.vmem [shape: f32[2,1,32], index: 12, kind: input, shape index: {}]
  %s13 = inlined_call_operand.vmem [shape: f32[2,1,32], index: 13, kind: input, shape index: {}]
  %s14 = inlined_call_operand.hbm [shape: f32[2,8,32], index: 14, kind: output, shape index: {}]
  %s15 = sld [smem:[#allocation0]]
  $region97: #{tpu_custom_call.1} parent=0
    _
  %s17 = ssub.s32 1, %s15
  %s18 = scalar_select 0, %s17, %s15
  $region1: #{tpu_custom_call.1} parent=0
    #allocation2 [shape = 'u8[8192]{0}', space=vmem, size = 0x2000, scoped, tag = 'input window, operand 0']
    #allocation3 [shape = 's32[2]{0}', space=sflag, size = 0x8, scoped, tag = 'scoped memory for tpu_custom_call.1']
    #allocation4 [shape = 's32[2]{0}', space=sflag, size = 0x8, scoped, tag = 'scoped memory for tpu_custom_call.1']
    #allocation5 [shape = 'u8[8192]{0}', space=vmem, size = 0x2000, scoped, tag = 'input window, operand 1']
    #allocation6 [shape = 's32[2]{0}', space=sflag, size = 0x8, scoped, tag = 'scoped memory for tpu_custom_call.1']
    #allocation7 [shape = 'u8[8192]{0}', space=vmem, size = 0x2000, scoped, tag = 'output window, operand 0']
    %19 = vsyncpa [#allocation3], 0
    %s20 = scalar_lea.sflag [#allocation3], 1
    %21 = vsyncpa %s20, 0
    %22 = vsyncpa [#allocation6], 0
    %s23 = scalar_lea.sflag [#allocation6], 1
    %24 = vsyncpa %s23, 0
    %25 = vsyncpa [#allocation4], 0
    %s26 = scalar_lea.sflag [#allocation4], 1
    %27 = vsyncpa %s26, 0
    loop: start=0, step=1, limit=4
    $region2: #{tpu_custom_call.1} parent=1 // loop_pre_header
      _
    $region3: #{tpu_custom_call.1} parent=1 // loop_header
      %s29 = sphi 0, %s33
      %p30 = scmp.ge.s32.totalorder %s29, 4
      %s39 = sphi 0, %s41
      %s42 = sphi 0, %s39
      %s43 = sphi 0, %s42
      %s59 = sphi 0, %s43
      %s65 = sphi 0, %s67
      %s68 = sphi 0, %s65
      %s69 = sphi 0, %s68
      %s85 = sphi 0, %s69
      %s89 = sphi 0, %s89
      %s91 = sphi 0, %s89
      %s92 = sphi 0, %s91
      %s106 = sphi 0, %s92
      %s110 = sphi 0, %s110
      %s112 = sphi 0, %s110
      %s113 = sphi 0, %s112
      %s127 = sphi 0, %s113
      %s131 = sphi 0, %s131
      %s133 = sphi 0, %s131
      %s134 = sphi 0, %s133
      %s148 = sphi 0, %s134
      %s152 = sphi 0, %s152
      %s154 = sphi 0, %s152
      %s155 = sphi 0, %s154
      %s169 = sphi 0, %s155
      %s173 = sphi 0, %s173
      %s175 = sphi 0, %s173
      %s176 = sphi 0, %s175
      %s190 = sphi 0, %s176
      %s194 = sphi 0, %s194
      %s196 = sphi 0, %s194
      %s197 = sphi 0, %s196
      %s211 = sphi 0, %s197
      %s215 = sphi 0, %s215
      %s217 = sphi 0, %s215
      %s218 = sphi 0, %s217
      %s232 = sphi 0, %s218
      %s236 = sphi 0, %s236
      %s238 = sphi 0, %s236
      %s239 = sphi 0, %s238
      %s253 = sphi 0, %s239
      %s257 = sphi 0, %s257
      %s259 = sphi 0, %s257
      %s260 = sphi 0, %s259
      %s274 = sphi 0, %s260
      %s278 = sphi 0, %s278
      %s280 = sphi 0, %s278
      %s281 = sphi 0, %s280
      %s295 = sphi 0, %s281
      %s299 = sphi 0, %s299
      %s301 = sphi 0, %s299
      %s302 = sphi 0, %s301
      %s316 = sphi 0, %s302
      %s320 = sphi 0, %s320
      %s322 = sphi 0, %s320
      %s323 = sphi 0, %s322
      %s337 = sphi 0, %s323
      %s343 = sphi 0, %s345
      %s346 = sphi 0, %s343
      %s347 = sphi 0, %s346
      %s363 = sphi 0, %s347
    $region4: #{tpu_custom_call.1} parent=1 // loop_header_branch
      %32 = sbr.rel (%p30) target = $region8
    $region5: #{tpu_custom_call.1} parent=1 // loop_body
      %s34 = ssub.s32 %s29, 1
      %s35 = ssub.s32 %s29, 2
      %s36 = sadd.s32 %s29, 1
      %s37 = ssub.s32 %s29, %s36
      %p38 = scmp.eq.s32.totalorder %s37, 0
      %s40 = sadd.s32 %s39, 1
      %s41 = scalar_select %p38, %s39, %s40
      %p44 = pneg %p38
      %p45 = scmp.eq.s32.totalorder %s29, 1
      %p46 = por %p44, %p45
      %p47 = scmp.ne.s32.totalorder %s39, %s42
      %p48 = scmp.eq.s32.totalorder %s29, 0
      %p49 = por %p47, %p48
      %p50 = scmp.ne.s32.totalorder %s39, %s42
      %p51 = scmp.eq.s32.totalorder %s34, 1
      %p52 = por %p50, %p51
      %p53 = scmp.ne.s32.totalorder %s42, %s43
      %p54 = scmp.eq.s32.totalorder %s34, 0
      %p55 = por %p53, %p54
      %p56 = scmp.ne.s32.totalorder %s42, %s43
      %p57 = scmp.eq.s32.totalorder %s35, 1
      %p58 = por %p56, %p57
      %p60 = scmp.ne.s32.totalorder %s43, %s59
      %p61 = scmp.eq.s32.totalorder %s35, 0
      %p62 = por %p60, %p61
      %s63 = ssub.s32 %s29, %s36
      %p64 = scmp.eq.s32.totalorder %s63, 0
      %s66 = sadd.s32 %s65, 1
      %s67 = scalar_select %p64, %s65, %s66
      %p70 = pneg %p64
      %p71 = scmp.eq.s32.totalorder %s29, 1
      %p72 = por %p70, %p71
      %p73 = scmp.ne.s32.totalorder %s65, %s68
      %p74 = scmp.eq.s32.totalorder %s29, 0
      %p75 = por %p73, %p74
      %p76 = scmp.ne.s32.totalorder %s65, %s68
      %p77 = scmp.eq.s32.totalorder %s34, 1
      %p78 = por %p76, %p77
      %p79 = scmp.ne.s32.totalorder %s68, %s69
      %p80 = scmp.eq.s32.totalorder %s34, 0
      %p81 = por %p79, %p80
      %p82 = scmp.ne.s32.totalorder %s68, %s69
      %p83 = scmp.eq.s32.totalorder %s35, 1
      %p84 = por %p82, %p83
      %p86 = scmp.ne.s32.totalorder %s69, %s85
      %p87 = scmp.eq.s32.totalorder %s35, 0
      %p88 = por %p86, %p87
      %s90 = sadd.s32 %s89, 1
      %p93 = scmp.eq.s32.totalorder %s29, 1
      %p94 = scmp.ne.s32.totalorder %s89, %s91
      %p95 = scmp.eq.s32.totalorder %s29, 0
      %p96 = por %p94, %p95
      %p97 = scmp.ne.s32.totalorder %s89, %s91
      %p98 = scmp.eq.s32.totalorder %s34, 1
      %p99 = por %p97, %p98
      %p100 = scmp.ne.s32.totalorder %s91, %s92
      %p101 = scmp.eq.s32.totalorder %s34, 0
      %p102 = por %p100, %p101
      %p103 = scmp.ne.s32.totalorder %s91, %s92
      %p104 = scmp.eq.s32.totalorder %s35, 1
      %p105 = por %p103, %p104
      %p107 = scmp.ne.s32.totalorder %s92, %s106
      %p108 = scmp.eq.s32.totalorder %s35, 0
      %p109 = por %p107, %p108
      %s111 = sadd.s32 %s110, 1
      %p114 = scmp.eq.s32.totalorder %s29, 1
      %p115 = scmp.ne.s32.totalorder %s110, %s112
      %p116 = scmp.eq.s32.totalorder %s29, 0
      %p117 = por %p115, %p116
      %p118 = scmp.ne.s32.totalorder %s110, %s112
      %p119 = scmp.eq.s32.totalorder %s34, 1
      %p120 = por %p118, %p119
      %p121 = scmp.ne.s32.totalorder %s112, %s113
      %p122 = scmp.eq.s32.totalorder %s34, 0
      %p123 = por %p121, %p122
      %p124 = scmp.ne.s32.totalorder %s112, %s113
      %p125 = scmp.eq.s32.totalorder %s35, 1
      %p126 = por %p124, %p125
      %p128 = scmp.ne.s32.totalorder %s113, %s127
      %p129 = scmp.eq.s32.totalorder %s35, 0
      %p130 = por %p128, %p129
      %s132 = sadd.s32 %s131, 1
      %p135 = scmp.eq.s32.totalorder %s29, 1
      %p136 = scmp.ne.s32.totalorder %s131, %s133
      %p137 = scmp.eq.s32.totalorder %s29, 0
      %p138 = por %p136, %p137
      %p139 = scmp.ne.s32.totalorder %s131, %s133
      %p140 = scmp.eq.s32.totalorder %s34, 1
      %p141 = por %p139, %p140
      %p142 = scmp.ne.s32.totalorder %s133, %s134
      %p143 = scmp.eq.s32.totalorder %s34, 0
      %p144 = por %p142, %p143
      %p145 = scmp.ne.s32.totalorder %s133, %s134
      %p146 = scmp.eq.s32.totalorder %s35, 1
      %p147 = por %p145, %p146
      %p149 = scmp.ne.s32.totalorder %s134, %s148
      %p150 = scmp.eq.s32.totalorder %s35, 0
      %p151 = por %p149, %p150
      %s153 = sadd.s32 %s152, 1
      %p156 = scmp.eq.s32.totalorder %s29, 1
      %p157 = scmp.ne.s32.totalorder %s152, %s154
      %p158 = scmp.eq.s32.totalorder %s29, 0
      %p159 = por %p157, %p158
      %p160 = scmp.ne.s32.totalorder %s152, %s154
      %p161 = scmp.eq.s32.totalorder %s34, 1
      %p162 = por %p160, %p161
      %p163 = scmp.ne.s32.totalorder %s154, %s155
      %p164 = scmp.eq.s32.totalorder %s34, 0
      %p165 = por %p163, %p164
      %p166 = scmp.ne.s32.totalorder %s154, %s155
      %p167 = scmp.eq.s32.totalorder %s35, 1
      %p168 = por %p166, %p167
      %p170 = scmp.ne.s32.totalorder %s155, %s169
      %p171 = scmp.eq.s32.totalorder %s35, 0
      %p172 = por %p170, %p171
      %s174 = sadd.s32 %s173, 1
      %p177 = scmp.eq.s32.totalorder %s29, 1
      %p178 = scmp.ne.s32.totalorder %s173, %s175
      %p179 = scmp.eq.s32.totalorder %s29, 0
      %p180 = por %p178, %p179
      %p181 = scmp.ne.s32.totalorder %s173, %s175
      %p182 = scmp.eq.s32.totalorder %s34, 1
      %p183 = por %p181, %p182
      %p184 = scmp.ne.s32.totalorder %s175, %s176
      %p185 = scmp.eq.s32.totalorder %s34, 0
      %p186 = por %p184, %p185
      %p187 = scmp.ne.s32.totalorder %s175, %s176
      %p188 = scmp.eq.s32.totalorder %s35, 1
      %p189 = por %p187, %p188
      %p191 = scmp.ne.s32.totalorder %s176, %s190
      %p192 = scmp.eq.s32.totalorder %s35, 0
      %p193 = por %p191, %p192
      %s195 = sadd.s32 %s194, 1
      %p198 = scmp.eq.s32.totalorder %s29, 1
      %p199 = scmp.ne.s32.totalorder %s194, %s196
      %p200 = scmp.eq.s32.totalorder %s29, 0
      %p201 = por %p199, %p200
      %p202 = scmp.ne.s32.totalorder %s194, %s196
      %p203 = scmp.eq.s32.totalorder %s34, 1
      %p204 = por %p202, %p203
      %p205 = scmp.ne.s32.totalorder %s196, %s197
      %p206 = scmp.eq.s32.totalorder %s34, 0
      %p207 = por %p205, %p206
      %p208 = scmp.ne.s32.totalorder %s196, %s197
      %p209 = scmp.eq.s32.totalorder %s35, 1
      %p210 = por %p208, %p209
      %p212 = scmp.ne.s32.totalorder %s197, %s211
      %p213 = scmp.eq.s32.totalorder %s35, 0
      %p214 = por %p212, %p213
      %s216 = sadd.s32 %s215, 1
      %p219 = scmp.eq.s32.totalorder %s29, 1
      %p220 = scmp.ne.s32.totalorder %s215, %s217
      %p221 = scmp.eq.s32.totalorder %s29, 0
      %p222 = por %p220, %p221
      %p223 = scmp.ne.s32.totalorder %s215, %s217
      %p224 = scmp.eq.s32.totalorder %s34, 1
      %p225 = por %p223, %p224
      %p226 = scmp.ne.s32.totalorder %s217, %s218
      %p227 = scmp.eq.s32.totalorder %s34, 0
      %p228 = por %p226, %p227
      %p229 = scmp.ne.s32.totalorder %s217, %s218
      %p230 = scmp.eq.s32.totalorder %s35, 1
      %p231 = por %p229, %p230
      %p233 = scmp.ne.s32.totalorder %s218, %s232
      %p234 = scmp.eq.s32.totalorder %s35, 0
      %p235 = por %p233, %p234
      %s237 = sadd.s32 %s236, 1
      %p240 = scmp.eq.s32.totalorder %s29, 1
      %p241 = scmp.ne.s32.totalorder %s236, %s238
      %p242 = scmp.eq.s32.totalorder %s29, 0
      %p243 = por %p241, %p242
      %p244 = scmp.ne.s32.totalorder %s236, %s238
      %p245 = scmp.eq.s32.totalorder %s34, 1
      %p246 = por %p244, %p245
      %p247 = scmp.ne.s32.totalorder %s238, %s239
      %p248 = scmp.eq.s32.totalorder %s34, 0
      %p249 = por %p247, %p248
      %p250 = scmp.ne.s32.totalorder %s238, %s239
      %p251 = scmp.eq.s32.totalorder %s35, 1
      %p252 = por %p250, %p251
      %p254 = scmp.ne.s32.totalorder %s239, %s253
      %p255 = scmp.eq.s32.totalorder %s35, 0
      %p256 = por %p254, %p255
      %s258 = sadd.s32 %s257, 1
      %p261 = scmp.eq.s32.totalorder %s29, 1
      %p262 = scmp.ne.s32.totalorder %s257, %s259
      %p263 = scmp.eq.s32.totalorder %s29, 0
      %p264 = por %p262, %p263
      %p265 = scmp.ne.s32.totalorder %s257, %s259
      %p266 = scmp.eq.s32.totalorder %s34, 1
      %p267 = por %p265, %p266
      %p268 = scmp.ne.s32.totalorder %s259, %s260
      %p269 = scmp.eq.s32.totalorder %s34, 0
      %p270 = por %p268, %p269
      %p271 = scmp.ne.s32.totalorder %s259, %s260
      %p272 = scmp.eq.s32.totalorder %s35, 1
      %p273 = por %p271, %p272
      %p275 = scmp.ne.s32.totalorder %s260, %s274
      %p276 = scmp.eq.s32.totalorder %s35, 0
      %p277 = por %p275, %p276
      %s279 = sadd.s32 %s278, 1
      %p282 = scmp.eq.s32.totalorder %s29, 1
      %p283 = scmp.ne.s32.totalorder %s278, %s280
      %p284 = scmp.eq.s32.totalorder %s29, 0
      %p285 = por %p283, %p284
      %p286 = scmp.ne.s32.totalorder %s278, %s280
      %p287 = scmp.eq.s32.totalorder %s34, 1
      %p288 = por %p286, %p287
      %p289 = scmp.ne.s32.totalorder %s280, %s281
      %p290 = scmp.eq.s32.totalorder %s34, 0
      %p291 = por %p289, %p290
      %p292 = scmp.ne.s32.totalorder %s280, %s281
      %p293 = scmp.eq.s32.totalorder %s35, 1
      %p294 = por %p292, %p293
      %p296 = scmp.ne.s32.totalorder %s281, %s295
      %p297 = scmp.eq.s32.totalorder %s35, 0
      %p298 = por %p296, %p297
      %s300 = sadd.s32 %s299, 1
      %p303 = scmp.eq.s32.totalorder %s29, 1
      %p304 = scmp.ne.s32.totalorder %s299, %s301
      %p305 = scmp.eq.s32.totalorder %s29, 0
      %p306 = por %p304, %p305
      %p307 = scmp.ne.s32.totalorder %s299, %s301
      %p308 = scmp.eq.s32.totalorder %s34, 1
      %p309 = por %p307, %p308
      %p310 = scmp.ne.s32.totalorder %s301, %s302
      %p311 = scmp.eq.s32.totalorder %s34, 0
      %p312 = por %p310, %p311
      %p313 = scmp.ne.s32.totalorder %s301, %s302
      %p314 = scmp.eq.s32.totalorder %s35, 1
      %p315 = por %p313, %p314
      %p317 = scmp.ne.s32.totalorder %s302, %s316
      %p318 = scmp.eq.s32.totalorder %s35, 0
      %p319 = por %p317, %p318
      %s321 = sadd.s32 %s320, 1
      %p324 = scmp.eq.s32.totalorder %s29, 1
      %p325 = scmp.ne.s32.totalorder %s320, %s322
      %p326 = scmp.eq.s32.totalorder %s29, 0
      %p327 = por %p325, %p326
      %p328 = scmp.ne.s32.totalorder %s320, %s322
      %p329 = scmp.eq.s32.totalorder %s34, 1
      %p330 = por %p328, %p329
      %p331 = scmp.ne.s32.totalorder %s322, %s323
      %p332 = scmp.eq.s32.totalorder %s34, 0
      %p333 = por %p331, %p332
      %p334 = scmp.ne.s32.totalorder %s322, %s323
      %p335 = scmp.eq.s32.totalorder %s35, 1
      %p336 = por %p334, %p335
      %p338 = scmp.ne.s32.totalorder %s323, %s337
      %p339 = scmp.eq.s32.totalorder %s35, 0
      %p340 = por %p338, %p339
      %s341 = ssub.s32 %s29, %s36
      %p342 = scmp.eq.s32.totalorder %s341, 0
      %s344 = sadd.s32 %s343, 1
      %s345 = scalar_select %p342, %s343, %s344
      %p348 = pneg %p342
      %p349 = scmp.eq.s32.totalorder %s29, 1
      %p350 = por %p348, %p349
      %p351 = scmp.ne.s32.totalorder %s343, %s346
      %p352 = scmp.eq.s32.totalorder %s29, 0
      %p353 = por %p351, %p352
      %p354 = scmp.ne.s32.totalorder %s343, %s346
      %p355 = scmp.eq.s32.totalorder %s34, 1
      %p356 = por %p354, %p355
      %p357 = scmp.ne.s32.totalorder %s346, %s347
      %p358 = scmp.eq.s32.totalorder %s34, 0
      %p359 = por %p357, %p358
      %p360 = scmp.ne.s32.totalorder %s346, %s347
      %p361 = scmp.eq.s32.totalorder %s35, 1
      %p362 = por %p360, %p361
      %p364 = scmp.ne.s32.totalorder %s347, %s363
      %p365 = scmp.eq.s32.totalorder %s35, 0
      %p366 = por %p364, %p365
      %p367 = scmp.le.s32.totalorder 1, %s29
      %p368 = scmp.lt.s32.totalorder %s29, 3
      %p369 = pnand %p367, %p368
      %p370 = pneg %p369
      // Predicated region
      $region9: #{tpu_custom_call.1} parent=5 // pred_check
        _
      $region10: #{tpu_custom_call.1} parent=5 // pred_check_branch
        %372 = sbr.rel (%p369) target = $region12
      $region11: #{tpu_custom_call.1} parent=5 // pred_region
        %s373 = ssub.s32 %s29, 1
        // Predicated region
        $region13: #{tpu_custom_call.1} parent=11 // pred_check
          %p374 = pneg %p102
        $region14: #{tpu_custom_call.1} parent=11 // pred_check_branch
          %376 = sbr.rel (%p374) target = $region16
        $region15: #{tpu_custom_call.1} parent=11 // pred_region
          _
        $region16: #{tpu_custom_call.1} parent=11 // pred_fallthru
          _
        // Predicated region
        $region17: #{tpu_custom_call.1} parent=11 // pred_check
          %p377 = pneg %p123
        $region18: #{tpu_custom_call.1} parent=11 // pred_check_branch
          %379 = sbr.rel (%p377) target = $region20
        $region19: #{tpu_custom_call.1} parent=11 // pred_region
          _
        $region20: #{tpu_custom_call.1} parent=11 // pred_fallthru
          _
        // Predicated region
        $region21: #{tpu_custom_call.1} parent=11 // pred_check
          %p380 = pneg %p144
        $region22: #{tpu_custom_call.1} parent=11 // pred_check_branch
          %382 = sbr.rel (%p380) target = $region24
        $region23: #{tpu_custom_call.1} parent=11 // pred_region
          _
        $region24: #{tpu_custom_call.1} parent=11 // pred_fallthru
          _
        // Predicated region
        $region25: #{tpu_custom_call.1} parent=11 // pred_check
          %p383 = pneg %p165
        $region26: #{tpu_custom_call.1} parent=11 // pred_check_branch
          %385 = sbr.rel (%p383) target = $region28
        $region27: #{tpu_custom_call.1} parent=11 // pred_region
          _
        $region28: #{tpu_custom_call.1} parent=11 // pred_fallthru
          _
        // Predicated region
        $region29: #{tpu_custom_call.1} parent=11 // pred_check
          %p386 = pneg %p186
        $region30: #{tpu_custom_call.1} parent=11 // pred_check_branch
          %388 = sbr.rel (%p386) target = $region32
        $region31: #{tpu_custom_call.1} parent=11 // pred_region
          _
        $region32: #{tpu_custom_call.1} parent=11 // pred_fallthru
          _
        // Predicated region
        $region33: #{tpu_custom_call.1} parent=11 // pred_check
          %p389 = pneg %p207
        $region34: #{tpu_custom_call.1} parent=11 // pred_check_branch
          %391 = sbr.rel (%p389) target = $region36
        $region35: #{tpu_custom_call.1} parent=11 // pred_region
          _
        $region36: #{tpu_custom_call.1} parent=11 // pred_fallthru
          _
        // Predicated region
        $region37: #{tpu_custom_call.1} parent=11 // pred_check
          %p392 = pneg %p228
        $region38: #{tpu_custom_call.1} parent=11 // pred_check_branch
          %394 = sbr.rel (%p392) target = $region40
        $region39: #{tpu_custom_call.1} parent=11 // pred_region
          _
        $region40: #{tpu_custom_call.1} parent=11 // pred_fallthru
          _
        // Predicated region
        $region41: #{tpu_custom_call.1} parent=11 // pred_check
          %p395 = pneg %p249
        $region42: #{tpu_custom_call.1} parent=11 // pred_check_branch
          %397 = sbr.rel (%p395) target = $region44
        $region43: #{tpu_custom_call.1} parent=11 // pred_region
          _
        $region44: #{tpu_custom_call.1} parent=11 // pred_fallthru
          _
        // Predicated region
        $region45: #{tpu_custom_call.1} parent=11 // pred_check
          %p398 = pneg %p270
        $region46: #{tpu_custom_call.1} parent=11 // pred_check_branch
          %400 = sbr.rel (%p398) target = $region48
        $region47: #{tpu_custom_call.1} parent=11 // pred_region
          _
        $region48: #{tpu_custom_call.1} parent=11 // pred_fallthru
          _
        // Predicated region
        $region49: #{tpu_custom_call.1} parent=11 // pred_check
          %p401 = pneg %p291
        $region50: #{tpu_custom_call.1} parent=11 // pred_check_branch
          %403 = sbr.rel (%p401) target = $region52
        $region51: #{tpu_custom_call.1} parent=11 // pred_region
          _
        $region52: #{tpu_custom_call.1} parent=11 // pred_fallthru
          _
        // Predicated region
        $region53: #{tpu_custom_call.1} parent=11 // pred_check
          %p404 = pneg %p312
        $region54: #{tpu_custom_call.1} parent=11 // pred_check_branch
          %406 = sbr.rel (%p404) target = $region56
        $region55: #{tpu_custom_call.1} parent=11 // pred_region
          _
        $region56: #{tpu_custom_call.1} parent=11 // pred_fallthru
          _
        // Predicated region
        $region57: #{tpu_custom_call.1} parent=11 // pred_check
          %p407 = pneg %p333
        $region58: #{tpu_custom_call.1} parent=11 // pred_check_branch
          %409 = sbr.rel (%p407) target = $region60
        $region59: #{tpu_custom_call.1} parent=11 // pred_region
          _
        $region60: #{tpu_custom_call.1} parent=11 // pred_fallthru
          _
      $region12: #{tpu_custom_call.1} parent=5 // pred_fallthru
        _
      %p410 = scmp.lt.s32.totalorder %s29, 2
      // Predicated region
      $region61: #{tpu_custom_call.1} parent=5 // pred_check
        %p411 = pneg %p410
      $region62: #{tpu_custom_call.1} parent=5 // pred_check_branch
        %413 = sbr.rel (%p411) target = $region64
      $region63: #{tpu_custom_call.1} parent=5 // pred_region
        // Predicated region
        $region65: #{tpu_custom_call.1} parent=63 // pred_check
          %p414 = pneg %p49
        $region66: #{tpu_custom_call.1} parent=63 // pred_check_branch
          %416 = sbr.rel (%p414) target = $region68
        $region67: #{tpu_custom_call.1} parent=63 // pred_region
          %s417 = sand.u32 %s39, 1
          %s418 = scalar_lea.sflag [#allocation3], %s417
          %s419 = sand.u32 %s39, 1
          %s420 = smul.addr %s419, 8
          %s421 = scalar_lea.vmem [#allocation2], %s420
          %s423 = ssub.s32 128, 128
          %424 = vsyncadd %s418, %s423
          %s425 = smul.addr %s29, 128
          %s426 = scalar_lea.hbm %s0, %s425
          %s428 = sshll.u32 %s421, 4
          %s429 = int_to_ptr.vmem [resolvable:$true] %s428
          %431 = dma.hbm_to_vmem [thread:$0]  %s426, 128, %s429, %s418
        $region68: #{tpu_custom_call.1} parent=63 // pred_fallthru
          _
        // Predicated region
        $region69: #{tpu_custom_call.1} parent=63 // pred_check
          %p432 = pneg %p75
        $region70: #{tpu_custom_call.1} parent=63 // pred_check_branch
          %434 = sbr.rel (%p432) target = $region72
        $region71: #{tpu_custom_call.1} parent=63 // pred_region
          %s435 = sand.u32 %s65, 1
          %s436 = scalar_lea.sflag [#allocation6], %s435
          %s437 = sand.u32 %s65, 1
          %s438 = smul.addr %s437, 8
          %s439 = scalar_lea.vmem [#allocation5], %s438
          %s441 = ssub.s32 128, 128
          %442 = vsyncadd %s436, %s441
          %s443 = smul.addr %s29, 128
          %s444 = scalar_lea.hbm %s1, %s443
          %s446 = sshll.u32 %s439, 4
          %s447 = int_to_ptr.vmem [resolvable:$true] %s446
          %449 = dma.hbm_to_vmem [thread:$0]  %s444, 128, %s447, %s436
        $region72: #{tpu_custom_call.1} parent=63 // pred_fallthru
          _
      $region64: #{tpu_custom_call.1} parent=5 // pred_fallthru
        _
      %p450 = scmp.le.s32.totalorder 1, %s29
      %p451 = scmp.lt.s32.totalorder %s29, 3
      %p452 = pnand %p450, %p451
      %p453 = pneg %p452
      // Predicated region
      $region73: #{tpu_custom_call.1} parent=5 // pred_check
        _
      $region74: #{tpu_custom_call.1} parent=5 // pred_check_branch
        %455 = sbr.rel (%p452) target = $region76
      $region75: #{tpu_custom_call.1} parent=5 // pred_region
        %s456 = ssub.s32 %s29, 1
        %s457 = sand.u32 %s42, 1
        %s458 = scalar_lea.sflag [#allocation3], %s457
        %s459 = sand.u32 %s42, 1
        %s460 = smul.addr %s459, 8
        %s461 = scalar_lea.vmem [#allocation2], %s460
        // Predicated region
        $region77: #{tpu_custom_call.1} parent=75 // pred_check
          %p462 = pneg %p55
        $region78: #{tpu_custom_call.1} parent=75 // pred_check_branch
          %464 = sbr.rel (%p462) target = $region80
        $region79: #{tpu_custom_call.1} parent=75 // pred_region
          %465 = dma.done %s458, 128
        $region80: #{tpu_custom_call.1} parent=75 // pred_fallthru
          _
        %s466 = sand.u32 %s68, 1
        %s467 = scalar_lea.sflag [#allocation6], %s466
        %s468 = sand.u32 %s68, 1
        %s469 = smul.addr %s468, 8
        %s470 = scalar_lea.vmem [#allocation5], %s469
        // Predicated region
        $region81: #{tpu_custom_call.1} parent=75 // pred_check
          %p471 = pneg %p81
        $region82: #{tpu_custom_call.1} parent=75 // pred_check_branch
          %473 = sbr.rel (%p471) target = $region84
        $region83: #{tpu_custom_call.1} parent=75 // pred_region
          %474 = dma.done %s467, 128
        $region84: #{tpu_custom_call.1} parent=75 // pred_fallthru
          _
        %s475 = sand.u32 %s42, 1
        %s476 = scalar_lea.sflag [#allocation3], %s475
        %s477 = sand.u32 %s42, 1
        %s478 = smul.addr %s477, 8
        %s479 = scalar_lea.vmem [#allocation2], %s478
        %p480 = pneg %p55
        %p481 = pneg %p52
        %s482 = sand.u32 %s68, 1
        %s483 = scalar_lea.sflag [#allocation6], %s482
        %s484 = sand.u32 %s68, 1
        %s485 = smul.addr %s484, 8
        %s486 = scalar_lea.vmem [#allocation5], %s485
        %p487 = pneg %p81
        %p488 = pneg %p78
        %p489 = pneg %p102
        %p490 = pneg %p99
        %p491 = pneg %p123
        %p492 = pneg %p120
        %p493 = pneg %p144
        %p494 = pneg %p141
        %p495 = pneg %p165
        %p496 = pneg %p162
        %p497 = pneg %p186
        %p498 = pneg %p183
        %p499 = pneg %p207
        %p500 = pneg %p204
        %p501 = pneg %p228
        %p502 = pneg %p225
        %p503 = pneg %p249
        %p504 = pneg %p246
        %p505 = pneg %p270
        %p506 = pneg %p267
        %p507 = pneg %p291
        %p508 = pneg %p288
        %p509 = pneg %p312
        %p510 = pneg %p309
        %p511 = pneg %p333
        %p512 = pneg %p330
        %p513 = pneg %p359
        %p514 = pneg %p356
        %s515 = sand.u32 %s346, 1
        %s516 = scalar_lea.sflag [#allocation4], %s515
        %s517 = sand.u32 %s346, 1
        %s518 = smul.addr %s517, 8
        %s519 = scalar_lea.vmem [#allocation7], %s518
        %v520 = vld [vmem:[%s461] sm:$0xff]
        %v521 = vld [vmem:[%s470] sm:$0xff]
        %v522 = vld [vmem:[%s2] sm:$0xff]
        %v523 = vld [vmem:[%s2 + $0x8] sm:$0xff]
        %v524 = vld [vmem:[%s2 + $0x10] sm:$0xff]
        %v525 = vld [vmem:[%s2 + $0x18] sm:$0xff]
        %v526 = vld [vmem:[%s3] sm:$0x1]
        %v528 = vlaneseq
        %v529 = vshrl.u32 %v528, 7
        %v530 = vsub.s32 0, %v529
        %v531 = vrot.slane %v526, %v530
        %vm533 = vcmask 261120
        %v535 = vsel %vm533, %v520, 0
        %537 = vmatprep.subr.mxu0 0.0
        %538 = vmatpush1.msra.mxu0 %v522
        %539 = vmatprep.subr.mxu0 0.0
        %540 = vmatpush1.msra.mxu0 %v523
        %541 = vmatprep.subr.mxu0 0.0
        %542 = vmatpush1.msra.mxu0 %v524
        %543 = vmatprep.subr.mxu0 0.0
        %544 = vmatpush1.msra.mxu0 %v525
        %545 = vmatprep.subr.mxu0 0.0
        %546 = vmatpush1.msra.mxu0 0.0
        %547 = vmatprep.subr.mxu0 0.0
        %548 = vmatpush1.msra.mxu0 0.0
        %549 = vmatprep.subr.mxu0 0.0
        %550 = vmatpush1.msra.mxu0 0.0
        %551 = vmatprep.subr.mxu0 0.0
        %552 = vmatpush1.msra.mxu0 0.0
        %553 = vmatprep.subr.mxu0 0.0
        %554 = vmatpush1.msra.mxu0 0.0
        %555 = vmatprep.subr.mxu0 0.0
        %556 = vmatpush1.msra.mxu0 0.0
        %557 = vmatprep.subr.mxu0 0.0
        %558 = vmatpush1.msra.mxu0 0.0
        %559 = vmatprep.subr.mxu0 0.0
        %560 = vmatpush1.msra.mxu0 0.0
        %561 = vmatprep.subr.mxu0 0.0
        %562 = vmatpush1.msra.mxu0 0.0
        %563 = vmatprep.subr.mxu0 0.0
        %564 = vmatpush1.msra.mxu0 0.0
        %565 = vmatprep.subr.mxu0 0.0
        %566 = vmatpush1.msra.mxu0 0.0
        %567 = vmatprep.subr.mxu0 0.0
        %568 = vmatpush1.msra.mxu0 0.0
        %569 = vmatprep.subr.mxu0 0.0
        %570 = vmatpush1.msra.mxu0 0.0
        %571 = vmatprep.subr.mxu0 0.0
        %572 = vmatpush1.msra.mxu0 0.0
        %573 = vmatprep.subr.mxu0 0.0
        %574 = vmatpush1.msra.mxu0 0.0
        %575 = vmatprep.subr.mxu0 0.0
        %576 = vmatpush1.msra.mxu0 0.0
        %577 = vmatprep.subr.mxu0 0.0
        %578 = vmatpush1.msra.mxu0 0.0
        %579 = vmatprep.subr.mxu0 0.0
        %580 = vmatpush1.msra.mxu0 0.0
        %581 = vmatprep.subr.mxu0 0.0
        %582 = vmatpush1.msra.mxu0 0.0
        %583 = vmatprep.subr.mxu0 0.0
        %584 = vmatpush1.msra.mxu0 0.0
        %585 = vmatprep.subr.mxu0 0.0
        %586 = vmatpush1.msra.mxu0 0.0
        %587 = vmatprep.subr.mxu0 0.0
        %588 = vmatpush1.msra.mxu0 0.0
        %589 = vmatprep.subr.mxu0 0.0
        %590 = vmatpush1.msra.mxu0 0.0
        %591 = vmatprep.subr.mxu0 0.0
        %592 = vmatpush1.msra.mxu0 0.0
        %593 = vmatprep.subr.mxu0 0.0
        %594 = vmatpush1.msra.mxu0 0.0
        %595 = vmatprep.subr.mxu0 0.0
        %596 = vmatpush1.msra.mxu0 0.0
        %597 = vmatprep.subr.mxu0 0.0
        %598 = vmatpush1.msra.mxu0 0.0
        %599 = vmatprep.subr.mxu0 0.0
        %600 = vmatpush1.msra.mxu0 0.0
        %601 = vmatprep.mubr.f32.mxu0 0.0
        %602 = vmatmul.mubr.f32.gmra.mrb[0].mxu0 %v535
        %v603 = vpop.f32.mrb[0].mxu0
        %v604 = vadd.f32 %v531, %v603
        %v605 = vpop.f32.mrb[0].mxu0
        %606 = vdwg.mxu0
        %v607 = vld [vmem:[%s4] sm:$0xff]
        %v608 = vld [vmem:[%s4 + $0x8] sm:$0xff]
        %v609 = vld [vmem:[%s4 + $0x10] sm:$0xff]
        %v610 = vld [vmem:[%s4 + $0x18] sm:$0xff]
        %612 = vrot.lane.b32.xlu0 %v604, 96
        %v613 = vpop.permute.xlu0 %612
        %vm614 = vcmask 64512
        %v615 = vsel %vm614, %v604, 0
        %v617 = vsel %vm614, %v613, 0
        %619 = vmatprep.subr.mxu0 0.0
        %620 = vmatpush1.xpose.msra.mxu0 %v617
        %621 = vmatprep.subr.mxu0 0.0
        %622 = vmatpush1.xpose.msra.mxu0 0.0
        %623 = vmatprep.subr.mxu0 0.0
        %624 = vmatpush1.xpose.msra.mxu0 0.0
        %625 = vmatprep.subr.mxu0 0.0
        %626 = vmatpush1.xpose.msra.mxu0 0.0
        %627 = vmatprep.subr.mxu0 0.0
        %628 = vmatpush1.xpose.msra.mxu0 0.0
        %629 = vmatprep.subr.mxu0 0.0
        %630 = vmatpush1.xpose.msra.mxu0 0.0
        %631 = vmatprep.subr.mxu0 0.0
        %632 = vmatpush1.xpose.msra.mxu0 0.0
        %633 = vmatprep.subr.mxu0 0.0
        %634 = vmatpush1.xpose.msra.mxu0 0.0
        %635 = vmatprep.subr.mxu0 0.0
        %636 = vmatpush1.xpose.msra.mxu0 0.0
        %637 = vmatprep.subr.mxu0 0.0
        %638 = vmatpush1.xpose.msra.mxu0 0.0
        %639 = vmatprep.subr.mxu0 0.0
        %640 = vmatpush1.xpose.msra.mxu0 0.0
        %641 = vmatprep.subr.mxu0 0.0
        %642 = vmatpush1.xpose.msra.mxu0 0.0
        %643 = vmatprep.subr.mxu0 0.0
        %644 = vmatpush1.xpose.msra.mxu0 0.0
        %645 = vmatprep.subr.mxu0 0.0
        %646 = vmatpush1.xpose.msra.mxu0 0.0
        %647 = vmatprep.subr.mxu0 0.0
        %648 = vmatpush1.xpose.msra.mxu0 0.0
        %649 = vmatprep.subr.mxu0 0.0
        %650 = vmatpush1.xpose.msra.mxu0 0.0
        %651 = vmatprep.subr.mxu0 0.0
        %652 = vmatpush1.xpose.msra.mxu0 0.0
        %653 = vmatprep.subr.mxu0 0.0
        %654 = vmatpush1.xpose.msra.mxu0 0.0
        %655 = vmatprep.subr.mxu0 0.0
        %656 = vmatpush1.xpose.msra.mxu0 0.0
        %657 = vmatprep.subr.mxu0 0.0
        %658 = vmatpush1.xpose.msra.mxu0 0.0
        %659 = vmatprep.subr.mxu0 0.0
        %660 = vmatpush1.xpose.msra.mxu0 0.0
        %661 = vmatprep.subr.mxu0 0.0
        %662 = vmatpush1.xpose.msra.mxu0 0.0
        %663 = vmatprep.subr.mxu0 0.0
        %664 = vmatpush1.xpose.msra.mxu0 0.0
        %665 = vmatprep.subr.mxu0 0.0
        %666 = vmatpush1.xpose.msra.mxu0 0.0
        %667 = vmatprep.subr.mxu0 0.0
        %668 = vmatpush1.xpose.msra.mxu0 0.0
        %669 = vmatprep.subr.mxu0 0.0
        %670 = vmatpush1.xpose.msra.mxu0 0.0
        %671 = vmatprep.subr.mxu0 0.0
        %672 = vmatpush1.xpose.msra.mxu0 0.0
        %673 = vmatprep.subr.mxu0 0.0
        %674 = vmatpush1.xpose.msra.mxu0 0.0
        %675 = vmatprep.subr.mxu0 0.0
        %676 = vmatpush1.xpose.msra.mxu0 0.0
        %677 = vmatprep.subr.mxu0 0.0
        %678 = vmatpush1.xpose.msra.mxu0 0.0
        %679 = vmatprep.subr.mxu0 0.0
        %680 = vmatpush1.xpose.msra.mxu0 0.0
        %681 = vmatprep.subr.mxu0 0.0
        %682 = vmatpush1.xpose.msra.mxu0 0.0
        %683 = vmatprep.mubr.f32.mxu0 0.0
        %684 = vmatmul.mubr.f32.gmra.mrb[0].mxu0 %v615
        %v685 = vpop.f32.mrb[0].mxu0
        %v686 = vadd.f32 0.0, %v685
        %v687 = vpop.f32.mrb[0].mxu0
        %688 = vdwg.mxu0
        %v689 = vmul.f32 %v686, 0.35355338
        %v690 = vadd.f32 %v689, %v521
        %v691 = vsel %vm614, %v690, -inf
        %692 = vmax.xlane.f32.xlu0 %v691
        %v693 = vpop.xlane.xlu0 %692
        %v694 = vsub.f32 %v690, %v693
        %v695 = vmul.f32 %v694, 1.442695
        %v696 = vpow.pop %v695
        %v697 = vsel %vm614, %v696, 0.0
        %698 = vadd.xlane.f32.xlu0 %v697
        %v699 = vpop.xlane.xlu0 %698
        %v700 = vrcp.pop %v699
        %v701 = vmul.f32 %v696, %v700
        %702 = vrot.lane.b32.xlu0 %v604, 64
        %v703 = vpop.permute.xlu0 %702
        %v706 = vsel %vm614, %v701, 0
        %708 = vmatprep.subr.mxu0 0.0
        %709 = vmatpush1.msra.mxu0 %v703
        %710 = vmatprep.subr.mxu0 0.0
        %711 = vmatpush1.msra.mxu0 0.0
        %712 = vmatprep.subr.mxu0 0.0
        %713 = vmatpush1.msra.mxu0 0.0
        %714 = vmatprep.subr.mxu0 0.0
        %715 = vmatpush1.msra.mxu0 0.0
        %716 = vmatprep.subr.mxu0 0.0
        %717 = vmatpush1.msra.mxu0 0.0
        %718 = vmatprep.subr.mxu0 0.0
        %719 = vmatpush1.msra.mxu0 0.0
        %720 = vmatprep.subr.mxu0 0.0
        %721 = vmatpush1.msra.mxu0 0.0
        %722 = vmatprep.subr.mxu0 0.0
        %723 = vmatpush1.msra.mxu0 0.0
        %724 = vmatprep.subr.mxu0 0.0
        %725 = vmatpush1.msra.mxu0 0.0
        %726 = vmatprep.subr.mxu0 0.0
        %727 = vmatpush1.msra.mxu0 0.0
        %728 = vmatprep.subr.mxu0 0.0
        %729 = vmatpush1.msra.mxu0 0.0
        %730 = vmatprep.subr.mxu0 0.0
        %731 = vmatpush1.msra.mxu0 0.0
        %732 = vmatprep.subr.mxu0 0.0
        %733 = vmatpush1.msra.mxu0 0.0
        %734 = vmatprep.subr.mxu0 0.0
        %735 = vmatpush1.msra.mxu0 0.0
        %736 = vmatprep.subr.mxu0 0.0
        %737 = vmatpush1.msra.mxu0 0.0
        %738 = vmatprep.subr.mxu0 0.0
        %739 = vmatpush1.msra.mxu0 0.0
        %740 = vmatprep.subr.mxu0 0.0
        %741 = vmatpush1.msra.mxu0 0.0
        %742 = vmatprep.subr.mxu0 0.0
        %743 = vmatpush1.msra.mxu0 0.0
        %744 = vmatprep.subr.mxu0 0.0
        %745 = vmatpush1.msra.mxu0 0.0
        %746 = vmatprep.subr.mxu0 0.0
        %747 = vmatpush1.msra.mxu0 0.0
        %748 = vmatprep.subr.mxu0 0.0
        %749 = vmatpush1.msra.mxu0 0.0
        %750 = vmatprep.subr.mxu0 0.0
        %751 = vmatpush1.msra.mxu0 0.0
        %752 = vmatprep.subr.mxu0 0.0
        %753 = vmatpush1.msra.mxu0 0.0
        %754 = vmatprep.subr.mxu0 0.0
        %755 = vmatpush1.msra.mxu0 0.0
        %756 = vmatprep.subr.mxu0 0.0
        %757 = vmatpush1.msra.mxu0 0.0
        %758 = vmatprep.subr.mxu0 0.0
        %759 = vmatpush1.msra.mxu0 0.0
        %760 = vmatprep.subr.mxu0 0.0
        %761 = vmatpush1.msra.mxu0 0.0
        %762 = vmatprep.subr.mxu0 0.0
        %763 = vmatpush1.msra.mxu0 0.0
        %764 = vmatprep.subr.mxu0 0.0
        %765 = vmatpush1.msra.mxu0 0.0
        %766 = vmatprep.subr.mxu0 0.0
        %767 = vmatpush1.msra.mxu0 0.0
        %768 = vmatprep.subr.mxu0 0.0
        %769 = vmatpush1.msra.mxu0 0.0
        %770 = vmatprep.subr.mxu0 0.0
        %771 = vmatpush1.msra.mxu0 0.0
        %772 = vmatprep.mubr.f32.mxu0 0.0
        %773 = vmatmul.mubr.f32.gmra.mrb[0].mxu0 %v706
        %v774 = vpop.f32.mrb[0].mxu0
        %v775 = vadd.f32 0.0, %v774
        %v776 = vpop.f32.mrb[0].mxu0
        %777 = vdwg.mxu0
        %778 = vrot.lane.b32.xlu0 %v604, 120
        %v779 = vpop.permute.xlu0 %778
        %780 = vrot.lane.b32.xlu0 %v604, 88
        %v781 = vpop.permute.xlu0 %780
        %v782 = vsel %vm614, %v779, 0
        %v784 = vsel %vm614, %v781, 0
        %786 = vmatprep.subr.mxu0 0.0
        %787 = vmatpush1.xpose.msra.mxu0 %v784
        %788 = vmatprep.subr.mxu0 0.0
        %789 = vmatpush1.xpose.msra.mxu0 0.0
        %790 = vmatprep.subr.mxu0 0.0
        %791 = vmatpush1.xpose.msra.mxu0 0.0
        %792 = vmatprep.subr.mxu0 0.0
        %793 = vmatpush1.xpose.msra.mxu0 0.0
        %794 = vmatprep.subr.mxu0 0.0
        %795 = vmatpush1.xpose.msra.mxu0 0.0
        %796 = vmatprep.subr.mxu0 0.0
        %797 = vmatpush1.xpose.msra.mxu0 0.0
        %798 = vmatprep.subr.mxu0 0.0
        %799 = vmatpush1.xpose.msra.mxu0 0.0
        %800 = vmatprep.subr.mxu0 0.0
        %801 = vmatpush1.xpose.msra.mxu0 0.0
        %802 = vmatprep.subr.mxu0 0.0
        %803 = vmatpush1.xpose.msra.mxu0 0.0
        %804 = vmatprep.subr.mxu0 0.0
        %805 = vmatpush1.xpose.msra.mxu0 0.0
        %806 = vmatprep.subr.mxu0 0.0
        %807 = vmatpush1.xpose.msra.mxu0 0.0
        %808 = vmatprep.subr.mxu0 0.0
        %809 = vmatpush1.xpose.msra.mxu0 0.0
        %810 = vmatprep.subr.mxu0 0.0
        %811 = vmatpush1.xpose.msra.mxu0 0.0
        %812 = vmatprep.subr.mxu0 0.0
        %813 = vmatpush1.xpose.msra.mxu0 0.0
        %814 = vmatprep.subr.mxu0 0.0
        %815 = vmatpush1.xpose.msra.mxu0 0.0
        %816 = vmatprep.subr.mxu0 0.0
        %817 = vmatpush1.xpose.msra.mxu0 0.0
        %818 = vmatprep.subr.mxu0 0.0
        %819 = vmatpush1.xpose.msra.mxu0 0.0
        %820 = vmatprep.subr.mxu0 0.0
        %821 = vmatpush1.xpose.msra.mxu0 0.0
        %822 = vmatprep.subr.mxu0 0.0
        %823 = vmatpush1.xpose.msra.mxu0 0.0
        %824 = vmatprep.subr.mxu0 0.0
        %825 = vmatpush1.xpose.msra.mxu0 0.0
        %826 = vmatprep.subr.mxu0 0.0
        %827 = vmatpush1.xpose.msra.mxu0 0.0
        %828 = vmatprep.subr.mxu0 0.0
        %829 = vmatpush1.xpose.msra.mxu0 0.0
        %830 = vmatprep.subr.mxu0 0.0
        %831 = vmatpush1.xpose.msra.mxu0 0.0
        %832 = vmatprep.subr.mxu0 0.0
        %833 = vmatpush1.xpose.msra.mxu0 0.0
        %834 = vmatprep.subr.mxu0 0.0
        %835 = vmatpush1.xpose.msra.mxu0 0.0
        %836 = vmatprep.subr.mxu0 0.0
        %837 = vmatpush1.xpose.msra.mxu0 0.0
        %838 = vmatprep.subr.mxu0 0.0
        %839 = vmatpush1.xpose.msra.mxu0 0.0
        %840 = vmatprep.subr.mxu0 0.0
        %841 = vmatpush1.xpose.msra.mxu0 0.0
        %842 = vmatprep.subr.mxu0 0.0
        %843 = vmatpush1.xpose.msra.mxu0 0.0
        %844 = vmatprep.subr.mxu0 0.0
        %845 = vmatpush1.xpose.msra.mxu0 0.0
        %846 = vmatprep.subr.mxu0 0.0
        %847 = vmatpush1.xpose.msra.mxu0 0.0
        %848 = vmatprep.subr.mxu0 0.0
        %849 = vmatpush1.xpose.msra.mxu0 0.0
        %850 = vmatprep.mubr.f32.mxu0 0.0
        %851 = vmatmul.mubr.f32.gmra.mrb[0].mxu0 %v782
        %v852 = vpop.f32.mrb[0].mxu0
        %v853 = vadd.f32 0.0, %v852
        %v854 = vpop.f32.mrb[0].mxu0
        %855 = vdwg.mxu0
        %v856 = vmul.f32 %v853, 0.35355338
        %v857 = vadd.f32 %v856, %v521
        %v858 = vsel %vm614, %v857, -inf
        %859 = vmax.xlane.f32.xlu0 %v858
        %v860 = vpop.xlane.xlu0 %859
        %v861 = vsub.f32 %v857, %v860
        %v862 = vmul.f32 %v861, 1.442695
        %v863 = vpow.pop %v862
        %v864 = vsel %vm614, %v863, 0.0
        %865 = vadd.xlane.f32.xlu0 %v864
        %v866 = vpop.xlane.xlu0 %865
        %v867 = vrcp.pop %v866
        %v868 = vmul.f32 %v863, %v867
        %869 = vrot.lane.b32.xlu0 %v604, 56
        %v870 = vpop.permute.xlu0 %869
        %v873 = vsel %vm614, %v868, 0
        %875 = vmatprep.subr.mxu0 0.0
        %876 = vmatpush1.msra.mxu0 %v870
        %877 = vmatprep.subr.mxu0 0.0
        %878 = vmatpush1.msra.mxu0 0.0
        %879 = vmatprep.subr.mxu0 0.0
        %880 = vmatpush1.msra.mxu0 0.0
        %881 = vmatprep.subr.mxu0 0.0
        %882 = vmatpush1.msra.mxu0 0.0
        %883 = vmatprep.subr.mxu0 0.0
        %884 = vmatpush1.msra.mxu0 0.0
        %885 = vmatprep.subr.mxu0 0.0
        %886 = vmatpush1.msra.mxu0 0.0
        %887 = vmatprep.subr.mxu0 0.0
        %888 = vmatpush1.msra.mxu0 0.0
        %889 = vmatprep.subr.mxu0 0.0
        %890 = vmatpush1.msra.mxu0 0.0
        %891 = vmatprep.subr.mxu0 0.0
        %892 = vmatpush1.msra.mxu0 0.0
        %893 = vmatprep.subr.mxu0 0.0
        %894 = vmatpush1.msra.mxu0 0.0
        %895 = vmatprep.subr.mxu0 0.0
        %896 = vmatpush1.msra.mxu0 0.0
        %897 = vmatprep.subr.mxu0 0.0
        %898 = vmatpush1.msra.mxu0 0.0
        %899 = vmatprep.subr.mxu0 0.0
        %900 = vmatpush1.msra.mxu0 0.0
        %901 = vmatprep.subr.mxu0 0.0
        %902 = vmatpush1.msra.mxu0 0.0
        %903 = vmatprep.subr.mxu0 0.0
        %904 = vmatpush1.msra.mxu0 0.0
        %905 = vmatprep.subr.mxu0 0.0
        %906 = vmatpush1.msra.mxu0 0.0
        %907 = vmatprep.subr.mxu0 0.0
        %908 = vmatpush1.msra.mxu0 0.0
        %909 = vmatprep.subr.mxu0 0.0
        %910 = vmatpush1.msra.mxu0 0.0
        %911 = vmatprep.subr.mxu0 0.0
        %912 = vmatpush1.msra.mxu0 0.0
        %913 = vmatprep.subr.mxu0 0.0
        %914 = vmatpush1.msra.mxu0 0.0
        %915 = vmatprep.subr.mxu0 0.0
        %916 = vmatpush1.msra.mxu0 0.0
        %917 = vmatprep.subr.mxu0 0.0
        %918 = vmatpush1.msra.mxu0 0.0
        %919 = vmatprep.subr.mxu0 0.0
        %920 = vmatpush1.msra.mxu0 0.0
        %921 = vmatprep.subr.mxu0 0.0
        %922 = vmatpush1.msra.mxu0 0.0
        %923 = vmatprep.subr.mxu0 0.0
        %924 = vmatpush1.msra.mxu0 0.0
        %925 = vmatprep.subr.mxu0 0.0
        %926 = vmatpush1.msra.mxu0 0.0
        %927 = vmatprep.subr.mxu0 0.0
        %928 = vmatpush1.msra.mxu0 0.0
        %929 = vmatprep.subr.mxu0 0.0
        %930 = vmatpush1.msra.mxu0 0.0
        %931 = vmatprep.subr.mxu0 0.0
        %932 = vmatpush1.msra.mxu0 0.0
        %933 = vmatprep.subr.mxu0 0.0
        %934 = vmatpush1.msra.mxu0 0.0
        %935 = vmatprep.subr.mxu0 0.0
        %936 = vmatpush1.msra.mxu0 0.0
        %937 = vmatprep.subr.mxu0 0.0
        %938 = vmatpush1.msra.mxu0 0.0
        %939 = vmatprep.mubr.f32.mxu0 0.0
        %940 = vmatmul.mubr.f32.gmra.mrb[0].mxu0 %v873
        %v941 = vpop.f32.mrb[0].mxu0
        %v942 = vadd.f32 0.0, %v941
        %v943 = vpop.f32.mrb[0].mxu0
        %944 = vdwg.mxu0
        %v946 = vsel %vm614, %v942, 0
        %948 = vmatprep.subr.mxu0 0.0
        %949 = vmatpush1.msra.mxu0 %v608
        %950 = vmatprep.subr.mxu0 0.0
        %951 = vmatpush1.msra.mxu0 0.0
        %952 = vmatprep.subr.mxu0 0.0
        %953 = vmatpush1.msra.mxu0 0.0
        %954 = vmatprep.subr.mxu0 0.0
        %955 = vmatpush1.msra.mxu0 0.0
        %956 = vmatprep.subr.mxu0 0.0
        %957 = vmatpush1.msra.mxu0 0.0
        %958 = vmatprep.subr.mxu0 0.0
        %959 = vmatpush1.msra.mxu0 0.0
        %960 = vmatprep.subr.mxu0 0.0
        %961 = vmatpush1.msra.mxu0 0.0
        %962 = vmatprep.subr.mxu0 0.0
        %963 = vmatpush1.msra.mxu0 0.0
        %964 = vmatprep.subr.mxu0 0.0
        %965 = vmatpush1.msra.mxu0 0.0
        %966 = vmatprep.subr.mxu0 0.0
        %967 = vmatpush1.msra.mxu0 0.0
        %968 = vmatprep.subr.mxu0 0.0
        %969 = vmatpush1.msra.mxu0 0.0
        %970 = vmatprep.subr.mxu0 0.0
        %971 = vmatpush1.msra.mxu0 0.0
        %972 = vmatprep.subr.mxu0 0.0
        %973 = vmatpush1.msra.mxu0 0.0
        %974 = vmatprep.subr.mxu0 0.0
        %975 = vmatpush1.msra.mxu0 0.0
        %976 = vmatprep.subr.mxu0 0.0
        %977 = vmatpush1.msra.mxu0 0.0
        %978 = vmatprep.subr.mxu0 0.0
        %979 = vmatpush1.msra.mxu0 0.0
        %980 = vmatprep.subr.mxu0 0.0
        %981 = vmatpush1.msra.mxu0 0.0
        %982 = vmatprep.subr.mxu0 0.0
        %983 = vmatpush1.msra.mxu0 0.0
        %984 = vmatprep.subr.mxu0 0.0
        %985 = vmatpush1.msra.mxu0 0.0
        %986 = vmatprep.subr.mxu0 0.0
        %987 = vmatpush1.msra.mxu0 0.0
        %988 = vmatprep.subr.mxu0 0.0
        %989 = vmatpush1.msra.mxu0 0.0
        %990 = vmatprep.subr.mxu0 0.0
        %991 = vmatpush1.msra.mxu0 0.0
        %992 = vmatprep.subr.mxu0 0.0
        %993 = vmatpush1.msra.mxu0 0.0
        %994 = vmatprep.subr.mxu0 0.0
        %995 = vmatpush1.msra.mxu0 0.0
        %996 = vmatprep.subr.mxu0 0.0
        %997 = vmatpush1.msra.mxu0 0.0
        %998 = vmatprep.subr.mxu0 0.0
        %999 = vmatpush1.msra.mxu0 0.0
        %1000 = vmatprep.subr.mxu0 0.0
        %1001 = vmatpush1.msra.mxu0 0.0
        %1002 = vmatprep.subr.mxu0 0.0
        %1003 = vmatpush1.msra.mxu0 0.0
        %1004 = vmatprep.subr.mxu0 0.0
        %1005 = vmatpush1.msra.mxu0 0.0
        %1006 = vmatprep.subr.mxu0 0.0
        %1007 = vmatpush1.msra.mxu0 0.0
        %1008 = vmatprep.subr.mxu0 0.0
        %1009 = vmatpush1.msra.mxu0 0.0
        %1010 = vmatprep.subr.mxu0 0.0
        %1011 = vmatpush1.msra.mxu0 0.0
        %1012 = vmatprep.mubr.f32.mxu0 0.0
        %1013 = vmatmul.mubr.f32.gmra.mrb[0].mxu0 %v946
        %v1014 = vpop.f32.mrb[0].mxu0
        %v1015 = vadd.f32 0.0, %v1014
        %v1016 = vpop.f32.mrb[0].mxu0
        %1017 = vdwg.mxu0
        %v1019 = vsel %vm614, %v775, 0
        %1021 = vmatprep.subr.mxu0 0.0
        %1022 = vmatpush1.msra.mxu0 %v607
        %1023 = vmatprep.subr.mxu0 0.0
        %1024 = vmatpush1.msra.mxu0 0.0
        %1025 = vmatprep.subr.mxu0 0.0
        %1026 = vmatpush1.msra.mxu0 0.0
        %1027 = vmatprep.subr.mxu0 0.0
        %1028 = vmatpush1.msra.mxu0 0.0
        %1029 = vmatprep.subr.mxu0 0.0
        %1030 = vmatpush1.msra.mxu0 0.0
        %1031 = vmatprep.subr.mxu0 0.0
        %1032 = vmatpush1.msra.mxu0 0.0
        %1033 = vmatprep.subr.mxu0 0.0
        %1034 = vmatpush1.msra.mxu0 0.0
        %1035 = vmatprep.subr.mxu0 0.0
        %1036 = vmatpush1.msra.mxu0 0.0
        %1037 = vmatprep.subr.mxu0 0.0
        %1038 = vmatpush1.msra.mxu0 0.0
        %1039 = vmatprep.subr.mxu0 0.0
        %1040 = vmatpush1.msra.mxu0 0.0
        %1041 = vmatprep.subr.mxu0 0.0
        %1042 = vmatpush1.msra.mxu0 0.0
        %1043 = vmatprep.subr.mxu0 0.0
        %1044 = vmatpush1.msra.mxu0 0.0
        %1045 = vmatprep.subr.mxu0 0.0
        %1046 = vmatpush1.msra.mxu0 0.0
        %1047 = vmatprep.subr.mxu0 0.0
        %1048 = vmatpush1.msra.mxu0 0.0
        %1049 = vmatprep.subr.mxu0 0.0
        %1050 = vmatpush1.msra.mxu0 0.0
        %1051 = vmatprep.subr.mxu0 0.0
        %1052 = vmatpush1.msra.mxu0 0.0
        %1053 = vmatprep.subr.mxu0 0.0
        %1054 = vmatpush1.msra.mxu0 0.0
        %1055 = vmatprep.subr.mxu0 0.0
        %1056 = vmatpush1.msra.mxu0 0.0
        %1057 = vmatprep.subr.mxu0 0.0
        %1058 = vmatpush1.msra.mxu0 0.0
        %1059 = vmatprep.subr.mxu0 0.0
        %1060 = vmatpush1.msra.mxu0 0.0
        %1061 = vmatprep.subr.mxu0 0.0
        %1062 = vmatpush1.msra.mxu0 0.0
        %1063 = vmatprep.subr.mxu0 0.0
        %1064 = vmatpush1.msra.mxu0 0.0
        %1065 = vmatprep.subr.mxu0 0.0
        %1066 = vmatpush1.msra.mxu0 0.0
        %1067 = vmatprep.subr.mxu0 0.0
        %1068 = vmatpush1.msra.mxu0 0.0
        %1069 = vmatprep.subr.mxu0 0.0
        %1070 = vmatpush1.msra.mxu0 0.0
        %1071 = vmatprep.subr.mxu0 0.0
        %1072 = vmatpush1.msra.mxu0 0.0
        %1073 = vmatprep.subr.mxu0 0.0
        %1074 = vmatpush1.msra.mxu0 0.0
        %1075 = vmatprep.subr.mxu0 0.0
        %1076 = vmatpush1.msra.mxu0 0.0
        %1077 = vmatprep.subr.mxu0 0.0
        %1078 = vmatpush1.msra.mxu0 0.0
        %1079 = vmatprep.subr.mxu0 0.0
        %1080 = vmatpush1.msra.mxu0 0.0
        %1081 = vmatprep.subr.mxu0 0.0
        %1082 = vmatpush1.msra.mxu0 0.0
        %1083 = vmatprep.subr.mxu0 0.0
        %1084 = vmatpush1.msra.mxu0 0.0
        %1085 = vmatprep.mubr.f32.mxu0 0.0
        %1086 = vmatmul.mubr.f32.gmra.mrb[0].mxu0 %v1019
        %v1087 = vpop.f32.mrb[0].mxu0
        %v1088 = vadd.f32 %v1015, %v1087
        %v1089 = vpop.f32.mrb[0].mxu0
        %1090 = vdwg.mxu0
        %1091 = vrot.lane.b32.xlu0 %v604, 112
        %v1092 = vpop.permute.xlu0 %1091
        %1093 = vrot.lane.b32.xlu0 %v604, 80
        %v1094 = vpop.permute.xlu0 %1093
        %v1095 = vsel %vm614, %v1092, 0
        %v1097 = vsel %vm614, %v1094, 0
        %1099 = vmatprep.subr.mxu0 0.0
        %1100 = vmatpush1.xpose.msra.mxu0 %v1097
        %1101 = vmatprep.subr.mxu0 0.0
        %1102 = vmatpush1.xpose.msra.mxu0 0.0
        %1103 = vmatprep.subr.mxu0 0.0
        %1104 = vmatpush1.xpose.msra.mxu0 0.0
        %1105 = vmatprep.subr.mxu0 0.0
        %1106 = vmatpush1.xpose.msra.mxu0 0.0
        %1107 = vmatprep.subr.mxu0 0.0
        %1108 = vmatpush1.xpose.msra.mxu0 0.0
        %1109 = vmatprep.subr.mxu0 0.0
        %1110 = vmatpush1.xpose.msra.mxu0 0.0
        %1111 = vmatprep.subr.mxu0 0.0
        %1112 = vmatpush1.xpose.msra.mxu0 0.0
        %1113 = vmatprep.subr.mxu0 0.0
        %1114 = vmatpush1.xpose.msra.mxu0 0.0
        %1115 = vmatprep.subr.mxu0 0.0
        %1116 = vmatpush1.xpose.msra.mxu0 0.0
        %1117 = vmatprep.subr.mxu0 0.0
        %1118 = vmatpush1.xpose.msra.mxu0 0.0
        %1119 = vmatprep.subr.mxu0 0.0
        %1120 = vmatpush1.xpose.msra.mxu0 0.0
        %1121 = vmatprep.subr.mxu0 0.0
        %1122 = vmatpush1.xpose.msra.mxu0 0.0
        %1123 = vmatprep.subr.mxu0 0.0
        %1124 = vmatpush1.xpose.msra.mxu0 0.0
        %1125 = vmatprep.subr.mxu0 0.0
        %1126 = vmatpush1.xpose.msra.mxu0 0.0
        %1127 = vmatprep.subr.mxu0 0.0
        %1128 = vmatpush1.xpose.msra.mxu0 0.0
        %1129 = vmatprep.subr.mxu0 0.0
        %1130 = vmatpush1.xpose.msra.mxu0 0.0
        %1131 = vmatprep.subr.mxu0 0.0
        %1132 = vmatpush1.xpose.msra.mxu0 0.0
        %1133 = vmatprep.subr.mxu0 0.0
        %1134 = vmatpush1.xpose.msra.mxu0 0.0
        %1135 = vmatprep.subr.mxu0 0.0
        %1136 = vmatpush1.xpose.msra.mxu0 0.0
        %1137 = vmatprep.subr.mxu0 0.0
        %1138 = vmatpush1.xpose.msra.mxu0 0.0
        %1139 = vmatprep.subr.mxu0 0.0
        %1140 = vmatpush1.xpose.msra.mxu0 0.0
        %1141 = vmatprep.subr.mxu0 0.0
        %1142 = vmatpush1.xpose.msra.mxu0 0.0
        %1143 = vmatprep.subr.mxu0 0.0
        %1144 = vmatpush1.xpose.msra.mxu0 0.0
        %1145 = vmatprep.subr.mxu0 0.0
        %1146 = vmatpush1.xpose.msra.mxu0 0.0
        %1147 = vmatprep.subr.mxu0 0.0
        %1148 = vmatpush1.xpose.msra.mxu0 0.0
        %1149 = vmatprep.subr.mxu0 0.0
        %1150 = vmatpush1.xpose.msra.mxu0 0.0
        %1151 = vmatprep.subr.mxu0 0.0
        %1152 = vmatpush1.xpose.msra.mxu0 0.0
        %1153 = vmatprep.subr.mxu0 0.0
        %1154 = vmatpush1.xpose.msra.mxu0 0.0
        %1155 = vmatprep.subr.mxu0 0.0
        %1156 = vmatpush1.xpose.msra.mxu0 0.0
        %1157 = vmatprep.subr.mxu0 0.0
        %1158 = vmatpush1.xpose.msra.mxu0 0.0
        %1159 = vmatprep.subr.mxu0 0.0
        %1160 = vmatpush1.xpose.msra.mxu0 0.0
        %1161 = vmatprep.subr.mxu0 0.0
        %1162 = vmatpush1.xpose.msra.mxu0 0.0
        %1163 = vmatprep.mubr.f32.mxu0 0.0
        %1164 = vmatmul.mubr.f32.gmra.mrb[0].mxu0 %v1095
        %v1165 = vpop.f32.mrb[0].mxu0
        %v1166 = vadd.f32 0.0, %v1165
        %v1167 = vpop.f32.mrb[0].mxu0
        %1168 = vdwg.mxu0
        %v1169 = vmul.f32 %v1166, 0.35355338
        %v1170 = vadd.f32 %v1169, %v521
        %v1171 = vsel %vm614, %v1170, -inf
        %1172 = vmax.xlane.f32.xlu0 %v1171
        %v1173 = vpop.xlane.xlu0 %1172
        %v1174 = vsub.f32 %v1170, %v1173
        %v1175 = vmul.f32 %v1174, 1.442695
        %v1176 = vpow.pop %v1175
        %v1177 = vsel %vm614, %v1176, 0.0
        %1178 = vadd.xlane.f32.xlu0 %v1177
        %v1179 = vpop.xlane.xlu0 %1178
        %v1180 = vrcp.pop %v1179
        %v1181 = vmul.f32 %v1176, %v1180
        %1182 = vrot.lane.b32.xlu0 %v604, 48
        %v1183 = vpop.permute.xlu0 %1182
        %v1186 = vsel %vm614, %v1181, 0
        %1188 = vmatprep.subr.mxu0 0.0
        %1189 = vmatpush1.msra.mxu0 %v1183
        %1190 = vmatprep.subr.mxu0 0.0
        %1191 = vmatpush1.msra.mxu0 0.0
        %1192 = vmatprep.subr.mxu0 0.0
        %1193 = vmatpush1.msra.mxu0 0.0
        %1194 = vmatprep.subr.mxu0 0.0
        %1195 = vmatpush1.msra.mxu0 0.0
        %1196 = vmatprep.subr.mxu0 0.0
        %1197 = vmatpush1.msra.mxu0 0.0
        %1198 = vmatprep.subr.mxu0 0.0
        %1199 = vmatpush1.msra.mxu0 0.0
        %1200 = vmatprep.subr.mxu0 0.0
        %1201 = vmatpush1.msra.mxu0 0.0
        %1202 = vmatprep.subr.mxu0 0.0
        %1203 = vmatpush1.msra.mxu0 0.0
        %1204 = vmatprep.subr.mxu0 0.0
        %1205 = vmatpush1.msra.mxu0 0.0
        %1206 = vmatprep.subr.mxu0 0.0
        %1207 = vmatpush1.msra.mxu0 0.0
        %1208 = vmatprep.subr.mxu0 0.0
        %1209 = vmatpush1.msra.mxu0 0.0
        %1210 = vmatprep.subr.mxu0 0.0
        %1211 = vmatpush1.msra.mxu0 0.0
        %1212 = vmatprep.subr.mxu0 0.0
        %1213 = vmatpush1.msra.mxu0 0.0
        %1214 = vmatprep.subr.mxu0 0.0
        %1215 = vmatpush1.msra.mxu0 0.0
        %1216 = vmatprep.subr.mxu0 0.0
        %1217 = vmatpush1.msra.mxu0 0.0
        %1218 = vmatprep.subr.mxu0 0.0
        %1219 = vmatpush1.msra.mxu0 0.0
        %1220 = vmatprep.subr.mxu0 0.0
        %1221 = vmatpush1.msra.mxu0 0.0
        %1222 = vmatprep.subr.mxu0 0.0
        %1223 = vmatpush1.msra.mxu0 0.0
        %1224 = vmatprep.subr.mxu0 0.0
        %1225 = vmatpush1.msra.mxu0 0.0
        %1226 = vmatprep.subr.mxu0 0.0
        %1227 = vmatpush1.msra.mxu0 0.0
        %1228 = vmatprep.subr.mxu0 0.0
        %1229 = vmatpush1.msra.mxu0 0.0
        %1230 = vmatprep.subr.mxu0 0.0
        %1231 = vmatpush1.msra.mxu0 0.0
        %1232 = vmatprep.subr.mxu0 0.0
        %1233 = vmatpush1.msra.mxu0 0.0
        %1234 = vmatprep.subr.mxu0 0.0
        %1235 = vmatpush1.msra.mxu0 0.0
        %1236 = vmatprep.subr.mxu0 0.0
        %1237 = vmatpush1.msra.mxu0 0.0
        %1238 = vmatprep.subr.mxu0 0.0
        %1239 = vmatpush1.msra.mxu0 0.0
        %1240 = vmatprep.subr.mxu0 0.0
        %1241 = vmatpush1.msra.mxu0 0.0
        %1242 = vmatprep.subr.mxu0 0.0
        %1243 = vmatpush1.msra.mxu0 0.0
        %1244 = vmatprep.subr.mxu0 0.0
        %1245 = vmatpush1.msra.mxu0 0.0
        %1246 = vmatprep.subr.mxu0 0.0
        %1247 = vmatpush1.msra.mxu0 0.0
        %1248 = vmatprep.subr.mxu0 0.0
        %1249 = vmatpush1.msra.mxu0 0.0
        %1250 = vmatprep.subr.mxu0 0.0
        %1251 = vmatpush1.msra.mxu0 0.0
        %1252 = vmatprep.mubr.f32.mxu0 0.0
        %1253 = vmatmul.mubr.f32.gmra.mrb[0].mxu0 %v1186
        %v1254 = vpop.f32.mrb[0].mxu0
        %v1255 = vadd.f32 0.0, %v1254
        %v1256 = vpop.f32.mrb[0].mxu0
        %1257 = vdwg.mxu0
        %v1259 = vsel %vm614, %v1255, 0
        %1261 = vmatprep.subr.mxu0 0.0
        %1262 = vmatpush1.msra.mxu0 %v609
        %1263 = vmatprep.subr.mxu0 0.0
        %1264 = vmatpush1.msra.mxu0 0.0
        %1265 = vmatprep.subr.mxu0 0.0
        %1266 = vmatpush1.msra.mxu0 0.0
        %1267 = vmatprep.subr.mxu0 0.0
        %1268 = vmatpush1.msra.mxu0 0.0
        %1269 = vmatprep.subr.mxu0 0.0
        %1270 = vmatpush1.msra.mxu0 0.0
        %1271 = vmatprep.subr.mxu0 0.0
        %1272 = vmatpush1.msra.mxu0 0.0
        %1273 = vmatprep.subr.mxu0 0.0
        %1274 = vmatpush1.msra.mxu0 0.0
        %1275 = vmatprep.subr.mxu0 0.0
        %1276 = vmatpush1.msra.mxu0 0.0
        %1277 = vmatprep.subr.mxu0 0.0
        %1278 = vmatpush1.msra.mxu0 0.0
        %1279 = vmatprep.subr.mxu0 0.0
        %1280 = vmatpush1.msra.mxu0 0.0
        %1281 = vmatprep.subr.mxu0 0.0
        %1282 = vmatpush1.msra.mxu0 0.0
        %1283 = vmatprep.subr.mxu0 0.0
        %1284 = vmatpush1.msra.mxu0 0.0
        %1285 = vmatprep.subr.mxu0 0.0
        %1286 = vmatpush1.msra.mxu0 0.0
        %1287 = vmatprep.subr.mxu0 0.0
        %1288 = vmatpush1.msra.mxu0 0.0
        %1289 = vmatprep.subr.mxu0 0.0
        %1290 = vmatpush1.msra.mxu0 0.0
        %1291 = vmatprep.subr.mxu0 0.0
        %1292 = vmatpush1.msra.mxu0 0.0
        %1293 = vmatprep.subr.mxu0 0.0
        %1294 = vmatpush1.msra.mxu0 0.0
        %1295 = vmatprep.subr.mxu0 0.0
        %1296 = vmatpush1.msra.mxu0 0.0
        %1297 = vmatprep.subr.mxu0 0.0
        %1298 = vmatpush1.msra.mxu0 0.0
        %1299 = vmatprep.subr.mxu0 0.0
        %1300 = vmatpush1.msra.mxu0 0.0
        %1301 = vmatprep.subr.mxu0 0.0
        %1302 = vmatpush1.msra.mxu0 0.0
        %1303 = vmatprep.subr.mxu0 0.0
        %1304 = vmatpush1.msra.mxu0 0.0
        %1305 = vmatprep.subr.mxu0 0.0
        %1306 = vmatpush1.msra.mxu0 0.0
        %1307 = vmatprep.subr.mxu0 0.0
        %1308 = vmatpush1.msra.mxu0 0.0
        %1309 = vmatprep.subr.mxu0 0.0
        %1310 = vmatpush1.msra.mxu0 0.0
        %1311 = vmatprep.subr.mxu0 0.0
        %1312 = vmatpush1.msra.mxu0 0.0
        %1313 = vmatprep.subr.mxu0 0.0
        %1314 = vmatpush1.msra.mxu0 0.0
        %1315 = vmatprep.subr.mxu0 0.0
        %1316 = vmatpush1.msra.mxu0 0.0
        %1317 = vmatprep.subr.mxu0 0.0
        %1318 = vmatpush1.msra.mxu0 0.0
        %1319 = vmatprep.subr.mxu0 0.0
        %1320 = vmatpush1.msra.mxu0 0.0
        %1321 = vmatprep.subr.mxu0 0.0
        %1322 = vmatpush1.msra.mxu0 0.0
        %1323 = vmatprep.subr.mxu0 0.0
        %1324 = vmatpush1.msra.mxu0 0.0
        %1325 = vmatprep.mubr.f32.mxu0 0.0
        %1326 = vmatmul.mubr.f32.gmra.mrb[0].mxu0 %v1259
        %v1327 = vpop.f32.mrb[0].mxu0
        %v1328 = vadd.f32 0.0, %v1327
        %v1329 = vpop.f32.mrb[0].mxu0
        %1330 = vdwg.mxu0
        %v1331 = vadd.f32 %v1088, %v1328
        %1332 = vrot.lane.b32.xlu0 %v604, 104
        %v1333 = vpop.permute.xlu0 %1332
        %1334 = vrot.lane.b32.xlu0 %v604, 72
        %v1335 = vpop.permute.xlu0 %1334
        %v1336 = vsel %vm614, %v1333, 0
        %v1338 = vsel %vm614, %v1335, 0
        %1340 = vmatprep.subr.mxu0 0.0
        %1341 = vmatpush1.xpose.msra.mxu0 %v1338
        %1342 = vmatprep.subr.mxu0 0.0
        %1343 = vmatpush1.xpose.msra.mxu0 0.0
        %1344 = vmatprep.subr.mxu0 0.0
        %1345 = vmatpush1.xpose.msra.mxu0 0.0
        %1346 = vmatprep.subr.mxu0 0.0
        %1347 = vmatpush1.xpose.msra.mxu0 0.0
        %1348 = vmatprep.subr.mxu0 0.0
        %1349 = vmatpush1.xpose.msra.mxu0 0.0
        %1350 = vmatprep.subr.mxu0 0.0
        %1351 = vmatpush1.xpose.msra.mxu0 0.0
        %1352 = vmatprep.subr.mxu0 0.0
        %1353 = vmatpush1.xpose.msra.mxu0 0.0
        %1354 = vmatprep.subr.mxu0 0.0
        %1355 = vmatpush1.xpose.msra.mxu0 0.0
        %1356 = vmatprep.subr.mxu0 0.0
        %1357 = vmatpush1.xpose.msra.mxu0 0.0
        %1358 = vmatprep.subr.mxu0 0.0
        %1359 = vmatpush1.xpose.msra.mxu0 0.0
        %1360 = vmatprep.subr.mxu0 0.0
        %1361 = vmatpush1.xpose.msra.mxu0 0.0
        %1362 = vmatprep.subr.mxu0 0.0
        %1363 = vmatpush1.xpose.msra.mxu0 0.0
        %1364 = vmatprep.subr.mxu0 0.0
        %1365 = vmatpush1.xpose.msra.mxu0 0.0
        %1366 = vmatprep.subr.mxu0 0.0
        %1367 = vmatpush1.xpose.msra.mxu0 0.0
        %1368 = vmatprep.subr.mxu0 0.0
        %1369 = vmatpush1.xpose.msra.mxu0 0.0
        %1370 = vmatprep.subr.mxu0 0.0
        %1371 = vmatpush1.xpose.msra.mxu0 0.0
        %1372 = vmatprep.subr.mxu0 0.0
        %1373 = vmatpush1.xpose.msra.mxu0 0.0
        %1374 = vmatprep.subr.mxu0 0.0
        %1375 = vmatpush1.xpose.msra.mxu0 0.0
        %1376 = vmatprep.subr.mxu0 0.0
        %1377 = vmatpush1.xpose.msra.mxu0 0.0
        %1378 = vmatprep.subr.mxu0 0.0
        %1379 = vmatpush1.xpose.msra.mxu0 0.0
        %1380 = vmatprep.subr.mxu0 0.0
        %1381 = vmatpush1.xpose.msra.mxu0 0.0
        %1382 = vmatprep.subr.mxu0 0.0
        %1383 = vmatpush1.xpose.msra.mxu0 0.0
        %1384 = vmatprep.subr.mxu0 0.0
        %1385 = vmatpush1.xpose.msra.mxu0 0.0
        %1386 = vmatprep.subr.mxu0 0.0
        %1387 = vmatpush1.xpose.msra.mxu0 0.0
        %1388 = vmatprep.subr.mxu0 0.0
        %1389 = vmatpush1.xpose.msra.mxu0 0.0
        %1390 = vmatprep.subr.mxu0 0.0
        %1391 = vmatpush1.xpose.msra.mxu0 0.0
        %1392 = vmatprep.subr.mxu0 0.0
        %1393 = vmatpush1.xpose.msra.mxu0 0.0
        %1394 = vmatprep.subr.mxu0 0.0
        %1395 = vmatpush1.xpose.msra.mxu0 0.0
        %1396 = vmatprep.subr.mxu0 0.0
        %1397 = vmatpush1.xpose.msra.mxu0 0.0
        %1398 = vmatprep.subr.mxu0 0.0
        %1399 = vmatpush1.xpose.msra.mxu0 0.0
        %1400 = vmatprep.subr.mxu0 0.0
        %1401 = vmatpush1.xpose.msra.mxu0 0.0
        %1402 = vmatprep.subr.mxu0 0.0
        %1403 = vmatpush1.xpose.msra.mxu0 0.0
        %1404 = vmatprep.mubr.f32.mxu0 0.0
        %1405 = vmatmul.mubr.f32.gmra.mrb[0].mxu0 %v1336
        %v1406 = vpop.f32.mrb[0].mxu0
        %v1407 = vadd.f32 0.0, %v1406
        %v1408 = vpop.f32.mrb[0].mxu0
        %1409 = vdwg.mxu0
        %v1410 = vmul.f32 %v1407, 0.35355338
        %v1411 = vadd.f32 %v1410, %v521
        %v1412 = vsel %vm614, %v1411, -inf
        %1413 = vmax.xlane.f32.xlu0 %v1412
        %v1414 = vpop.xlane.xlu0 %1413
        %v1415 = vsub.f32 %v1411, %v1414
        %v1416 = vmul.f32 %v1415, 1.442695
        %v1417 = vpow.pop %v1416
        %v1418 = vsel %vm614, %v1417, 0.0
        %1419 = vadd.xlane.f32.xlu0 %v1418
        %v1420 = vpop.xlane.xlu0 %1419
        %v1421 = vrcp.pop %v1420
        %v1422 = vmul.f32 %v1417, %v1421
        %1423 = vrot.lane.b32.xlu0 %v604, 40
        %v1424 = vpop.permute.xlu0 %1423
        %v1427 = vsel %vm614, %v1422, 0
        %1429 = vmatprep.subr.mxu0 0.0
        %1430 = vmatpush1.msra.mxu0 %v1424
        %1431 = vmatprep.subr.mxu0 0.0
        %1432 = vmatpush1.msra.mxu0 0.0
        %1433 = vmatprep.subr.mxu0 0.0
        %1434 = vmatpush1.msra.mxu0 0.0
        %1435 = vmatprep.subr.mxu0 0.0
        %1436 = vmatpush1.msra.mxu0 0.0
        %1437 = vmatprep.subr.mxu0 0.0
        %1438 = vmatpush1.msra.mxu0 0.0
        %1439 = vmatprep.subr.mxu0 0.0
        %1440 = vmatpush1.msra.mxu0 0.0
        %1441 = vmatprep.subr.mxu0 0.0
        %1442 = vmatpush1.msra.mxu0 0.0
        %1443 = vmatprep.subr.mxu0 0.0
        %1444 = vmatpush1.msra.mxu0 0.0
        %1445 = vmatprep.subr.mxu0 0.0
        %1446 = vmatpush1.msra.mxu0 0.0
        %1447 = vmatprep.subr.mxu0 0.0
        %1448 = vmatpush1.msra.mxu0 0.0
        %1449 = vmatprep.subr.mxu0 0.0
        %1450 = vmatpush1.msra.mxu0 0.0
        %1451 = vmatprep.subr.mxu0 0.0
        %1452 = vmatpush1.msra.mxu0 0.0
        %1453 = vmatprep.subr.mxu0 0.0
        %1454 = vmatpush1.msra.mxu0 0.0
        %1455 = vmatprep.subr.mxu0 0.0
        %1456 = vmatpush1.msra.mxu0 0.0
        %1457 = vmatprep.subr.mxu0 0.0
        %1458 = vmatpush1.msra.mxu0 0.0
        %1459 = vmatprep.subr.mxu0 0.0
        %1460 = vmatpush1.msra.mxu0 0.0
        %1461 = vmatprep.subr.mxu0 0.0
        %1462 = vmatpush1.msra.mxu0 0.0
        %1463 = vmatprep.subr.mxu0 0.0
        %1464 = vmatpush1.msra.mxu0 0.0
        %1465 = vmatprep.subr.mxu0 0.0
        %1466 = vmatpush1.msra.mxu0 0.0
        %1467 = vmatprep.subr.mxu0 0.0
        %1468 = vmatpush1.msra.mxu0 0.0
        %1469 = vmatprep.subr.mxu0 0.0
        %1470 = vmatpush1.msra.mxu0 0.0
        %1471 = vmatprep.subr.mxu0 0.0
        %1472 = vmatpush1.msra.mxu0 0.0
        %1473 = vmatprep.subr.mxu0 0.0
        %1474 = vmatpush1.msra.mxu0 0.0
        %1475 = vmatprep.subr.mxu0 0.0
        %1476 = vmatpush1.msra.mxu0 0.0
        %1477 = vmatprep.subr.mxu0 0.0
        %1478 = vmatpush1.msra.mxu0 0.0
        %1479 = vmatprep.subr.mxu0 0.0
        %1480 = vmatpush1.msra.mxu0 0.0
        %1481 = vmatprep.subr.mxu0 0.0
        %1482 = vmatpush1.msra.mxu0 0.0
        %1483 = vmatprep.subr.mxu0 0.0
        %1484 = vmatpush1.msra.mxu0 0.0
        %1485 = vmatprep.subr.mxu0 0.0
        %1486 = vmatpush1.msra.mxu0 0.0
        %1487 = vmatprep.subr.mxu0 0.0
        %1488 = vmatpush1.msra.mxu0 0.0
        %1489 = vmatprep.subr.mxu0 0.0
        %1490 = vmatpush1.msra.mxu0 0.0
        %1491 = vmatprep.subr.mxu0 0.0
        %1492 = vmatpush1.msra.mxu0 0.0
        %1493 = vmatprep.mubr.f32.mxu0 0.0
        %1494 = vmatmul.mubr.f32.gmra.mrb[0].mxu0 %v1427
        %v1495 = vpop.f32.mrb[0].mxu0
        %v1496 = vadd.f32 0.0, %v1495
        %v1497 = vpop.f32.mrb[0].mxu0
        %1498 = vdwg.mxu0
        %v1500 = vsel %vm614, %v1496, 0
        %1502 = vmatprep.subr.mxu0 0.0
        %1503 = vmatpush1.msra.mxu0 %v610
        %1504 = vmatprep.subr.mxu0 0.0
        %1505 = vmatpush1.msra.mxu0 0.0
        %1506 = vmatprep.subr.mxu0 0.0
        %1507 = vmatpush1.msra.mxu0 0.0
        %1508 = vmatprep.subr.mxu0 0.0
        %1509 = vmatpush1.msra.mxu0 0.0
        %1510 = vmatprep.subr.mxu0 0.0
        %1511 = vmatpush1.msra.mxu0 0.0
        %1512 = vmatprep.subr.mxu0 0.0
        %1513 = vmatpush1.msra.mxu0 0.0
        %1514 = vmatprep.subr.mxu0 0.0
        %1515 = vmatpush1.msra.mxu0 0.0
        %1516 = vmatprep.subr.mxu0 0.0
        %1517 = vmatpush1.msra.mxu0 0.0
        %1518 = vmatprep.subr.mxu0 0.0
        %1519 = vmatpush1.msra.mxu0 0.0
        %1520 = vmatprep.subr.mxu0 0.0
        %1521 = vmatpush1.msra.mxu0 0.0
        %1522 = vmatprep.subr.mxu0 0.0
        %1523 = vmatpush1.msra.mxu0 0.0
        %1524 = vmatprep.subr.mxu0 0.0
        %1525 = vmatpush1.msra.mxu0 0.0
        %1526 = vmatprep.subr.mxu0 0.0
        %1527 = vmatpush1.msra.mxu0 0.0
        %1528 = vmatprep.subr.mxu0 0.0
        %1529 = vmatpush1.msra.mxu0 0.0
        %1530 = vmatprep.subr.mxu0 0.0
        %1531 = vmatpush1.msra.mxu0 0.0
        %1532 = vmatprep.subr.mxu0 0.0
        %1533 = vmatpush1.msra.mxu0 0.0
        %1534 = vmatprep.subr.mxu0 0.0
        %1535 = vmatpush1.msra.mxu0 0.0
        %1536 = vmatprep.subr.mxu0 0.0
        %1537 = vmatpush1.msra.mxu0 0.0
        %1538 = vmatprep.subr.mxu0 0.0
        %1539 = vmatpush1.msra.mxu0 0.0
        %1540 = vmatprep.subr.mxu0 0.0
        %1541 = vmatpush1.msra.mxu0 0.0
        %1542 = vmatprep.subr.mxu0 0.0
        %1543 = vmatpush1.msra.mxu0 0.0
        %1544 = vmatprep.subr.mxu0 0.0
        %1545 = vmatpush1.msra.mxu0 0.0
        %1546 = vmatprep.subr.mxu0 0.0
        %1547 = vmatpush1.msra.mxu0 0.0
        %1548 = vmatprep.subr.mxu0 0.0
        %1549 = vmatpush1.msra.mxu0 0.0
        %1550 = vmatprep.subr.mxu0 0.0
        %1551 = vmatpush1.msra.mxu0 0.0
        %1552 = vmatprep.subr.mxu0 0.0
        %1553 = vmatpush1.msra.mxu0 0.0
        %1554 = vmatprep.subr.mxu0 0.0
        %1555 = vmatpush1.msra.mxu0 0.0
        %1556 = vmatprep.subr.mxu0 0.0
        %1557 = vmatpush1.msra.mxu0 0.0
        %1558 = vmatprep.subr.mxu0 0.0
        %1559 = vmatpush1.msra.mxu0 0.0
        %1560 = vmatprep.subr.mxu0 0.0
        %1561 = vmatpush1.msra.mxu0 0.0
        %1562 = vmatprep.subr.mxu0 0.0
        %1563 = vmatpush1.msra.mxu0 0.0
        %1564 = vmatprep.subr.mxu0 0.0
        %1565 = vmatpush1.msra.mxu0 0.0
        %1566 = vmatprep.mubr.f32.mxu0 0.0
        %1567 = vmatmul.mubr.f32.gmra.mrb[0].mxu0 %v1500
        %v1568 = vpop.f32.mrb[0].mxu0
        %v1569 = vadd.f32 0.0, %v1568
        %v1570 = vpop.f32.mrb[0].mxu0
        %1571 = vdwg.mxu0
        %v1572 = vadd.f32 %v1331, %v1569
        %v1573 = vld [vmem:[%s5] sm:$0x1]
        %v1575 = vlaneseq
        %v1576 = vshrl.u32 %v1575, 7
        %v1577 = vsub.s32 0, %v1576
        %v1578 = vrot.slane %v1573, %v1577
        %v1580 = vadd.f32 %v1572, %v1578
        %v1581 = vadd.f32 %v520, %v1580
        %v1582 = vld [vmem:[%s10] sm:$0x1]
        %v1583 = vld [vmem:[%s11] sm:$0x1]
        %v1584 = vsel %vm533, %v1581, 0.0
        %1585 = vadd.xlane.f32.xlu0 %v1584
        %v1586 = vpop.xlane.xlu0 %1585
        %v1587 = vrcp.pop 32.0
        %v1588 = vmul.f32 %v1586, %v1587
        %v1589 = vsub.f32 %v1581, %v1588
        %v1590 = vmul.f32 %v1589, %v1589
        %v1591 = vsel %vm533, %v1590, 0.0
        %1592 = vadd.xlane.f32.xlu0 %v1591
        %v1593 = vpop.xlane.xlu0 %1592
        %v1594 = vmul.f32 %v1593, %v1587
        %v1595 = vadd.f32 %v1594, 1e-05
        %v1596 = vrsqrt.pop %v1595
        %v1597 = vmul.f32 %v1589, %v1596
        %v1599 = vlaneseq
        %v1600 = vshrl.u32 %v1599, 7
        %v1601 = vsub.s32 0, %v1600
        %v1602 = vrot.slane %v1582, %v1601
        %v1604 = vmul.f32 %v1597, %v1602
        %v1606 = vlaneseq
        %v1607 = vshrl.u32 %v1606, 7
        %v1608 = vsub.s32 0, %v1607
        %v1609 = vrot.slane %v1583, %v1608
        %v1611 = vadd.f32 %v1604, %v1609
        %v1612 = vld [vmem:[%s6] sm:$0xff]
        %v1613 = vld [vmem:[%s6 + $0x8] sm:$0xff]
        %v1614 = vld [vmem:[%s6 + $0x10] sm:$0xff]
        %v1615 = vld [vmem:[%s6 + $0x18] sm:$0xff]
        %v1616 = vld [vmem:[%s7] sm:$0x1]
        %v1618 = vlaneseq
        %v1619 = vshrl.u32 %v1618, 7
        %v1620 = vsub.s32 0, %v1619
        %v1621 = vrot.slane %v1616, %v1620
        %v1624 = vsel %vm533, %v1611, 0
        %1626 = vmatprep.subr.mxu0 0.0
        %1627 = vmatpush1.msra.mxu0 %v1612
        %1628 = vmatprep.subr.mxu0 0.0
        %1629 = vmatpush1.msra.mxu0 %v1613
        %1630 = vmatprep.subr.mxu0 0.0
        %1631 = vmatpush1.msra.mxu0 %v1614
        %1632 = vmatprep.subr.mxu0 0.0
        %1633 = vmatpush1.msra.mxu0 %v1615
        %1634 = vmatprep.subr.mxu0 0.0
        %1635 = vmatpush1.msra.mxu0 0.0
        %1636 = vmatprep.subr.mxu0 0.0
        %1637 = vmatpush1.msra.mxu0 0.0
        %1638 = vmatprep.subr.mxu0 0.0
        %1639 = vmatpush1.msra.mxu0 0.0
        %1640 = vmatprep.subr.mxu0 0.0
        %1641 = vmatpush1.msra.mxu0 0.0
        %1642 = vmatprep.subr.mxu0 0.0
        %1643 = vmatpush1.msra.mxu0 0.0
        %1644 = vmatprep.subr.mxu0 0.0
        %1645 = vmatpush1.msra.mxu0 0.0
        %1646 = vmatprep.subr.mxu0 0.0
        %1647 = vmatpush1.msra.mxu0 0.0
        %1648 = vmatprep.subr.mxu0 0.0
        %1649 = vmatpush1.msra.mxu0 0.0
        %1650 = vmatprep.subr.mxu0 0.0
        %1651 = vmatpush1.msra.mxu0 0.0
        %1652 = vmatprep.subr.mxu0 0.0
        %1653 = vmatpush1.msra.mxu0 0.0
        %1654 = vmatprep.subr.mxu0 0.0
        %1655 = vmatpush1.msra.mxu0 0.0
        %1656 = vmatprep.subr.mxu0 0.0
        %1657 = vmatpush1.msra.mxu0 0.0
        %1658 = vmatprep.subr.mxu0 0.0
        %1659 = vmatpush1.msra.mxu0 0.0
        %1660 = vmatprep.subr.mxu0 0.0
        %1661 = vmatpush1.msra.mxu0 0.0
        %1662 = vmatprep.subr.mxu0 0.0
        %1663 = vmatpush1.msra.mxu0 0.0
        %1664 = vmatprep.subr.mxu0 0.0
        %1665 = vmatpush1.msra.mxu0 0.0
        %1666 = vmatprep.subr.mxu0 0.0
        %1667 = vmatpush1.msra.mxu0 0.0
        %1668 = vmatprep.subr.mxu0 0.0
        %1669 = vmatpush1.msra.mxu0 0.0
        %1670 = vmatprep.subr.mxu0 0.0
        %1671 = vmatpush1.msra.mxu0 0.0
        %1672 = vmatprep.subr.mxu0 0.0
        %1673 = vmatpush1.msra.mxu0 0.0
        %1674 = vmatprep.subr.mxu0 0.0
        %1675 = vmatpush1.msra.mxu0 0.0
        %1676 = vmatprep.subr.mxu0 0.0
        %1677 = vmatpush1.msra.mxu0 0.0
        %1678 = vmatprep.subr.mxu0 0.0
        %1679 = vmatpush1.msra.mxu0 0.0
        %1680 = vmatprep.subr.mxu0 0.0
        %1681 = vmatpush1.msra.mxu0 0.0
        %1682 = vmatprep.subr.mxu0 0.0
        %1683 = vmatpush1.msra.mxu0 0.0
        %1684 = vmatprep.subr.mxu0 0.0
        %1685 = vmatpush1.msra.mxu0 0.0
        %1686 = vmatprep.subr.mxu0 0.0
        %1687 = vmatpush1.msra.mxu0 0.0
        %1688 = vmatprep.subr.mxu0 0.0
        %1689 = vmatpush1.msra.mxu0 0.0
        %1690 = vmatprep.mubr.f32.mxu0 0.0
        %1691 = vmatmul.mubr.f32.gmra.mrb[0].mxu0 %v1624
        %v1692 = vpop.f32.mrb[0].mxu0
        %v1693 = vadd.f32 %v1621, %v1692
        %v1694 = vpop.f32.mrb[0].mxu0
        %1695 = vdwg.mxu0
        %v1696 = vmax.f32 %v1693, 0.0
        %v1697 = vld [vmem:[%s8] sm:$0xff]
        %v1698 = vld [vmem:[%s8 + $0x8] sm:$0xff]
        %v1699 = vld [vmem:[%s8 + $0x10] sm:$0xff]
        %v1700 = vld [vmem:[%s8 + $0x18] sm:$0xff]
        %v1701 = vld [vmem:[%s8 + $0x20] sm:$0xff]
        %v1702 = vld [vmem:[%s8 + $0x28] sm:$0xff]
        %v1703 = vld [vmem:[%s8 + $0x30] sm:$0xff]
        %v1704 = vld [vmem:[%s8 + $0x38] sm:$0xff]
        %v1705 = vld [vmem:[%s9] sm:$0x1]
        %v1707 = vlaneseq
        %v1708 = vshrl.u32 %v1707, 7
        %v1709 = vsub.s32 0, %v1708
        %v1710 = vrot.slane %v1705, %v1709
        %vm1712 = vcmask 523264
        %v1714 = vsel %vm1712, %v1696, 0
        %1716 = vmatprep.subr.mxu0 0.0
        %1717 = vmatpush1.msra.mxu0 %v1697
        %1718 = vmatprep.subr.mxu0 0.0
        %1719 = vmatpush1.msra.mxu0 %v1698
        %1720 = vmatprep.subr.mxu0 0.0
        %1721 = vmatpush1.msra.mxu0 %v1699
        %1722 = vmatprep.subr.mxu0 0.0
        %1723 = vmatpush1.msra.mxu0 %v1700
        %1724 = vmatprep.subr.mxu0 0.0
        %1725 = vmatpush1.msra.mxu0 %v1701
        %1726 = vmatprep.subr.mxu0 0.0
        %1727 = vmatpush1.msra.mxu0 %v1702
        %1728 = vmatprep.subr.mxu0 0.0
        %1729 = vmatpush1.msra.mxu0 %v1703
        %1730 = vmatprep.subr.mxu0 0.0
        %1731 = vmatpush1.msra.mxu0 %v1704
        %1732 = vmatprep.subr.mxu0 0.0
        %1733 = vmatpush1.msra.mxu0 0.0
        %1734 = vmatprep.subr.mxu0 0.0
        %1735 = vmatpush1.msra.mxu0 0.0
        %1736 = vmatprep.subr.mxu0 0.0
        %1737 = vmatpush1.msra.mxu0 0.0
        %1738 = vmatprep.subr.mxu0 0.0
        %1739 = vmatpush1.msra.mxu0 0.0
        %1740 = vmatprep.subr.mxu0 0.0
        %1741 = vmatpush1.msra.mxu0 0.0
        %1742 = vmatprep.subr.mxu0 0.0
        %1743 = vmatpush1.msra.mxu0 0.0
        %1744 = vmatprep.subr.mxu0 0.0
        %1745 = vmatpush1.msra.mxu0 0.0
        %1746 = vmatprep.subr.mxu0 0.0
        %1747 = vmatpush1.msra.mxu0 0.0
        %1748 = vmatprep.subr.mxu0 0.0
        %1749 = vmatpush1.msra.mxu0 0.0
        %1750 = vmatprep.subr.mxu0 0.0
        %1751 = vmatpush1.msra.mxu0 0.0
        %1752 = vmatprep.subr.mxu0 0.0
        %1753 = vmatpush1.msra.mxu0 0.0
        %1754 = vmatprep.subr.mxu0 0.0
        %1755 = vmatpush1.msra.mxu0 0.0
        %1756 = vmatprep.subr.mxu0 0.0
        %1757 = vmatpush1.msra.mxu0 0.0
        %1758 = vmatprep.subr.mxu0 0.0
        %1759 = vmatpush1.msra.mxu0 0.0
        %1760 = vmatprep.subr.mxu0 0.0
        %1761 = vmatpush1.msra.mxu0 0.0
        %1762 = vmatprep.subr.mxu0 0.0
        %1763 = vmatpush1.msra.mxu0 0.0
        %1764 = vmatprep.subr.mxu0 0.0
        %1765 = vmatpush1.msra.mxu0 0.0
        %1766 = vmatprep.subr.mxu0 0.0
        %1767 = vmatpush1.msra.mxu0 0.0
        %1768 = vmatprep.subr.mxu0 0.0
        %1769 = vmatpush1.msra.mxu0 0.0
        %1770 = vmatprep.subr.mxu0 0.0
        %1771 = vmatpush1.msra.mxu0 0.0
        %1772 = vmatprep.subr.mxu0 0.0
        %1773 = vmatpush1.msra.mxu0 0.0
        %1774 = vmatprep.subr.mxu0 0.0
        %1775 = vmatpush1.msra.mxu0 0.0
        %1776 = vmatprep.subr.mxu0 0.0
        %1777 = vmatpush1.msra.mxu0 0.0
        %1778 = vmatprep.subr.mxu0 0.0
        %1779 = vmatpush1.msra.mxu0 0.0
        %1780 = vmatprep.mubr.f32.mxu0 0.0
        %1781 = vmatmul.mubr.f32.gmra.mrb[0].mxu0 %v1714
        %v1782 = vpop.f32.mrb[0].mxu0
        %v1783 = vadd.f32 %v1710, %v1782
        %v1784 = vpop.f32.mrb[0].mxu0
        %1785 = vdwg.mxu0
        %v1786 = vadd.f32 %v1611, %v1783
        %v1787 = vld [vmem:[%s12] sm:$0x1]
        %v1788 = vld [vmem:[%s13] sm:$0x1]
        %v1789 = vsel %vm533, %v1786, 0.0
        %1790 = vadd.xlane.f32.xlu0 %v1789
        %v1791 = vpop.xlane.xlu0 %1790
        %v1792 = vmul.f32 %v1791, %v1587
        %v1793 = vsub.f32 %v1786, %v1792
        %v1794 = vmul.f32 %v1793, %v1793
        %v1795 = vsel %vm533, %v1794, 0.0
        %1796 = vadd.xlane.f32.xlu0 %v1795
        %v1797 = vpop.xlane.xlu0 %1796
        %v1798 = vmul.f32 %v1797, %v1587
        %v1799 = vadd.f32 %v1798, 1e-05
        %v1800 = vrsqrt.pop %v1799
        %v1801 = vmul.f32 %v1793, %v1800
        %v1803 = vlaneseq
        %v1804 = vshrl.u32 %v1803, 7
        %v1805 = vsub.s32 0, %v1804
        %v1806 = vrot.slane %v1787, %v1805
        %v1808 = vmul.f32 %v1801, %v1806
        %v1810 = vlaneseq
        %v1811 = vshrl.u32 %v1810, 7
        %v1812 = vsub.s32 0, %v1811
        %v1813 = vrot.slane %v1788, %v1812
        %v1815 = vadd.f32 %v1808, %v1813
        %s1816 = scalar_lea.vmem %s2, 32
        %v1817 = vld [vmem:[%s1816] sm:$0xff]
        %v1818 = vld [vmem:[%s1816 + $0x8] sm:$0xff]
        %v1819 = vld [vmem:[%s1816 + $0x10] sm:$0xff]
        %v1820 = vld [vmem:[%s1816 + $0x18] sm:$0xff]
        %s1821 = scalar_lea.vmem %s3, 1
        %v1822 = vld [vmem:[%s1821] sm:$0x1]
        %v1824 = vlaneseq
        %v1825 = vshrl.u32 %v1824, 7
        %v1826 = vsub.s32 0, %v1825
        %v1827 = vrot.slane %v1822, %v1826
        %v1830 = vsel %vm533, %v1815, 0
        %1832 = vmatprep.subr.mxu0 0.0
        %1833 = vmatpush1.msra.mxu0 %v1817
        %1834 = vmatprep.subr.mxu0 0.0
        %1835 = vmatpush1.msra.mxu0 %v1818
        %1836 = vmatprep.subr.mxu0 0.0
        %1837 = vmatpush1.msra.mxu0 %v1819
        %1838 = vmatprep.subr.mxu0 0.0
        %1839 = vmatpush1.msra.mxu0 %v1820
        %1840 = vmatprep.subr.mxu0 0.0
        %1841 = vmatpush1.msra.mxu0 0.0
        %1842 = vmatprep.subr.mxu0 0.0
        %1843 = vmatpush1.msra.mxu0 0.0
        %1844 = vmatprep.subr.mxu0 0.0
        %1845 = vmatpush1.msra.mxu0 0.0
        %1846 = vmatprep.subr.mxu0 0.0
        %1847 = vmatpush1.msra.mxu0 0.0
        %1848 = vmatprep.subr.mxu0 0.0
        %1849 = vmatpush1.msra.mxu0 0.0
        %1850 = vmatprep.subr.mxu0 0.0
        %1851 = vmatpush1.msra.mxu0 0.0
        %1852 = vmatprep.subr.mxu0 0.0
        %1853 = vmatpush1.msra.mxu0 0.0
        %1854 = vmatprep.subr.mxu0 0.0
        %1855 = vmatpush1.msra.mxu0 0.0
        %1856 = vmatprep.subr.mxu0 0.0
        %1857 = vmatpush1.msra.mxu0 0.0
        %1858 = vmatprep.subr.mxu0 0.0
        %1859 = vmatpush1.msra.mxu0 0.0
        %1860 = vmatprep.subr.mxu0 0.0
        %1861 = vmatpush1.msra.mxu0 0.0
        %1862 = vmatprep.subr.mxu0 0.0
        %1863 = vmatpush1.msra.mxu0 0.0
        %1864 = vmatprep.subr.mxu0 0.0
        %1865 = vmatpush1.msra.mxu0 0.0
        %1866 = vmatprep.subr.mxu0 0.0
        %1867 = vmatpush1.msra.mxu0 0.0
        %1868 = vmatprep.subr.mxu0 0.0
        %1869 = vmatpush1.msra.mxu0 0.0
        %1870 = vmatprep.subr.mxu0 0.0
        %1871 = vmatpush1.msra.mxu0 0.0
        %1872 = vmatprep.subr.mxu0 0.0
        %1873 = vmatpush1.msra.mxu0 0.0
        %1874 = vmatprep.subr.mxu0 0.0
        %1875 = vmatpush1.msra.mxu0 0.0
        %1876 = vmatprep.subr.mxu0 0.0
        %1877 = vmatpush1.msra.mxu0 0.0
        %1878 = vmatprep.subr.mxu0 0.0
        %1879 = vmatpush1.msra.mxu0 0.0
        %1880 = vmatprep.subr.mxu0 0.0
        %1881 = vmatpush1.msra.mxu0 0.0
        %1882 = vmatprep.subr.mxu0 0.0
        %1883 = vmatpush1.msra.mxu0 0.0
        %1884 = vmatprep.subr.mxu0 0.0
        %1885 = vmatpush1.msra.mxu0 0.0
        %1886 = vmatprep.subr.mxu0 0.0
        %1887 = vmatpush1.msra.mxu0 0.0
        %1888 = vmatprep.subr.mxu0 0.0
        %1889 = vmatpush1.msra.mxu0 0.0
        %1890 = vmatprep.subr.mxu0 0.0
        %1891 = vmatpush1.msra.mxu0 0.0
        %1892 = vmatprep.subr.mxu0 0.0
        %1893 = vmatpush1.msra.mxu0 0.0
        %1894 = vmatprep.subr.mxu0 0.0
        %1895 = vmatpush1.msra.mxu0 0.0
        %1896 = vmatprep.mubr.f32.mxu0 0.0
        %1897 = vmatmul.mubr.f32.gmra.mrb[0].mxu0 %v1830
        %v1898 = vpop.f32.mrb[0].mxu0
        %v1899 = vadd.f32 %v1827, %v1898
        %v1900 = vpop.f32.mrb[0].mxu0
        %1901 = vdwg.mxu0
        %s1902 = scalar_lea.vmem %s4, 32
        %v1903 = vld [vmem:[%s1902] sm:$0xff]
        %v1904 = vld [vmem:[%s1902 + $0x8] sm:$0xff]
        %v1905 = vld [vmem:[%s1902 + $0x10] sm:$0xff]
        %v1906 = vld [vmem:[%s1902 + $0x18] sm:$0xff]
        %1908 = vrot.lane.b32.xlu0 %v1899, 96
        %v1909 = vpop.permute.xlu0 %1908
        %v1910 = vsel %vm614, %v1899, 0
        %v1912 = vsel %vm614, %v1909, 0
        %1914 = vmatprep.subr.mxu0 0.0
        %1915 = vmatpush1.xpose.msra.mxu0 %v1912
        %1916 = vmatprep.subr.mxu0 0.0
        %1917 = vmatpush1.xpose.msra.mxu0 0.0
        %1918 = vmatprep.subr.mxu0 0.0
        %1919 = vmatpush1.xpose.msra.mxu0 0.0
        %1920 = vmatprep.subr.mxu0 0.0
        %1921 = vmatpush1.xpose.msra.mxu0 0.0
        %1922 = vmatprep.subr.mxu0 0.0
        %1923 = vmatpush1.xpose.msra.mxu0 0.0
        %1924 = vmatprep.subr.mxu0 0.0
        %1925 = vmatpush1.xpose.msra.mxu0 0.0
        %1926 = vmatprep.subr.mxu0 0.0
        %1927 = vmatpush1.xpose.msra.mxu0 0.0
        %1928 = vmatprep.subr.mxu0 0.0
        %1929 = vmatpush1.xpose.msra.mxu0 0.0
        %1930 = vmatprep.subr.mxu0 0.0
        %1931 = vmatpush1.xpose.msra.mxu0 0.0
        %1932 = vmatprep.subr.mxu0 0.0
        %1933 = vmatpush1.xpose.msra.mxu0 0.0
        %1934 = vmatprep.subr.mxu0 0.0
        %1935 = vmatpush1.xpose.msra.mxu0 0.0
        %1936 = vmatprep.subr.mxu0 0.0
        %1937 = vmatpush1.xpose.msra.mxu0 0.0
        %1938 = vmatprep.subr.mxu0 0.0
        %1939 = vmatpush1.xpose.msra.mxu0 0.0
        %1940 = vmatprep.subr.mxu0 0.0
        %1941 = vmatpush1.xpose.msra.mxu0 0.0
        %1942 = vmatprep.subr.mxu0 0.0
        %1943 = vmatpush1.xpose.msra.mxu0 0.0
        %1944 = vmatprep.subr.mxu0 0.0
        %1945 = vmatpush1.xpose.msra.mxu0 0.0
        %1946 = vmatprep.subr.mxu0 0.0
        %1947 = vmatpush1.xpose.msra.mxu0 0.0
        %1948 = vmatprep.subr.mxu0 0.0
        %1949 = vmatpush1.xpose.msra.mxu0 0.0
        %1950 = vmatprep.subr.mxu0 0.0
        %1951 = vmatpush1.xpose.msra.mxu0 0.0
        %1952 = vmatprep.subr.mxu0 0.0
        %1953 = vmatpush1.xpose.msra.mxu0 0.0
        %1954 = vmatprep.subr.mxu0 0.0
        %1955 = vmatpush1.xpose.msra.mxu0 0.0
        %1956 = vmatprep.subr.mxu0 0.0
        %1957 = vmatpush1.xpose.msra.mxu0 0.0
        %1958 = vmatprep.subr.mxu0 0.0
        %1959 = vmatpush1.xpose.msra.mxu0 0.0
        %1960 = vmatprep.subr.mxu0 0.0
        %1961 = vmatpush1.xpose.msra.mxu0 0.0
        %1962 = vmatprep.subr.mxu0 0.0
        %1963 = vmatpush1.xpose.msra.mxu0 0.0
        %1964 = vmatprep.subr.mxu0 0.0
        %1965 = vmatpush1.xpose.msra.mxu0 0.0
        %1966 = vmatprep.subr.mxu0 0.0
        %1967 = vmatpush1.xpose.msra.mxu0 0.0
        %1968 = vmatprep.subr.mxu0 0.0
        %1969 = vmatpush1.xpose.msra.mxu0 0.0
        %1970 = vmatprep.subr.mxu0 0.0
        %1971 = vmatpush1.xpose.msra.mxu0 0.0
        %1972 = vmatprep.subr.mxu0 0.0
        %1973 = vmatpush1.xpose.msra.mxu0 0.0
        %1974 = vmatprep.subr.mxu0 0.0
        %1975 = vmatpush1.xpose.msra.mxu0 0.0
        %1976 = vmatprep.subr.mxu0 0.0
        %1977 = vmatpush1.xpose.msra.mxu0 0.0
        %1978 = vmatprep.mubr.f32.mxu0 0.0
        %1979 = vmatmul.mubr.f32.gmra.mrb[0].mxu0 %v1910
        %v1980 = vpop.f32.mrb[0].mxu0
        %v1981 = vadd.f32 0.0, %v1980
        %v1982 = vpop.f32.mrb[0].mxu0
        %1983 = vdwg.mxu0
        %v1984 = vmul.f32 %v1981, 0.35355338
        %v1985 = vadd.f32 %v1984, %v521
        %v1986 = vsel %vm614, %v1985, -inf
        %1987 = vmax.xlane.f32.xlu0 %v1986
        %v1988 = vpop.xlane.xlu0 %1987
        %v1989 = vsub.f32 %v1985, %v1988
        %v1990 = vmul.f32 %v1989, 1.442695
        %v1991 = vpow.pop %v1990
        %v1992 = vsel %vm614, %v1991, 0.0
        %1993 = vadd.xlane.f32.xlu0 %v1992
        %v1994 = vpop.xlane.xlu0 %1993
        %v1995 = vrcp.pop %v1994
        %v1996 = vmul.f32 %v1991, %v1995
        %1997 = vrot.lane.b32.xlu0 %v1899, 64
        %v1998 = vpop.permute.xlu0 %1997
        %v2001 = vsel %vm614, %v1996, 0
        %2003 = vmatprep.subr.mxu0 0.0
        %2004 = vmatpush1.msra.mxu0 %v1998
        %2005 = vmatprep.subr.mxu0 0.0
        %2006 = vmatpush1.msra.mxu0 0.0
        %2007 = vmatprep.subr.mxu0 0.0
        %2008 = vmatpush1.msra.mxu0 0.0
        %2009 = vmatprep.subr.mxu0 0.0
        %2010 = vmatpush1.msra.mxu0 0.0
        %2011 = vmatprep.subr.mxu0 0.0
        %2012 = vmatpush1.msra.mxu0 0.0
        %2013 = vmatprep.subr.mxu0 0.0
        %2014 = vmatpush1.msra.mxu0 0.0
        %2015 = vmatprep.subr.mxu0 0.0
        %2016 = vmatpush1.msra.mxu0 0.0
        %2017 = vmatprep.subr.mxu0 0.0
        %2018 = vmatpush1.msra.mxu0 0.0
        %2019 = vmatprep.subr.mxu0 0.0
        %2020 = vmatpush1.msra.mxu0 0.0
        %2021 = vmatprep.subr.mxu0 0.0
        %2022 = vmatpush1.msra.mxu0 0.0
        %2023 = vmatprep.subr.mxu0 0.0
        %2024 = vmatpush1.msra.mxu0 0.0
        %2025 = vmatprep.subr.mxu0 0.0
        %2026 = vmatpush1.msra.mxu0 0.0
        %2027 = vmatprep.subr.mxu0 0.0
        %2028 = vmatpush1.msra.mxu0 0.0
        %2029 = vmatprep.subr.mxu0 0.0
        %2030 = vmatpush1.msra.mxu0 0.0
        %2031 = vmatprep.subr.mxu0 0.0
        %2032 = vmatpush1.msra.mxu0 0.0
        %2033 = vmatprep.subr.mxu0 0.0
        %2034 = vmatpush1.msra.mxu0 0.0
        %2035 = vmatprep.subr.mxu0 0.0
        %2036 = vmatpush1.msra.mxu0 0.0
        %2037 = vmatprep.subr.mxu0 0.0
        %2038 = vmatpush1.msra.mxu0 0.0
        %2039 = vmatprep.subr.mxu0 0.0
        %2040 = vmatpush1.msra.mxu0 0.0
        %2041 = vmatprep.subr.mxu0 0.0
        %2042 = vmatpush1.msra.mxu0 0.0
        %2043 = vmatprep.subr.mxu0 0.0
        %2044 = vmatpush1.msra.mxu0 0.0
        %2045 = vmatprep.subr.mxu0 0.0
        %2046 = vmatpush1.msra.mxu0 0.0
        %2047 = vmatprep.subr.mxu0 0.0
        %2048 = vmatpush1.msra.mxu0 0.0
        %2049 = vmatprep.subr.mxu0 0.0
        %2050 = vmatpush1.msra.mxu0 0.0
        %2051 = vmatprep.subr.mxu0 0.0
        %2052 = vmatpush1.msra.mxu0 0.0
        %2053 = vmatprep.subr.mxu0 0.0
        %2054 = vmatpush1.msra.mxu0 0.0
        %2055 = vmatprep.subr.mxu0 0.0
        %2056 = vmatpush1.msra.mxu0 0.0
        %2057 = vmatprep.subr.mxu0 0.0
        %2058 = vmatpush1.msra.mxu0 0.0
        %2059 = vmatprep.subr.mxu0 0.0
        %2060 = vmatpush1.msra.mxu0 0.0
        %2061 = vmatprep.subr.mxu0 0.0
        %2062 = vmatpush1.msra.mxu0 0.0
        %2063 = vmatprep.subr.mxu0 0.0
        %2064 = vmatpush1.msra.mxu0 0.0
        %2065 = vmatprep.subr.mxu0 0.0
        %2066 = vmatpush1.msra.mxu0 0.0
        %2067 = vmatprep.mubr.f32.mxu0 0.0
        %2068 = vmatmul.mubr.f32.gmra.mrb[0].mxu0 %v2001
        %v2069 = vpop.f32.mrb[0].mxu0
        %v2070 = vadd.f32 0.0, %v2069
        %v2071 = vpop.f32.mrb[0].mxu0
        %2072 = vdwg.mxu0
        %2073 = vrot.lane.b32.xlu0 %v1899, 120
        %v2074 = vpop.permute.xlu0 %2073
        %2075 = vrot.lane.b32.xlu0 %v1899, 88
        %v2076 = vpop.permute.xlu0 %2075
        %v2077 = vsel %vm614, %v2074, 0
        %v2079 = vsel %vm614, %v2076, 0
        %2081 = vmatprep.subr.mxu0 0.0
        %2082 = vmatpush1.xpose.msra.mxu0 %v2079
        %2083 = vmatprep.subr.mxu0 0.0
        %2084 = vmatpush1.xpose.msra.mxu0 0.0
        %2085 = vmatprep.subr.mxu0 0.0
        %2086 = vmatpush1.xpose.msra.mxu0 0.0
        %2087 = vmatprep.subr.mxu0 0.0
        %2088 = vmatpush1.xpose.msra.mxu0 0.0
        %2089 = vmatprep.subr.mxu0 0.0
        %2090 = vmatpush1.xpose.msra.mxu0 0.0
        %2091 = vmatprep.subr.mxu0 0.0
        %2092 = vmatpush1.xpose.msra.mxu0 0.0
        %2093 = vmatprep.subr.mxu0 0.0
        %2094 = vmatpush1.xpose.msra.mxu0 0.0
        %2095 = vmatprep.subr.mxu0 0.0
        %2096 = vmatpush1.xpose.msra.mxu0 0.0
        %2097 = vmatprep.subr.mxu0 0.0
        %2098 = vmatpush1.xpose.msra.mxu0 0.0
        %2099 = vmatprep.subr.mxu0 0.0
        %2100 = vmatpush1.xpose.msra.mxu0 0.0
        %2101 = vmatprep.subr.mxu0 0.0
        %2102 = vmatpush1.xpose.msra.mxu0 0.0
        %2103 = vmatprep.subr.mxu0 0.0
        %2104 = vmatpush1.xpose.msra.mxu0 0.0
        %2105 = vmatprep.subr.mxu0 0.0
        %2106 = vmatpush1.xpose.msra.mxu0 0.0
        %2107 = vmatprep.subr.mxu0 0.0
        %2108 = vmatpush1.xpose.msra.mxu0 0.0
        %2109 = vmatprep.subr.mxu0 0.0
        %2110 = vmatpush1.xpose.msra.mxu0 0.0
        %2111 = vmatprep.subr.mxu0 0.0
        %2112 = vmatpush1.xpose.msra.mxu0 0.0
        %2113 = vmatprep.subr.mxu0 0.0
        %2114 = vmatpush1.xpose.msra.mxu0 0.0
        %2115 = vmatprep.subr.mxu0 0.0
        %2116 = vmatpush1.xpose.msra.mxu0 0.0
        %2117 = vmatprep.subr.mxu0 0.0
        %2118 = vmatpush1.xpose.msra.mxu0 0.0
        %2119 = vmatprep.subr.mxu0 0.0
        %2120 = vmatpush1.xpose.msra.mxu0 0.0
        %2121 = vmatprep.subr.mxu0 0.0
        %2122 = vmatpush1.xpose.msra.mxu0 0.0
        %2123 = vmatprep.subr.mxu0 0.0
        %2124 = vmatpush1.xpose.msra.mxu0 0.0
        %2125 = vmatprep.subr.mxu0 0.0
        %2126 = vmatpush1.xpose.msra.mxu0 0.0
        %2127 = vmatprep.subr.mxu0 0.0
        %2128 = vmatpush1.xpose.msra.mxu0 0.0
        %2129 = vmatprep.subr.mxu0 0.0
        %2130 = vmatpush1.xpose.msra.mxu0 0.0
        %2131 = vmatprep.subr.mxu0 0.0
        %2132 = vmatpush1.xpose.msra.mxu0 0.0
        %2133 = vmatprep.subr.mxu0 0.0
        %2134 = vmatpush1.xpose.msra.mxu0 0.0
        %2135 = vmatprep.subr.mxu0 0.0
        %2136 = vmatpush1.xpose.msra.mxu0 0.0
        %2137 = vmatprep.subr.mxu0 0.0
        %2138 = vmatpush1.xpose.msra.mxu0 0.0
        %2139 = vmatprep.subr.mxu0 0.0
        %2140 = vmatpush1.xpose.msra.mxu0 0.0
        %2141 = vmatprep.subr.mxu0 0.0
        %2142 = vmatpush1.xpose.msra.mxu0 0.0
        %2143 = vmatprep.subr.mxu0 0.0
        %2144 = vmatpush1.xpose.msra.mxu0 0.0
        %2145 = vmatprep.mubr.f32.mxu0 0.0
        %2146 = vmatmul.mubr.f32.gmra.mrb[0].mxu0 %v2077
        %v2147 = vpop.f32.mrb[0].mxu0
        %v2148 = vadd.f32 0.0, %v2147
        %v2149 = vpop.f32.mrb[0].mxu0
        %2150 = vdwg.mxu0
        %v2151 = vmul.f32 %v2148, 0.35355338
        %v2152 = vadd.f32 %v2151, %v521
        %v2153 = vsel %vm614, %v2152, -inf
        %2154 = vmax.xlane.f32.xlu0 %v2153
        %v2155 = vpop.xlane.xlu0 %2154
        %v2156 = vsub.f32 %v2152, %v2155
        %v2157 = vmul.f32 %v2156, 1.442695
        %v2158 = vpow.pop %v2157
        %v2159 = vsel %vm614, %v2158, 0.0
        %2160 = vadd.xlane.f32.xlu0 %v2159
        %v2161 = vpop.xlane.xlu0 %2160
        %v2162 = vrcp.pop %v2161
        %v2163 = vmul.f32 %v2158, %v2162
        %2164 = vrot.lane.b32.xlu0 %v1899, 56
        %v2165 = vpop.permute.xlu0 %2164
        %v2168 = vsel %vm614, %v2163, 0
        %2170 = vmatprep.subr.mxu0 0.0
        %2171 = vmatpush1.msra.mxu0 %v2165
        %2172 = vmatprep.subr.mxu0 0.0
        %2173 = vmatpush1.msra.mxu0 0.0
        %2174 = vmatprep.subr.mxu0 0.0
        %2175 = vmatpush1.msra.mxu0 0.0
        %2176 = vmatprep.subr.mxu0 0.0
        %2177 = vmatpush1.msra.mxu0 0.0
        %2178 = vmatprep.subr.mxu0 0.0
        %2179 = vmatpush1.msra.mxu0 0.0
        %2180 = vmatprep.subr.mxu0 0.0
        %2181 = vmatpush1.msra.mxu0 0.0
        %2182 = vmatprep.subr.mxu0 0.0
        %2183 = vmatpush1.msra.mxu0 0.0
        %2184 = vmatprep.subr.mxu0 0.0
        %2185 = vmatpush1.msra.mxu0 0.0
        %2186 = vmatprep.subr.mxu0 0.0
        %2187 = vmatpush1.msra.mxu0 0.0
        %2188 = vmatprep.subr.mxu0 0.0
        %2189 = vmatpush1.msra.mxu0 0.0
        %2190 = vmatprep.subr.mxu0 0.0
        %2191 = vmatpush1.msra.mxu0 0.0
        %2192 = vmatprep.subr.mxu0 0.0
        %2193 = vmatpush1.msra.mxu0 0.0
        %2194 = vmatprep.subr.mxu0 0.0
        %2195 = vmatpush1.msra.mxu0 0.0
        %2196 = vmatprep.subr.mxu0 0.0
        %2197 = vmatpush1.msra.mxu0 0.0
        %2198 = vmatprep.subr.mxu0 0.0
        %2199 = vmatpush1.msra.mxu0 0.0
        %2200 = vmatprep.subr.mxu0 0.0
        %2201 = vmatpush1.msra.mxu0 0.0
        %2202 = vmatprep.subr.mxu0 0.0
        %2203 = vmatpush1.msra.mxu0 0.0
        %2204 = vmatprep.subr.mxu0 0.0
        %2205 = vmatpush1.msra.mxu0 0.0
        %2206 = vmatprep.subr.mxu0 0.0
        %2207 = vmatpush1.msra.mxu0 0.0
        %2208 = vmatprep.subr.mxu0 0.0
        %2209 = vmatpush1.msra.mxu0 0.0
        %2210 = vmatprep.subr.mxu0 0.0
        %2211 = vmatpush1.msra.mxu0 0.0
        %2212 = vmatprep.subr.mxu0 0.0
        %2213 = vmatpush1.msra.mxu0 0.0
        %2214 = vmatprep.subr.mxu0 0.0
        %2215 = vmatpush1.msra.mxu0 0.0
        %2216 = vmatprep.subr.mxu0 0.0
        %2217 = vmatpush1.msra.mxu0 0.0
        %2218 = vmatprep.subr.mxu0 0.0
        %2219 = vmatpush1.msra.mxu0 0.0
        %2220 = vmatprep.subr.mxu0 0.0
        %2221 = vmatpush1.msra.mxu0 0.0
        %2222 = vmatprep.subr.mxu0 0.0
        %2223 = vmatpush1.msra.mxu0 0.0
        %2224 = vmatprep.subr.mxu0 0.0
        %2225 = vmatpush1.msra.mxu0 0.0
        %2226 = vmatprep.subr.mxu0 0.0
        %2227 = vmatpush1.msra.mxu0 0.0
        %2228 = vmatprep.subr.mxu0 0.0
        %2229 = vmatpush1.msra.mxu0 0.0
        %2230 = vmatprep.subr.mxu0 0.0
        %2231 = vmatpush1.msra.mxu0 0.0
        %2232 = vmatprep.subr.mxu0 0.0
        %2233 = vmatpush1.msra.mxu0 0.0
        %2234 = vmatprep.mubr.f32.mxu0 0.0
        %2235 = vmatmul.mubr.f32.gmra.mrb[0].mxu0 %v2168
        %v2236 = vpop.f32.mrb[0].mxu0
        %v2237 = vadd.f32 0.0, %v2236
        %v2238 = vpop.f32.mrb[0].mxu0
        %2239 = vdwg.mxu0
        %v2241 = vsel %vm614, %v2237, 0
        %2243 = vmatprep.subr.mxu0 0.0
        %2244 = vmatpush1.msra.mxu0 %v1904
        %2245 = vmatprep.subr.mxu0 0.0
        %2246 = vmatpush1.msra.mxu0 0.0
        %2247 = vmatprep.subr.mxu0 0.0
        %2248 = vmatpush1.msra.mxu0 0.0
        %2249 = vmatprep.subr.mxu0 0.0
        %2250 = vmatpush1.msra.mxu0 0.0
        %2251 = vmatprep.subr.mxu0 0.0
        %2252 = vmatpush1.msra.mxu0 0.0
        %2253 = vmatprep.subr.mxu0 0.0
        %2254 = vmatpush1.msra.mxu0 0.0
        %2255 = vmatprep.subr.mxu0 0.0
        %2256 = vmatpush1.msra.mxu0 0.0
        %2257 = vmatprep.subr.mxu0 0.0
        %2258 = vmatpush1.msra.mxu0 0.0
        %2259 = vmatprep.subr.mxu0 0.0
        %2260 = vmatpush1.msra.mxu0 0.0
        %2261 = vmatprep.subr.mxu0 0.0
        %2262 = vmatpush1.msra.mxu0 0.0
        %2263 = vmatprep.subr.mxu0 0.0
        %2264 = vmatpush1.msra.mxu0 0.0
        %2265 = vmatprep.subr.mxu0 0.0
        %2266 = vmatpush1.msra.mxu0 0.0
        %2267 = vmatprep.subr.mxu0 0.0
        %2268 = vmatpush1.msra.mxu0 0.0
        %2269 = vmatprep.subr.mxu0 0.0
        %2270 = vmatpush1.msra.mxu0 0.0
        %2271 = vmatprep.subr.mxu0 0.0
        %2272 = vmatpush1.msra.mxu0 0.0
        %2273 = vmatprep.subr.mxu0 0.0
        %2274 = vmatpush1.msra.mxu0 0.0
        %2275 = vmatprep.subr.mxu0 0.0
        %2276 = vmatpush1.msra.mxu0 0.0
        %2277 = vmatprep.subr.mxu0 0.0
        %2278 = vmatpush1.msra.mxu0 0.0
        %2279 = vmatprep.subr.mxu0 0.0
        %2280 = vmatpush1.msra.mxu0 0.0
        %2281 = vmatprep.subr.mxu0 0.0
        %2282 = vmatpush1.msra.mxu0 0.0
        %2283 = vmatprep.subr.mxu0 0.0
        %2284 = vmatpush1.msra.mxu0 0.0
        %2285 = vmatprep.subr.mxu0 0.0
        %2286 = vmatpush1.msra.mxu0 0.0
        %2287 = vmatprep.subr.mxu0 0.0
        %2288 = vmatpush1.msra.mxu0 0.0
        %2289 = vmatprep.subr.mxu0 0.0
        %2290 = vmatpush1.msra.mxu0 0.0
        %2291 = vmatprep.subr.mxu0 0.0
        %2292 = vmatpush1.msra.mxu0 0.0
        %2293 = vmatprep.subr.mxu0 0.0
        %2294 = vmatpush1.msra.mxu0 0.0
        %2295 = vmatprep.subr.mxu0 0.0
        %2296 = vmatpush1.msra.mxu0 0.0
        %2297 = vmatprep.subr.mxu0 0.0
        %2298 = vmatpush1.msra.mxu0 0.0
        %2299 = vmatprep.subr.mxu0 0.0
        %2300 = vmatpush1.msra.mxu0 0.0
        %2301 = vmatprep.subr.mxu0 0.0
        %2302 = vmatpush1.msra.mxu0 0.0
        %2303 = vmatprep.subr.mxu0 0.0
        %2304 = vmatpush1.msra.mxu0 0.0
        %2305 = vmatprep.subr.mxu0 0.0
        %2306 = vmatpush1.msra.mxu0 0.0
        %2307 = vmatprep.mubr.f32.mxu0 0.0
        %2308 = vmatmul.mubr.f32.gmra.mrb[0].mxu0 %v2241
        %v2309 = vpop.f32.mrb[0].mxu0
        %v2310 = vadd.f32 0.0, %v2309
        %v2311 = vpop.f32.mrb[0].mxu0
        %2312 = vdwg.mxu0
        %v2314 = vsel %vm614, %v2070, 0
        %2316 = vmatprep.subr.mxu0 0.0
        %2317 = vmatpush1.msra.mxu0 %v1903
        %2318 = vmatprep.subr.mxu0 0.0
        %2319 = vmatpush1.msra.mxu0 0.0
        %2320 = vmatprep.subr.mxu0 0.0
        %2321 = vmatpush1.msra.mxu0 0.0
        %2322 = vmatprep.subr.mxu0 0.0
        %2323 = vmatpush1.msra.mxu0 0.0
        %2324 = vmatprep.subr.mxu0 0.0
        %2325 = vmatpush1.msra.mxu0 0.0
        %2326 = vmatprep.subr.mxu0 0.0
        %2327 = vmatpush1.msra.mxu0 0.0
        %2328 = vmatprep.subr.mxu0 0.0
        %2329 = vmatpush1.msra.mxu0 0.0
        %2330 = vmatprep.subr.mxu0 0.0
        %2331 = vmatpush1.msra.mxu0 0.0
        %2332 = vmatprep.subr.mxu0 0.0
        %2333 = vmatpush1.msra.mxu0 0.0
        %2334 = vmatprep.subr.mxu0 0.0
        %2335 = vmatpush1.msra.mxu0 0.0
        %2336 = vmatprep.subr.mxu0 0.0
        %2337 = vmatpush1.msra.mxu0 0.0
        %2338 = vmatprep.subr.mxu0 0.0
        %2339 = vmatpush1.msra.mxu0 0.0
        %2340 = vmatprep.subr.mxu0 0.0
        %2341 = vmatpush1.msra.mxu0 0.0
        %2342 = vmatprep.subr.mxu0 0.0
        %2343 = vmatpush1.msra.mxu0 0.0
        %2344 = vmatprep.subr.mxu0 0.0
        %2345 = vmatpush1.msra.mxu0 0.0
        %2346 = vmatprep.subr.mxu0 0.0
        %2347 = vmatpush1.msra.mxu0 0.0
        %2348 = vmatprep.subr.mxu0 0.0
        %2349 = vmatpush1.msra.mxu0 0.0
        %2350 = vmatprep.subr.mxu0 0.0
        %2351 = vmatpush1.msra.mxu0 0.0
        %2352 = vmatprep.subr.mxu0 0.0
        %2353 = vmatpush1.msra.mxu0 0.0
        %2354 = vmatprep.subr.mxu0 0.0
        %2355 = vmatpush1.msra.mxu0 0.0
        %2356 = vmatprep.subr.mxu0 0.0
        %2357 = vmatpush1.msra.mxu0 0.0
        %2358 = vmatprep.subr.mxu0 0.0
        %2359 = vmatpush1.msra.mxu0 0.0
        %2360 = vmatprep.subr.mxu0 0.0
        %2361 = vmatpush1.msra.mxu0 0.0
        %2362 = vmatprep.subr.mxu0 0.0
        %2363 = vmatpush1.msra.mxu0 0.0
        %2364 = vmatprep.subr.mxu0 0.0
        %2365 = vmatpush1.msra.mxu0 0.0
        %2366 = vmatprep.subr.mxu0 0.0
        %2367 = vmatpush1.msra.mxu0 0.0
        %2368 = vmatprep.subr.mxu0 0.0
        %2369 = vmatpush1.msra.mxu0 0.0
        %2370 = vmatprep.subr.mxu0 0.0
        %2371 = vmatpush1.msra.mxu0 0.0
        %2372 = vmatprep.subr.mxu0 0.0
        %2373 = vmatpush1.msra.mxu0 0.0
        %2374 = vmatprep.subr.mxu0 0.0
        %2375 = vmatpush1.msra.mxu0 0.0
        %2376 = vmatprep.subr.mxu0 0.0
        %2377 = vmatpush1.msra.mxu0 0.0
        %2378 = vmatprep.subr.mxu0 0.0
        %2379 = vmatpush1.msra.mxu0 0.0
        %2380 = vmatprep.mubr.f32.mxu0 0.0
        %2381 = vmatmul.mubr.f32.gmra.mrb[0].mxu0 %v2314
        %v2382 = vpop.f32.mrb[0].mxu0
        %v2383 = vadd.f32 %v2310, %v2382
        %v2384 = vpop.f32.mrb[0].mxu0
        %2385 = vdwg.mxu0
        %2386 = vrot.lane.b32.xlu0 %v1899, 112
        %v2387 = vpop.permute.xlu0 %2386
        %2388 = vrot.lane.b32.xlu0 %v1899, 80
        %v2389 = vpop.permute.xlu0 %2388
        %v2390 = vsel %vm614, %v2387, 0
        %v2392 = vsel %vm614, %v2389, 0
        %2394 = vmatprep.subr.mxu0 0.0
        %2395 = vmatpush1.xpose.msra.mxu0 %v2392
        %2396 = vmatprep.subr.mxu0 0.0
        %2397 = vmatpush1.xpose.msra.mxu0 0.0
        %2398 = vmatprep.subr.mxu0 0.0
        %2399 = vmatpush1.xpose.msra.mxu0 0.0
        %2400 = vmatprep.subr.mxu0 0.0
        %2401 = vmatpush1.xpose.msra.mxu0 0.0
        %2402 = vmatprep.subr.mxu0 0.0
        %2403 = vmatpush1.xpose.msra.mxu0 0.0
        %2404 = vmatprep.subr.mxu0 0.0
        %2405 = vmatpush1.xpose.msra.mxu0 0.0
        %2406 = vmatprep.subr.mxu0 0.0
        %2407 = vmatpush1.xpose.msra.mxu0 0.0
        %2408 = vmatprep.subr.mxu0 0.0
        %2409 = vmatpush1.xpose.msra.mxu0 0.0
        %2410 = vmatprep.subr.mxu0 0.0
        %2411 = vmatpush1.xpose.msra.mxu0 0.0
        %2412 = vmatprep.subr.mxu0 0.0
        %2413 = vmatpush1.xpose.msra.mxu0 0.0
        %2414 = vmatprep.subr.mxu0 0.0
        %2415 = vmatpush1.xpose.msra.mxu0 0.0
        %2416 = vmatprep.subr.mxu0 0.0
        %2417 = vmatpush1.xpose.msra.mxu0 0.0
        %2418 = vmatprep.subr.mxu0 0.0
        %2419 = vmatpush1.xpose.msra.mxu0 0.0
        %2420 = vmatprep.subr.mxu0 0.0
        %2421 = vmatpush1.xpose.msra.mxu0 0.0
        %2422 = vmatprep.subr.mxu0 0.0
        %2423 = vmatpush1.xpose.msra.mxu0 0.0
        %2424 = vmatprep.subr.mxu0 0.0
        %2425 = vmatpush1.xpose.msra.mxu0 0.0
        %2426 = vmatprep.subr.mxu0 0.0
        %2427 = vmatpush1.xpose.msra.mxu0 0.0
        %2428 = vmatprep.subr.mxu0 0.0
        %2429 = vmatpush1.xpose.msra.mxu0 0.0
        %2430 = vmatprep.subr.mxu0 0.0
        %2431 = vmatpush1.xpose.msra.mxu0 0.0
        %2432 = vmatprep.subr.mxu0 0.0
        %2433 = vmatpush1.xpose.msra.mxu0 0.0
        %2434 = vmatprep.subr.mxu0 0.0
        %2435 = vmatpush1.xpose.msra.mxu0 0.0
        %2436 = vmatprep.subr.mxu0 0.0
        %2437 = vmatpush1.xpose.msra.mxu0 0.0
        %2438 = vmatprep.subr.mxu0 0.0
        %2439 = vmatpush1.xpose.msra.mxu0 0.0
        %2440 = vmatprep.subr.mxu0 0.0
        %2441 = vmatpush1.xpose.msra.mxu0 0.0
        %2442 = vmatprep.subr.mxu0 0.0
        %2443 = vmatpush1.xpose.msra.mxu0 0.0
        %2444 = vmatprep.subr.mxu0 0.0
        %2445 = vmatpush1.xpose.msra.mxu0 0.0
        %2446 = vmatprep.subr.mxu0 0.0
        %2447 = vmatpush1.xpose.msra.mxu0 0.0
        %2448 = vmatprep.subr.mxu0 0.0
        %2449 = vmatpush1.xpose.msra.mxu0 0.0
        %2450 = vmatprep.subr.mxu0 0.0
        %2451 = vmatpush1.xpose.msra.mxu0 0.0
        %2452 = vmatprep.subr.mxu0 0.0
        %2453 = vmatpush1.xpose.msra.mxu0 0.0
        %2454 = vmatprep.subr.mxu0 0.0
        %2455 = vmatpush1.xpose.msra.mxu0 0.0
        %2456 = vmatprep.subr.mxu0 0.0
        %2457 = vmatpush1.xpose.msra.mxu0 0.0
        %2458 = vmatprep.mubr.f32.mxu0 0.0
        %2459 = vmatmul.mubr.f32.gmra.mrb[0].mxu0 %v2390
        %v2460 = vpop.f32.mrb[0].mxu0
        %v2461 = vadd.f32 0.0, %v2460
        %v2462 = vpop.f32.mrb[0].mxu0
        %2463 = vdwg.mxu0
        %v2464 = vmul.f32 %v2461, 0.35355338
        %v2465 = vadd.f32 %v2464, %v521
        %v2466 = vsel %vm614, %v2465, -inf
        %2467 = vmax.xlane.f32.xlu0 %v2466
        %v2468 = vpop.xlane.xlu0 %2467
        %v2469 = vsub.f32 %v2465, %v2468
        %v2470 = vmul.f32 %v2469, 1.442695
        %v2471 = vpow.pop %v2470
        %v2472 = vsel %vm614, %v2471, 0.0
        %2473 = vadd.xlane.f32.xlu0 %v2472
        %v2474 = vpop.xlane.xlu0 %2473
        %v2475 = vrcp.pop %v2474
        %v2476 = vmul.f32 %v2471, %v2475
        %2477 = vrot.lane.b32.xlu0 %v1899, 48
        %v2478 = vpop.permute.xlu0 %2477
        %v2481 = vsel %vm614, %v2476, 0
        %2483 = vmatprep.subr.mxu0 0.0
        %2484 = vmatpush1.msra.mxu0 %v2478
        %2485 = vmatprep.subr.mxu0 0.0
        %2486 = vmatpush1.msra.mxu0 0.0
        %2487 = vmatprep.subr.mxu0 0.0
        %2488 = vmatpush1.msra.mxu0 0.0
        %2489 = vmatprep.subr.mxu0 0.0
        %2490 = vmatpush1.msra.mxu0 0.0
        %2491 = vmatprep.subr.mxu0 0.0
        %2492 = vmatpush1.msra.mxu0 0.0
        %2493 = vmatprep.subr.mxu0 0.0
        %2494 = vmatpush1.msra.mxu0 0.0
        %2495 = vmatprep.subr.mxu0 0.0
        %2496 = vmatpush1.msra.mxu0 0.0
        %2497 = vmatprep.subr.mxu0 0.0
        %2498 = vmatpush1.msra.mxu0 0.0
        %2499 = vmatprep.subr.mxu0 0.0
        %2500 = vmatpush1.msra.mxu0 0.0
        %2501 = vmatprep.subr.mxu0 0.0
        %2502 = vmatpush1.msra.mxu0 0.0
        %2503 = vmatprep.subr.mxu0 0.0
        %2504 = vmatpush1.msra.mxu0 0.0
        %2505 = vmatprep.subr.mxu0 0.0
        %2506 = vmatpush1.msra.mxu0 0.0
        %2507 = vmatprep.subr.mxu0 0.0
        %2508 = vmatpush1.msra.mxu0 0.0
        %2509 = vmatprep.subr.mxu0 0.0
        %2510 = vmatpush1.msra.mxu0 0.0
        %2511 = vmatprep.subr.mxu0 0.0
        %2512 = vmatpush1.msra.mxu0 0.0
        %2513 = vmatprep.subr.mxu0 0.0
        %2514 = vmatpush1.msra.mxu0 0.0
        %2515 = vmatprep.subr.mxu0 0.0
        %2516 = vmatpush1.msra.mxu0 0.0
        %2517 = vmatprep.subr.mxu0 0.0
        %2518 = vmatpush1.msra.mxu0 0.0
        %2519 = vmatprep.subr.mxu0 0.0
        %2520 = vmatpush1.msra.mxu0 0.0
        %2521 = vmatprep.subr.mxu0 0.0
        %2522 = vmatpush1.msra.mxu0 0.0
        %2523 = vmatprep.subr.mxu0 0.0
        %2524 = vmatpush1.msra.mxu0 0.0
        %2525 = vmatprep.subr.mxu0 0.0
        %2526 = vmatpush1.msra.mxu0 0.0
        %2527 = vmatprep.subr.mxu0 0.0
        %2528 = vmatpush1.msra.mxu0 0.0
        %2529 = vmatprep.subr.mxu0 0.0
        %2530 = vmatpush1.msra.mxu0 0.0
        %2531 = vmatprep.subr.mxu0 0.0
        %2532 = vmatpush1.msra.mxu0 0.0
        %2533 = vmatprep.subr.mxu0 0.0
        %2534 = vmatpush1.msra.mxu0 0.0
        %2535 = vmatprep.subr.mxu0 0.0
        %2536 = vmatpush1.msra.mxu0 0.0
        %2537 = vmatprep.subr.mxu0 0.0
        %2538 = vmatpush1.msra.mxu0 0.0
        %2539 = vmatprep.subr.mxu0 0.0
        %2540 = vmatpush1.msra.mxu0 0.0
        %2541 = vmatprep.subr.mxu0 0.0
        %2542 = vmatpush1.msra.mxu0 0.0
        %2543 = vmatprep.subr.mxu0 0.0
        %2544 = vmatpush1.msra.mxu0 0.0
        %2545 = vmatprep.subr.mxu0 0.0
        %2546 = vmatpush1.msra.mxu0 0.0
        %2547 = vmatprep.mubr.f32.mxu0 0.0
        %2548 = vmatmul.mubr.f32.gmra.mrb[0].mxu0 %v2481
        %v2549 = vpop.f32.mrb[0].mxu0
        %v2550 = vadd.f32 0.0, %v2549
        %v2551 = vpop.f32.mrb[0].mxu0
        %2552 = vdwg.mxu0
        %v2554 = vsel %vm614, %v2550, 0
        %2556 = vmatprep.subr.mxu0 0.0
        %2557 = vmatpush1.msra.mxu0 %v1905
        %2558 = vmatprep.subr.mxu0 0.0
        %2559 = vmatpush1.msra.mxu0 0.0
        %2560 = vmatprep.subr.mxu0 0.0
        %2561 = vmatpush1.msra.mxu0 0.0
        %2562 = vmatprep.subr.mxu0 0.0
        %2563 = vmatpush1.msra.mxu0 0.0
        %2564 = vmatprep.subr.mxu0 0.0
        %2565 = vmatpush1.msra.mxu0 0.0
        %2566 = vmatprep.subr.mxu0 0.0
        %2567 = vmatpush1.msra.mxu0 0.0
        %2568 = vmatprep.subr.mxu0 0.0
        %2569 = vmatpush1.msra.mxu0 0.0
        %2570 = vmatprep.subr.mxu0 0.0
        %2571 = vmatpush1.msra.mxu0 0.0
        %2572 = vmatprep.subr.mxu0 0.0
        %2573 = vmatpush1.msra.mxu0 0.0
        %2574 = vmatprep.subr.mxu0 0.0
        %2575 = vmatpush1.msra.mxu0 0.0
        %2576 = vmatprep.subr.mxu0 0.0
        %2577 = vmatpush1.msra.mxu0 0.0
        %2578 = vmatprep.subr.mxu0 0.0
        %2579 = vmatpush1.msra.mxu0 0.0
        %2580 = vmatprep.subr.mxu0 0.0
        %2581 = vmatpush1.msra.mxu0 0.0
        %2582 = vmatprep.subr.mxu0 0.0
        %2583 = vmatpush1.msra.mxu0 0.0
        %2584 = vmatprep.subr.mxu0 0.0
        %2585 = vmatpush1.msra.mxu0 0.0
        %2586 = vmatprep.subr.mxu0 0.0
        %2587 = vmatpush1.msra.mxu0 0.0
        %2588 = vmatprep.subr.mxu0 0.0
        %2589 = vmatpush1.msra.mxu0 0.0
        %2590 = vmatprep.subr.mxu0 0.0
        %2591 = vmatpush1.msra.mxu0 0.0
        %2592 = vmatprep.subr.mxu0 0.0
        %2593 = vmatpush1.msra.mxu0 0.0
        %2594 = vmatprep.subr.mxu0 0.0
        %2595 = vmatpush1.msra.mxu0 0.0
        %2596 = vmatprep.subr.mxu0 0.0
        %2597 = vmatpush1.msra.mxu0 0.0
        %2598 = vmatprep.subr.mxu0 0.0
        %2599 = vmatpush1.msra.mxu0 0.0
        %2600 = vmatprep.subr.mxu0 0.0
        %2601 = vmatpush1.msra.mxu0 0.0
        %2602 = vmatprep.subr.mxu0 0.0
        %2603 = vmatpush1.msra.mxu0 0.0
        %2604 = vmatprep.subr.mxu0 0.0
        %2605 = vmatpush1.msra.mxu0 0.0
        %2606 = vmatprep.subr.mxu0 0.0
        %2607 = vmatpush1.msra.mxu0 0.0
        %2608 = vmatprep.subr.mxu0 0.0
        %2609 = vmatpush1.msra.mxu0 0.0
        %2610 = vmatprep.subr.mxu0 0.0
        %2611 = vmatpush1.msra.mxu0 0.0
        %2612 = vmatprep.subr.mxu0 0.0
        %2613 = vmatpush1.msra.mxu0 0.0
        %2614 = vmatprep.subr.mxu0 0.0
        %2615 = vmatpush1.msra.mxu0 0.0
        %2616 = vmatprep.subr.mxu0 0.0
        %2617 = vmatpush1.msra.mxu0 0.0
        %2618 = vmatprep.subr.mxu0 0.0
        %2619 = vmatpush1.msra.mxu0 0.0
        %2620 = vmatprep.mubr.f32.mxu0 0.0
        %2621 = vmatmul.mubr.f32.gmra.mrb[0].mxu0 %v2554
        %v2622 = vpop.f32.mrb[0].mxu0
        %v2623 = vadd.f32 0.0, %v2622
        %v2624 = vpop.f32.mrb[0].mxu0
        %2625 = vdwg.mxu0
        %v2626 = vadd.f32 %v2383, %v2623
        %2627 = vrot.lane.b32.xlu0 %v1899, 104
        %v2628 = vpop.permute.xlu0 %2627
        %2629 = vrot.lane.b32.xlu0 %v1899, 72
        %v2630 = vpop.permute.xlu0 %2629
        %v2631 = vsel %vm614, %v2628, 0
        %v2633 = vsel %vm614, %v2630, 0
        %2635 = vmatprep.subr.mxu0 0.0
        %2636 = vmatpush1.xpose.msra.mxu0 %v2633
        %2637 = vmatprep.subr.mxu0 0.0
        %2638 = vmatpush1.xpose.msra.mxu0 0.0
        %2639 = vmatprep.subr.mxu0 0.0
        %2640 = vmatpush1.xpose.msra.mxu0 0.0
        %2641 = vmatprep.subr.mxu0 0.0
        %2642 = vmatpush1.xpose.msra.mxu0 0.0
        %2643 = vmatprep.subr.mxu0 0.0
        %2644 = vmatpush1.xpose.msra.mxu0 0.0
        %2645 = vmatprep.subr.mxu0 0.0
        %2646 = vmatpush1.xpose.msra.mxu0 0.0
        %2647 = vmatprep.subr.mxu0 0.0
        %2648 = vmatpush1.xpose.msra.mxu0 0.0
        %2649 = vmatprep.subr.mxu0 0.0
        %2650 = vmatpush1.xpose.msra.mxu0 0.0
        %2651 = vmatprep.subr.mxu0 0.0
        %2652 = vmatpush1.xpose.msra.mxu0 0.0
        %2653 = vmatprep.subr.mxu0 0.0
        %2654 = vmatpush1.xpose.msra.mxu0 0.0
        %2655 = vmatprep.subr.mxu0 0.0
        %2656 = vmatpush1.xpose.msra.mxu0 0.0
        %2657 = vmatprep.subr.mxu0 0.0
        %2658 = vmatpush1.xpose.msra.mxu0 0.0
        %2659 = vmatprep.subr.mxu0 0.0
        %2660 = vmatpush1.xpose.msra.mxu0 0.0
        %2661 = vmatprep.subr.mxu0 0.0
        %2662 = vmatpush1.xpose.msra.mxu0 0.0
        %2663 = vmatprep.subr.mxu0 0.0
        %2664 = vmatpush1.xpose.msra.mxu0 0.0
        %2665 = vmatprep.subr.mxu0 0.0
        %2666 = vmatpush1.xpose.msra.mxu0 0.0
        %2667 = vmatprep.subr.mxu0 0.0
        %2668 = vmatpush1.xpose.msra.mxu0 0.0
        %2669 = vmatprep.subr.mxu0 0.0
        %2670 = vmatpush1.xpose.msra.mxu0 0.0
        %2671 = vmatprep.subr.mxu0 0.0
        %2672 = vmatpush1.xpose.msra.mxu0 0.0
        %2673 = vmatprep.subr.mxu0 0.0
        %2674 = vmatpush1.xpose.msra.mxu0 0.0
        %2675 = vmatprep.subr.mxu0 0.0
        %2676 = vmatpush1.xpose.msra.mxu0 0.0
        %2677 = vmatprep.subr.mxu0 0.0
        %2678 = vmatpush1.xpose.msra.mxu0 0.0
        %2679 = vmatprep.subr.mxu0 0.0
        %2680 = vmatpush1.xpose.msra.mxu0 0.0
        %2681 = vmatprep.subr.mxu0 0.0
        %2682 = vmatpush1.xpose.msra.mxu0 0.0
        %2683 = vmatprep.subr.mxu0 0.0
        %2684 = vmatpush1.xpose.msra.mxu0 0.0
        %2685 = vmatprep.subr.mxu0 0.0
        %2686 = vmatpush1.xpose.msra.mxu0 0.0
        %2687 = vmatprep.subr.mxu0 0.0
        %2688 = vmatpush1.xpose.msra.mxu0 0.0
        %2689 = vmatprep.subr.mxu0 0.0
        %2690 = vmatpush1.xpose.msra.mxu0 0.0
        %2691 = vmatprep.subr.mxu0 0.0
        %2692 = vmatpush1.xpose.msra.mxu0 0.0
        %2693 = vmatprep.subr.mxu0 0.0
        %2694 = vmatpush1.xpose.msra.mxu0 0.0
        %2695 = vmatprep.subr.mxu0 0.0
        %2696 = vmatpush1.xpose.msra.mxu0 0.0
        %2697 = vmatprep.subr.mxu0 0.0
        %2698 = vmatpush1.xpose.msra.mxu0 0.0
        %2699 = vmatprep.mubr.f32.mxu0 0.0
        %2700 = vmatmul.mubr.f32.gmra.mrb[0].mxu0 %v2631
        %v2701 = vpop.f32.mrb[0].mxu0
        %v2702 = vadd.f32 0.0, %v2701
        %v2703 = vpop.f32.mrb[0].mxu0
        %2704 = vdwg.mxu0
        %v2705 = vmul.f32 %v2702, 0.35355338
        %v2706 = vadd.f32 %v2705, %v521
        %v2707 = vsel %vm614, %v2706, -inf
        %2708 = vmax.xlane.f32.xlu0 %v2707
        %v2709 = vpop.xlane.xlu0 %2708
        %v2710 = vsub.f32 %v2706, %v2709
        %v2711 = vmul.f32 %v2710, 1.442695
        %v2712 = vpow.pop %v2711
        %v2713 = vsel %vm614, %v2712, 0.0
        %2714 = vadd.xlane.f32.xlu0 %v2713
        %v2715 = vpop.xlane.xlu0 %2714
        %v2716 = vrcp.pop %v2715
        %v2717 = vmul.f32 %v2712, %v2716
        %2718 = vrot.lane.b32.xlu0 %v1899, 40
        %v2719 = vpop.permute.xlu0 %2718
        %v2722 = vsel %vm614, %v2717, 0
        %2724 = vmatprep.subr.mxu0 0.0
        %2725 = vmatpush1.msra.mxu0 %v2719
        %2726 = vmatprep.subr.mxu0 0.0
        %2727 = vmatpush1.msra.mxu0 0.0
        %2728 = vmatprep.subr.mxu0 0.0
        %2729 = vmatpush1.msra.mxu0 0.0
        %2730 = vmatprep.subr.mxu0 0.0
        %2731 = vmatpush1.msra.mxu0 0.0
        %2732 = vmatprep.subr.mxu0 0.0
        %2733 = vmatpush1.msra.mxu0 0.0
        %2734 = vmatprep.subr.mxu0 0.0
        %2735 = vmatpush1.msra.mxu0 0.0
        %2736 = vmatprep.subr.mxu0 0.0
        %2737 = vmatpush1.msra.mxu0 0.0
        %2738 = vmatprep.subr.mxu0 0.0
        %2739 = vmatpush1.msra.mxu0 0.0
        %2740 = vmatprep.subr.mxu0 0.0
        %2741 = vmatpush1.msra.mxu0 0.0
        %2742 = vmatprep.subr.mxu0 0.0
        %2743 = vmatpush1.msra.mxu0 0.0
        %2744 = vmatprep.subr.mxu0 0.0
        %2745 = vmatpush1.msra.mxu0 0.0
        %2746 = vmatprep.subr.mxu0 0.0
        %2747 = vmatpush1.msra.mxu0 0.0
        %2748 = vmatprep.subr.mxu0 0.0
        %2749 = vmatpush1.msra.mxu0 0.0
        %2750 = vmatprep.subr.mxu0 0.0
        %2751 = vmatpush1.msra.mxu0 0.0
        %2752 = vmatprep.subr.mxu0 0.0
        %2753 = vmatpush1.msra.mxu0 0.0
        %2754 = vmatprep.subr.mxu0 0.0
        %2755 = vmatpush1.msra.mxu0 0.0
        %2756 = vmatprep.subr.mxu0 0.0
        %2757 = vmatpush1.msra.mxu0 0.0
        %2758 = vmatprep.subr.mxu0 0.0
        %2759 = vmatpush1.msra.mxu0 0.0
        %2760 = vmatprep.subr.mxu0 0.0
        %2761 = vmatpush1.msra.mxu0 0.0
        %2762 = vmatprep.subr.mxu0 0.0
        %2763 = vmatpush1.msra.mxu0 0.0
        %2764 = vmatprep.subr.mxu0 0.0
        %2765 = vmatpush1.msra.mxu0 0.0
        %2766 = vmatprep.subr.mxu0 0.0
        %2767 = vmatpush1.msra.mxu0 0.0
        %2768 = vmatprep.subr.mxu0 0.0
        %2769 = vmatpush1.msra.mxu0 0.0
        %2770 = vmatprep.subr.mxu0 0.0
        %2771 = vmatpush1.msra.mxu0 0.0
        %2772 = vmatprep.subr.mxu0 0.0
        %2773 = vmatpush1.msra.mxu0 0.0
        %2774 = vmatprep.subr.mxu0 0.0
        %2775 = vmatpush1.msra.mxu0 0.0
        %2776 = vmatprep.subr.mxu0 0.0
        %2777 = vmatpush1.msra.mxu0 0.0
        %2778 = vmatprep.subr.mxu0 0.0
        %2779 = vmatpush1.msra.mxu0 0.0
        %2780 = vmatprep.subr.mxu0 0.0
        %2781 = vmatpush1.msra.mxu0 0.0
        %2782 = vmatprep.subr.mxu0 0.0
        %2783 = vmatpush1.msra.mxu0 0.0
        %2784 = vmatprep.subr.mxu0 0.0
        %2785 = vmatpush1.msra.mxu0 0.0
        %2786 = vmatprep.subr.mxu0 0.0
        %2787 = vmatpush1.msra.mxu0 0.0
        %2788 = vmatprep.mubr.f32.mxu0 0.0
        %2789 = vmatmul.mubr.f32.gmra.mrb[0].mxu0 %v2722
        %v2790 = vpop.f32.mrb[0].mxu0
        %v2791 = vadd.f32 0.0, %v2790
        %v2792 = vpop.f32.mrb[0].mxu0
        %2793 = vdwg.mxu0
        %v2795 = vsel %vm614, %v2791, 0
        %2797 = vmatprep.subr.mxu0 0.0
        %2798 = vmatpush1.msra.mxu0 %v1906
        %2799 = vmatprep.subr.mxu0 0.0
        %2800 = vmatpush1.msra.mxu0 0.0
        %2801 = vmatprep.subr.mxu0 0.0
        %2802 = vmatpush1.msra.mxu0 0.0
        %2803 = vmatprep.subr.mxu0 0.0
        %2804 = vmatpush1.msra.mxu0 0.0
        %2805 = vmatprep.subr.mxu0 0.0
        %2806 = vmatpush1.msra.mxu0 0.0
        %2807 = vmatprep.subr.mxu0 0.0
        %2808 = vmatpush1.msra.mxu0 0.0
        %2809 = vmatprep.subr.mxu0 0.0
        %2810 = vmatpush1.msra.mxu0 0.0
        %2811 = vmatprep.subr.mxu0 0.0
        %2812 = vmatpush1.msra.mxu0 0.0
        %2813 = vmatprep.subr.mxu0 0.0
        %2814 = vmatpush1.msra.mxu0 0.0
        %2815 = vmatprep.subr.mxu0 0.0
        %2816 = vmatpush1.msra.mxu0 0.0
        %2817 = vmatprep.subr.mxu0 0.0
        %2818 = vmatpush1.msra.mxu0 0.0
        %2819 = vmatprep.subr.mxu0 0.0
        %2820 = vmatpush1.msra.mxu0 0.0
        %2821 = vmatprep.subr.mxu0 0.0
        %2822 = vmatpush1.msra.mxu0 0.0
        %2823 = vmatprep.subr.mxu0 0.0
        %2824 = vmatpush1.msra.mxu0 0.0
        %2825 = vmatprep.subr.mxu0 0.0
        %2826 = vmatpush1.msra.mxu0 0.0
        %2827 = vmatprep.subr.mxu0 0.0
        %2828 = vmatpush1.msra.mxu0 0.0
        %2829 = vmatprep.subr.mxu0 0.0
        %2830 = vmatpush1.msra.mxu0 0.0
        %2831 = vmatprep.subr.mxu0 0.0
        %2832 = vmatpush1.msra.mxu0 0.0
        %2833 = vmatprep.subr.mxu0 0.0
        %2834 = vmatpush1.msra.mxu0 0.0
        %2835 = vmatprep.subr.mxu0 0.0
        %2836 = vmatpush1.msra.mxu0 0.0
        %2837 = vmatprep.subr.mxu0 0.0
        %2838 = vmatpush1.msra.mxu0 0.0
        %2839 = vmatprep.subr.mxu0 0.0
        %2840 = vmatpush1.msra.mxu0 0.0
        %2841 = vmatprep.subr.mxu0 0.0
        %2842 = vmatpush1.msra.mxu0 0.0
        %2843 = vmatprep.subr.mxu0 0.0
        %2844 = vmatpush1.msra.mxu0 0.0
        %2845 = vmatprep.subr.mxu0 0.0
        %2846 = vmatpush1.msra.mxu0 0.0
        %2847 = vmatprep.subr.mxu0 0.0
        %2848 = vmatpush1.msra.mxu0 0.0
        %2849 = vmatprep.subr.mxu0 0.0
        %2850 = vmatpush1.msra.mxu0 0.0
        %2851 = vmatprep.subr.mxu0 0.0
        %2852 = vmatpush1.msra.mxu0 0.0
        %2853 = vmatprep.subr.mxu0 0.0
        %2854 = vmatpush1.msra.mxu0 0.0
        %2855 = vmatprep.subr.mxu0 0.0
        %2856 = vmatpush1.msra.mxu0 0.0
        %2857 = vmatprep.subr.mxu0 0.0
        %2858 = vmatpush1.msra.mxu0 0.0
        %2859 = vmatprep.subr.mxu0 0.0
        %2860 = vmatpush1.msra.mxu0 0.0
        %2861 = vmatprep.mubr.f32.mxu0 0.0
        %2862 = vmatmul.mubr.f32.gmra.mrb[0].mxu0 %v2795
        %v2863 = vpop.f32.mrb[0].mxu0
        %v2864 = vadd.f32 0.0, %v2863
        %v2865 = vpop.f32.mrb[0].mxu0
        %2866 = vdwg.mxu0
        %v2867 = vadd.f32 %v2626, %v2864
        %s2868 = scalar_lea.vmem %s5, 1
        %v2869 = vld [vmem:[%s2868] sm:$0x1]
        %v2871 = vlaneseq
        %v2872 = vshrl.u32 %v2871, 7
        %v2873 = vsub.s32 0, %v2872
        %v2874 = vrot.slane %v2869, %v2873
        %v2876 = vadd.f32 %v2867, %v2874
        %v2877 = vadd.f32 %v1815, %v2876
        %s2878 = scalar_lea.vmem %s10, 1
        %v2879 = vld [vmem:[%s2878] sm:$0x1]
        %s2880 = scalar_lea.vmem %s11, 1
        %v2881 = vld [vmem:[%s2880] sm:$0x1]
        %v2882 = vsel %vm533, %v2877, 0.0
        %2883 = vadd.xlane.f32.xlu0 %v2882
        %v2884 = vpop.xlane.xlu0 %2883
        %v2885 = vmul.f32 %v2884, %v1587
        %v2886 = vsub.f32 %v2877, %v2885
        %v2887 = vmul.f32 %v2886, %v2886
        %v2888 = vsel %vm533, %v2887, 0.0
        %2889 = vadd.xlane.f32.xlu0 %v2888
        %v2890 = vpop.xlane.xlu0 %2889
        %v2891 = vmul.f32 %v2890, %v1587
        %v2892 = vadd.f32 %v2891, 1e-05
        %v2893 = vrsqrt.pop %v2892
        %v2894 = vmul.f32 %v2886, %v2893
        %v2896 = vlaneseq
        %v2897 = vshrl.u32 %v2896, 7
        %v2898 = vsub.s32 0, %v2897
        %v2899 = vrot.slane %v2879, %v2898
        %v2901 = vmul.f32 %v2894, %v2899
        %v2903 = vlaneseq
        %v2904 = vshrl.u32 %v2903, 7
        %v2905 = vsub.s32 0, %v2904
        %v2906 = vrot.slane %v2881, %v2905
        %v2908 = vadd.f32 %v2901, %v2906
        %s2909 = scalar_lea.vmem %s6, 32
        %v2910 = vld [vmem:[%s2909] sm:$0xff]
        %v2911 = vld [vmem:[%s2909 + $0x8] sm:$0xff]
        %v2912 = vld [vmem:[%s2909 + $0x10] sm:$0xff]
        %v2913 = vld [vmem:[%s2909 + $0x18] sm:$0xff]
        %s2914 = scalar_lea.vmem %s7, 1
        %v2915 = vld [vmem:[%s2914] sm:$0x1]
        %v2917 = vlaneseq
        %v2918 = vshrl.u32 %v2917, 7
        %v2919 = vsub.s32 0, %v2918
        %v2920 = vrot.slane %v2915, %v2919
        %v2923 = vsel %vm533, %v2908, 0
        %2925 = vmatprep.subr.mxu0 0.0
        %2926 = vmatpush1.msra.mxu0 %v2910
        %2927 = vmatprep.subr.mxu0 0.0
        %2928 = vmatpush1.msra.mxu0 %v2911
        %2929 = vmatprep.subr.mxu0 0.0
        %2930 = vmatpush1.msra.mxu0 %v2912
        %2931 = vmatprep.subr.mxu0 0.0
        %2932 = vmatpush1.msra.mxu0 %v2913
        %2933 = vmatprep.subr.mxu0 0.0
        %2934 = vmatpush1.msra.mxu0 0.0
        %2935 = vmatprep.subr.mxu0 0.0
        %2936 = vmatpush1.msra.mxu0 0.0
        %2937 = vmatprep.subr.mxu0 0.0
        %2938 = vmatpush1.msra.mxu0 0.0
        %2939 = vmatprep.subr.mxu0 0.0
        %2940 = vmatpush1.msra.mxu0 0.0
        %2941 = vmatprep.subr.mxu0 0.0
        %2942 = vmatpush1.msra.mxu0 0.0
        %2943 = vmatprep.subr.mxu0 0.0
        %2944 = vmatpush1.msra.mxu0 0.0
        %2945 = vmatprep.subr.mxu0 0.0
        %2946 = vmatpush1.msra.mxu0 0.0
        %2947 = vmatprep.subr.mxu0 0.0
        %2948 = vmatpush1.msra.mxu0 0.0
        %2949 = vmatprep.subr.mxu0 0.0
        %2950 = vmatpush1.msra.mxu0 0.0
        %2951 = vmatprep.subr.mxu0 0.0
        %2952 = vmatpush1.msra.mxu0 0.0
        %2953 = vmatprep.subr.mxu0 0.0
        %2954 = vmatpush1.msra.mxu0 0.0
        %2955 = vmatprep.subr.mxu0 0.0
        %2956 = vmatpush1.msra.mxu0 0.0
        %2957 = vmatprep.subr.mxu0 0.0
        %2958 = vmatpush1.msra.mxu0 0.0
        %2959 = vmatprep.subr.mxu0 0.0
        %2960 = vmatpush1.msra.mxu0 0.0
        %2961 = vmatprep.subr.mxu0 0.0
        %2962 = vmatpush1.msra.mxu0 0.0
        %2963 = vmatprep.subr.mxu0 0.0
        %2964 = vmatpush1.msra.mxu0 0.0
        %2965 = vmatprep.subr.mxu0 0.0
        %2966 = vmatpush1.msra.mxu0 0.0
        %2967 = vmatprep.subr.mxu0 0.0
        %2968 = vmatpush1.msra.mxu0 0.0
        %2969 = vmatprep.subr.mxu0 0.0
        %2970 = vmatpush1.msra.mxu0 0.0
        %2971 = vmatprep.subr.mxu0 0.0
        %2972 = vmatpush1.msra.mxu0 0.0
        %2973 = vmatprep.subr.mxu0 0.0
        %2974 = vmatpush1.msra.mxu0 0.0
        %2975 = vmatprep.subr.mxu0 0.0
        %2976 = vmatpush1.msra.mxu0 0.0
        %2977 = vmatprep.subr.mxu0 0.0
        %2978 = vmatpush1.msra.mxu0 0.0
        %2979 = vmatprep.subr.mxu0 0.0
        %2980 = vmatpush1.msra.mxu0 0.0
        %2981 = vmatprep.subr.mxu0 0.0
        %2982 = vmatpush1.msra.mxu0 0.0
        %2983 = vmatprep.subr.mxu0 0.0
        %2984 = vmatpush1.msra.mxu0 0.0
        %2985 = vmatprep.subr.mxu0 0.0
        %2986 = vmatpush1.msra.mxu0 0.0
        %2987 = vmatprep.subr.mxu0 0.0
        %2988 = vmatpush1.msra.mxu0 0.0
        %2989 = vmatprep.mubr.f32.mxu0 0.0
        %2990 = vmatmul.mubr.f32.gmra.mrb[0].mxu0 %v2923
        %v2991 = vpop.f32.mrb[0].mxu0
        %v2992 = vadd.f32 %v2920, %v2991
        %v2993 = vpop.f32.mrb[0].mxu0
        %2994 = vdwg.mxu0
        %v2995 = vmax.f32 %v2992, 0.0
        %s2996 = scalar_lea.vmem %s8, 64
        %v2997 = vld [vmem:[%s2996] sm:$0xff]
        %v2998 = vld [vmem:[%s2996 + $0x8] sm:$0xff]
        %v2999 = vld [vmem:[%s2996 + $0x10] sm:$0xff]
        %v3000 = vld [vmem:[%s2996 + $0x18] sm:$0xff]
        %v3001 = vld [vmem:[%s2996 + $0x20] sm:$0xff]
        %v3002 = vld [vmem:[%s2996 + $0x28] sm:$0xff]
        %v3003 = vld [vmem:[%s2996 + $0x30] sm:$0xff]
        %v3004 = vld [vmem:[%s2996 + $0x38] sm:$0xff]
        %s3005 = scalar_lea.vmem %s9, 1
        %v3006 = vld [vmem:[%s3005] sm:$0x1]
        %v3008 = vlaneseq
        %v3009 = vshrl.u32 %v3008, 7
        %v3010 = vsub.s32 0, %v3009
        %v3011 = vrot.slane %v3006, %v3010
        %v3014 = vsel %vm1712, %v2995, 0
        %3016 = vmatprep.subr.mxu0 0.0
        %3017 = vmatpush1.msra.mxu0 %v2997
        %3018 = vmatprep.subr.mxu0 0.0
        %3019 = vmatpush1.msra.mxu0 %v2998
        %3020 = vmatprep.subr.mxu0 0.0
        %3021 = vmatpush1.msra.mxu0 %v2999
        %3022 = vmatprep.subr.mxu0 0.0
        %3023 = vmatpush1.msra.mxu0 %v3000
        %3024 = vmatprep.subr.mxu0 0.0
        %3025 = vmatpush1.msra.mxu0 %v3001
        %3026 = vmatprep.subr.mxu0 0.0
        %3027 = vmatpush1.msra.mxu0 %v3002
        %3028 = vmatprep.subr.mxu0 0.0
        %3029 = vmatpush1.msra.mxu0 %v3003
        %3030 = vmatprep.subr.mxu0 0.0
        %3031 = vmatpush1.msra.mxu0 %v3004
        %3032 = vmatprep.subr.mxu0 0.0
        %3033 = vmatpush1.msra.mxu0 0.0
        %3034 = vmatprep.subr.mxu0 0.0
        %3035 = vmatpush1.msra.mxu0 0.0
        %3036 = vmatprep.subr.mxu0 0.0
        %3037 = vmatpush1.msra.mxu0 0.0
        %3038 = vmatprep.subr.mxu0 0.0
        %3039 = vmatpush1.msra.mxu0 0.0
        %3040 = vmatprep.subr.mxu0 0.0
        %3041 = vmatpush1.msra.mxu0 0.0
        %3042 = vmatprep.subr.mxu0 0.0
        %3043 = vmatpush1.msra.mxu0 0.0
        %3044 = vmatprep.subr.mxu0 0.0
        %3045 = vmatpush1.msra.mxu0 0.0
        %3046 = vmatprep.subr.mxu0 0.0
        %3047 = vmatpush1.msra.mxu0 0.0
        %3048 = vmatprep.subr.mxu0 0.0
        %3049 = vmatpush1.msra.mxu0 0.0
        %3050 = vmatprep.subr.mxu0 0.0
        %3051 = vmatpush1.msra.mxu0 0.0
        %3052 = vmatprep.subr.mxu0 0.0
        %3053 = vmatpush1.msra.mxu0 0.0
        %3054 = vmatprep.subr.mxu0 0.0
        %3055 = vmatpush1.msra.mxu0 0.0
        %3056 = vmatprep.subr.mxu0 0.0
        %3057 = vmatpush1.msra.mxu0 0.0
        %3058 = vmatprep.subr.mxu0 0.0
        %3059 = vmatpush1.msra.mxu0 0.0
        %3060 = vmatprep.subr.mxu0 0.0
        %3061 = vmatpush1.msra.mxu0 0.0
        %3062 = vmatprep.subr.mxu0 0.0
        %3063 = vmatpush1.msra.mxu0 0.0
        %3064 = vmatprep.subr.mxu0 0.0
        %3065 = vmatpush1.msra.mxu0 0.0
        %3066 = vmatprep.subr.mxu0 0.0
        %3067 = vmatpush1.msra.mxu0 0.0
        %3068 = vmatprep.subr.mxu0 0.0
        %3069 = vmatpush1.msra.mxu0 0.0
        %3070 = vmatprep.subr.mxu0 0.0
        %3071 = vmatpush1.msra.mxu0 0.0
        %3072 = vmatprep.subr.mxu0 0.0
        %3073 = vmatpush1.msra.mxu0 0.0
        %3074 = vmatprep.subr.mxu0 0.0
        %3075 = vmatpush1.msra.mxu0 0.0
        %3076 = vmatprep.subr.mxu0 0.0
        %3077 = vmatpush1.msra.mxu0 0.0
        %3078 = vmatprep.subr.mxu0 0.0
        %3079 = vmatpush1.msra.mxu0 0.0
        %3080 = vmatprep.mubr.f32.mxu0 0.0
        %3081 = vmatmul.mubr.f32.gmra.mrb[0].mxu0 %v3014
        %v3082 = vpop.f32.mrb[0].mxu0
        %v3083 = vadd.f32 %v3011, %v3082
        %v3084 = vpop.f32.mrb[0].mxu0
        %3085 = vdwg.mxu0
        %v3086 = vadd.f32 %v2908, %v3083
        %s3087 = scalar_lea.vmem %s12, 1
        %v3088 = vld [vmem:[%s3087] sm:$0x1]
        %s3089 = scalar_lea.vmem %s13, 1
        %v3090 = vld [vmem:[%s3089] sm:$0x1]
        %v3091 = vsel %vm533, %v3086, 0.0
        %3092 = vadd.xlane.f32.xlu0 %v3091
        %v3093 = vpop.xlane.xlu0 %3092
        %v3094 = vmul.f32 %v3093, %v1587
        %v3095 = vsub.f32 %v3086, %v3094
        %v3096 = vmul.f32 %v3095, %v3095
        %v3097 = vsel %vm533, %v3096, 0.0
        %3098 = vadd.xlane.f32.xlu0 %v3097
        %v3099 = vpop.xlane.xlu0 %3098
        %v3100 = vmul.f32 %v3099, %v1587
        %v3101 = vadd.f32 %v3100, 1e-05
        %v3102 = vrsqrt.pop %v3101
        %v3103 = vmul.f32 %v3095, %v3102
        %v3105 = vlaneseq
        %v3106 = vshrl.u32 %v3105, 7
        %v3107 = vsub.s32 0, %v3106
        %v3108 = vrot.slane %v3088, %v3107
        %v3110 = vmul.f32 %v3103, %v3108
        %v3112 = vlaneseq
        %v3113 = vshrl.u32 %v3112, 7
        %v3114 = vsub.s32 0, %v3113
        %v3115 = vrot.slane %v3090, %v3114
        %v3117 = vadd.f32 %v3110, %v3115
        %3118 = vst.msk [vmem:[%s519] sm:$0xff] %vm533, %v3117
        %s3119 = sand.u32 %s346, 1
        %s3120 = scalar_lea.sflag [#allocation4], %s3119
        %s3121 = sand.u32 %s346, 1
        %s3122 = smul.addr %s3121, 8
        %s3123 = scalar_lea.vmem [#allocation7], %s3122
        // Predicated region
        $region85: #{tpu_custom_call.1} parent=75 // pred_check
          %p3124 = pneg %p356
        $region86: #{tpu_custom_call.1} parent=75 // pred_check_branch
          %3126 = sbr.rel (%p3124) target = $region88
        $region87: #{tpu_custom_call.1} parent=75 // pred_region
          %s3128 = ssub.s32 128, 128
          %3129 = vsyncadd %s3120, %s3128
          %s3130 = smul.addr %s34, 128
          %s3131 = scalar_lea.hbm %s14, %s3130
          %s3133 = sshll.u32 %s3123, 4
          %s3134 = int_to_ptr.vmem [resolvable:$true] %s3133
          %3136 = dma.vmem_to_hbm [thread:$0]  %s3134, 128, %s3131, %s3120
        $region88: #{tpu_custom_call.1} parent=75 // pred_fallthru
          _
      $region76: #{tpu_custom_call.1} parent=5 // pred_fallthru
        _
      %p3137 = scmp.le.s32.totalorder 2, %s29
      // Predicated region
      $region89: #{tpu_custom_call.1} parent=5 // pred_check
        %p3138 = pneg %p3137
      $region90: #{tpu_custom_call.1} parent=5 // pred_check_branch
        %3140 = sbr.rel (%p3138) target = $region92
      $region91: #{tpu_custom_call.1} parent=5 // pred_region
        %s3141 = ssub.s32 %s29, 2
        // Predicated region
        $region93: #{tpu_custom_call.1} parent=91 // pred_check
          %p3142 = pneg %p362
        $region94: #{tpu_custom_call.1} parent=91 // pred_check_branch
          %3144 = sbr.rel (%p3142) target = $region96
        $region95: #{tpu_custom_call.1} parent=91 // pred_region
          %s3145 = sand.u32 %s347, 1
          %s3146 = scalar_lea.sflag [#allocation4], %s3145
          %s3147 = sand.u32 %s347, 1
          %s3148 = smul.addr %s3147, 8
          %s3149 = scalar_lea.vmem [#allocation7], %s3148
          %3150 = dma.done %s3146, 128
        $region96: #{tpu_custom_call.1} parent=91 // pred_fallthru
          _
      $region92: #{tpu_custom_call.1} parent=5 // pred_fallthru
        _
    $region6: #{tpu_custom_call.1} parent=1 // loop_footer
      %s33 = sadd.s32 1, %s29
    $region7: #{tpu_custom_call.1} parent=1 // loop_footer_branch
      %28 = sbr.rel target = $region3
    $region8: #{tpu_custom_call.1} parent=1 // loop_exit
      _
    %3151 = vsyncpa [#allocation3], 1
    %s3152 = scalar_lea.sflag [#allocation3], 1
    %3153 = vsyncpa %s3152, 1
    %3154 = vsyncpa [#allocation6], 1
    %s3155 = scalar_lea.sflag [#allocation6], 1
    %3156 = vsyncpa %s3155, 1
    %3157 = vsyncpa [#allocation4], 1
    %s3158 = scalar_lea.sflag [#allocation4], 1
    %3159 = vsyncpa %s3158, 1

</llo_original>
